<compile_context>
chip_gen: v7x
topology: tpu7x:2x2x1
jax: 0.10.0
libtpu: 0.0.40
codegen_flags: <defaults>
</compile_context>

<pallas_src>
import math
import functools

import jax
import jax.numpy as jnp
from jax.experimental import pallas as pl
from jax.experimental.pallas import tpu as pltpu

LOG2 = math.log(2.0)


def _ssp(t):
    # numerically-stable shifted softplus (elementwise, stays in f32)
    return jnp.maximum(t, 0.0) + jnp.log1p(jnp.exp(-jnp.abs(t))) - LOG2


def _round_up(v, m):
    return ((v + m - 1) // m) * m


def _pad2(a, shape, dtype):
    out = jnp.zeros(shape, dtype)
    return out.at[tuple(slice(0, s) for s in a.shape)].set(a.astype(dtype))


def _interaction_kernel(num_res_block, tn, te,
                        dst_sm,                                   # SMEM prefetch
                        xj_ref, ea_ref, dstv_ref, x_ref,
                        we_ref, be_ref, wv_ref, bv_ref, wg_ref,
                        rw1_ref, rb1_ref, rw2_ref, rb2_ref,
                        wo_ref, bo_ref, u_ref,
                        out_ref, msg_ref,
                        acc_ref):
    i = pl.program_id(0)                   # node tile (parallel)
    e = pl.program_id(1)                   # edge tile (reduction)
    n_e = pl.num_programs(1)
    row0 = pl.multiple_of(i * tn, tn)
    e_base = pl.multiple_of(e * te, te)

    @pl.when(e == 0)
    def _init():
        acc_ref[...] = jnp.zeros_like(acc_ref)

    # Edges are sorted by dst, so this tile's dst range is [lo_d, hi_d]; skip
    # edge tiles that cannot touch this node tile (cheap SMEM scalar reads).
    lo_d = dst_sm[e_base]
    hi_d = dst_sm[e_base + te - 1]
    has_work = jnp.logical_and(hi_d >= row0, lo_d < row0 + tn)

    @pl.when(has_work)
    def _edge_tile():
        # ---- message: act(lin_edge(act(x)_j)) * G(edge_attr) ----------------
        xj_act = _ssp(xj_ref[...])                                   # (te, F) f32
        m = _ssp(jnp.dot(xj_act.astype(jnp.bfloat16), we_ref[...],
                         preferred_element_type=jnp.float32) + be_ref[...])
        g = jnp.dot(ea_ref[...], wg_ref[...],
                    preferred_element_type=jnp.float32)              # (te, F)
        m = m * g

        # ---- scatter-add into this node tile (bf16 one-hot, exact 0/1) ------
        node_ids = row0 + jax.lax.broadcasted_iota(jnp.int32, (tn, te), 0)
        scat = (node_ids == dstv_ref[...]).astype(jnp.bfloat16)      # (tn, te)
        acc_ref[...] += jnp.dot(scat, m.astype(jnp.bfloat16),
                                preferred_element_type=jnp.float32)

    # ---- node-side update + residual blocks + output head, once per tile ----
    @pl.when(e == n_e - 1)
    def _finalize():
        x_tile = x_ref[...]                                          # (tn, F)
        ax = _ssp(x_tile)
        vert = _ssp(jnp.dot(ax.astype(jnp.bfloat16), wv_ref[...],
                            preferred_element_type=jnp.float32) + bv_ref[...])
        msg = vert + acc_ref[...]
        msg_ref[...] = msg.astype(msg_ref.dtype)

        # TODO(synk): ResidualBlock source not in the spec; PhysNet standard
        # pre-activation form y + lin2(act(lin1(act(y)))) is assumed.
        t = msg
        for r in range(num_res_block):
            a = _ssp(t)
            a = _ssp(jnp.dot(a.astype(jnp.bfloat16), rw1_ref[r],
                             preferred_element_type=jnp.float32) + rb1_ref[r])
            a = jnp.dot(a.astype(jnp.bfloat16), rw2_ref[r],
                        preferred_element_type=jnp.float32) + rb2_ref[r]
            t = t + a

        # (torch's `v = activation(tmp_res)` is dead code; omitted)
        v = jnp.dot(t.astype(jnp.bfloat16), wo_ref[...],
                    preferred_element_type=jnp.float32) + bo_ref[...]
        out_ref[...] = (v + x_tile * u_ref[...]).astype(out_ref.dtype)


def interaction_forward(x, edge_index, edge_attr, params, num_res_block,
                        tile_n=128, tile_e=128):
    """x: [N,F] f32, edge_index: [2,E] int32, edge_attr: [E,K] f32."""
    N, F = x.shape
    E, K = edge_attr.shape
    R = num_res_block
    Rs = max(R, 1)

    F_pad = _round_up(F, 128)
    K_pad = _round_up(K, 128)
    N_pad = _round_up(max(N, tile_n), tile_n)
    E_pad = _round_up(max(E, tile_e), tile_e)

    # Sort edges by destination so each edge tile covers a narrow dst range
    # (enables the per-tile skip).  Padded edges: edge_attr = 0 -> message 0,
    # dst = N_pad (sentinel) -> never matches a node row.
    order = jnp.argsort(edge_index[1])
    src = edge_index[0][order].astype(jnp.int32)
    dst = edge_index[1][order].astype(jnp.int32)
    ea = edge_attr[order]

    src_p = jnp.concatenate([src, jnp.zeros((E_pad - E,), jnp.int32)])
    dst_p = jnp.concatenate([dst, jnp.full((E_pad - E,), N_pad, jnp.int32)])
    dst_v = dst_p.reshape(1, E_pad)                       # lane-resident copy

    x_p = _pad2(x, (N_pad, F_pad), jnp.float32)
    # Pre-gather x_j = x[src] with XLA (streams HBM efficiently); the kernel
    # then only sees lane-dense pipelined [tile_e, F_pad] tiles.
    xj_p = jnp.take(x_p, src_p, axis=0)                   # (E_pad, F_pad) f32
    ea_p = _pad2(ea, (E_pad, K_pad), jnp.bfloat16)

    we = _pad2(params["we"], (F_pad, F_pad), jnp.bfloat16)
    be = _pad2(params["be"], (1, F_pad), jnp.float32)
    wv = _pad2(params["wv"], (F_pad, F_pad), jnp.bfloat16)
    bv = _pad2(params["bv"], (1, F_pad), jnp.float32)
    wg = _pad2(params["wg"], (K_pad, F_pad), jnp.bfloat16)
    wo = _pad2(params["wo"], (F_pad, F_pad), jnp.bfloat16)
    bo = _pad2(params["bo"], (1, F_pad), jnp.float32)
    u = _pad2(params["u"], (1, F_pad), jnp.float32)
    rw1 = _pad2(params["rw1"], (Rs, F_pad, F_pad), jnp.bfloat16)
    rb1 = _pad2(params["rb1"], (Rs, 1, F_pad), jnp.float32)
    rw2 = _pad2(params["rw2"], (Rs, F_pad, F_pad), jnp.bfloat16)
    rb2 = _pad2(params["rb2"], (Rs, 1, F_pad), jnp.float32)

    tensor_inputs = (xj_p, ea_p, dst_v, x_p, we, be, wv, bv, wg,
                     rw1, rb1, rw2, rb2, wo, bo, u)

    def _resident(shape):
        nd = len(shape)
        return pl.BlockSpec(shape, lambda i, e, *_, _nd=nd: (0,) * _nd)

    in_specs = [
        pl.BlockSpec((tile_e, F_pad), lambda i, e, *_: (e, 0)),    # x_j tile
        pl.BlockSpec((tile_e, K_pad), lambda i, e, *_: (e, 0)),    # edge_attr tile
        pl.BlockSpec((1, tile_e), lambda i, e, *_: (0, e)),        # dst vector tile
        pl.BlockSpec((tile_n, F_pad), lambda i, e, *_: (i, 0)),    # x node tile (resident over e)
        _resident((F_pad, F_pad)), _resident((1, F_pad)),          # we, be
        _resident((F_pad, F_pad)), _resident((1, F_pad)),          # wv, bv
        _resident((K_pad, F_pad)),                                 # wg
        _resident((Rs, F_pad, F_pad)), _resident((Rs, 1, F_pad)),  # rw1, rb1
        _resident((Rs, F_pad, F_pad)), _resident((Rs, 1, F_pad)),  # rw2, rb2
        _resident((F_pad, F_pad)), _resident((1, F_pad)),          # wo, bo
        _resident((1, F_pad)),                                     # u
    ]
    out_spec = pl.BlockSpec((tile_n, F_pad), lambda i, e, *_: (i, 0))

    grid = (N_pad // tile_n, E_pad // tile_e)

    flops = 2 * (E_pad * F_pad * F_pad          # lin_edge
                 + E_pad * K_pad * F_pad        # G(edge_attr)
                 + E_pad * tile_n * F_pad       # per-tile one-hot scatter
                 + N_pad * F_pad * F_pad * (2 * R + 2))
    transcendentals = 2 * (2 * E_pad * F_pad + (2 * R + 2) * N_pad * F_pad)
    bytes_accessed = int(sum(int(a.size) * a.dtype.itemsize for a in tensor_inputs)
                         + E_pad * 4 + 2 * N_pad * F_pad * 4)

    kernel = functools.partial(_interaction_kernel, R, tile_n, tile_e)

    out_p, msg_p = pl.pallas_call(
        kernel,
        out_shape=(jax.ShapeDtypeStruct((N_pad, F_pad), jnp.float32),
                   jax.ShapeDtypeStruct((N_pad, F_pad), jnp.float32)),
        grid_spec=pltpu.PrefetchScalarGridSpec(
            num_scalar_prefetch=1,
            grid=grid,
            in_specs=in_specs,
            out_specs=(out_spec, out_spec),
            scratch_shapes=[pltpu.VMEM((tile_n, F_pad), jnp.float32)]),  # acc
        compiler_params=pltpu.CompilerParams(
            dimension_semantics=("parallel", "arbitrary"),
            vmem_limit_bytes=32 * 1024 * 1024),
        cost_estimate=pl.CostEstimate(flops=flops,
                                      transcendentals=transcendentals,
                                      bytes_accessed=bytes_accessed),
    )(dst_p, *tensor_inputs)

    return out_p[:N, :F], msg_p[:N, :F]


def init_params(key, num_features, kernel_channels, num_res_block):
    """Linear weights stored [in, out] so the kernel computes x @ W."""
    F, K, R = num_features, kernel_channels, num_res_block
    keys = jax.random.split(key, 4 + 2 * max(R, 1))

    def xavier(k, shape):
        lim = math.sqrt(6.0 / (shape[0] + shape[1]))
        return jax.random.uniform(k, shape, jnp.float32, -lim, lim)

    def stack(fn):
        if R == 0:
            return jnp.zeros((0, F, F), jnp.float32)
        return jnp.stack([fn(i) for i in range(R)])

    return {
        "we": xavier(keys[0], (F, F)),            # lin_edge
        "be": jnp.zeros((1, F), jnp.float32),
        "wv": xavier(keys[1], (F, F)),            # lin_vertex
        "bv": jnp.zeros((1, F), jnp.float32),
        "wg": xavier(keys[2], (K, F)),            # G (torch zero-inits; xavier to exercise path)
        "wo": xavier(keys[3], (F, F)),            # lin_output
        "bo": jnp.zeros((1, F), jnp.float32),
        "u": jnp.ones((1, F), jnp.float32),       # gate u (torch double; f32 here)
        "rw1": stack(lambda i: xavier(keys[4 + 2 * i], (F, F))),
        "rb1": jnp.zeros((R, 1, F), jnp.float32),
        "rw2": stack(lambda i: xavier(keys[5 + 2 * i], (F, F))),
        "rb2": jnp.zeros((R, 1, F), jnp.float32),
    }


def _reference_forward(x, edge_index, edge_attr, params, num_res_block):
    """Pure-JAX f32 reference mirroring the torch module."""
    src, dst = edge_index[0], edge_index[1]
    ax = _ssp(x)
    x_j = ax[src]
    m = _ssp(x_j @ params["we"] + params["be"]) * (edge_attr @ params["wg"])
    aggr = jnp.zeros_like(x).at[dst].add(m)
    msg = _ssp(ax @ params["wv"] + params["bv"]) + aggr
    t = msg
    for i in range(num_res_block):
        a = _ssp(t)
        a = _ssp(a @ params["rw1"][i] + params["rb1"][i])
        a = a @ params["rw2"][i] + params["rb2"][i]
        t = t + a
    v = t @ params["wo"] + params["bo"]
    return v + x * params["u"], msg


if __name__ == "__main__":
    # nodes, num_features, kernel_channels, edges, res blocks
    N, F, K, E, R = 100, 128, 64, 400, 2

    key = jax.random.PRNGKey(0)
    k_x, k_ea, k_ei, k_p = jax.random.split(key, 4)

    x = jax.random.normal(k_x, (N, F), jnp.float32)
    edge_attr = jax.random.normal(k_ea, (E, K), jnp.float32)
    edge_index = jax.random.randint(k_ei, (2, E), 0, N, dtype=jnp.int32)
    params = init_params(k_p, F, K, R)

    out, msg_x = interaction_forward(x, edge_index, edge_attr, params, R)
    jax.block_until_ready(out)
    jax.block_until_ready(msg_x)

    assert out.shape == (N, F) and msg_x.shape == (N, F)

    # correctness vs f32 reference (loose tolerance: bf16 MXU operands)
    ref_out, ref_msg = _reference_forward(x, edge_index, edge_attr, params, R)
    assert bool(jnp.allclose(msg_x, ref_msg, rtol=1e-1, atol=1e-1))
    assert bool(jnp.allclose(out, ref_out, rtol=1e-1, atol=1e-1))

    print("KERNEL_OK")
</pallas_src>

<mosaic_0001>
module attributes {stable_mosaic.version = 11 : i64} {
  func.func @_interaction_kernel(%arg0: i32, %arg1: i32, %arg2: memref<512xi32, #tpu.memory_space<smem>>, %arg3: memref<128x128xf32, #tpu.memory_space<vmem>>, %arg4: memref<128x128xbf16, #tpu.memory_space<vmem>>, %arg5: memref<1x128xi32, #tpu.memory_space<vmem>>, %arg6: memref<128x128xf32, #tpu.memory_space<vmem>>, %arg7: memref<128x128xbf16, #tpu.memory_space<vmem>>, %arg8: memref<1x128xf32, #tpu.memory_space<vmem>>, %arg9: memref<128x128xbf16, #tpu.memory_space<vmem>>, %arg10: memref<1x128xf32, #tpu.memory_space<vmem>>, %arg11: memref<128x128xbf16, #tpu.memory_space<vmem>>, %arg12: memref<2x128x128xbf16, #tpu.memory_space<vmem>>, %arg13: memref<2x1x128xf32, #tpu.memory_space<vmem>>, %arg14: memref<2x128x128xbf16, #tpu.memory_space<vmem>>, %arg15: memref<2x1x128xf32, #tpu.memory_space<vmem>>, %arg16: memref<128x128xbf16, #tpu.memory_space<vmem>>, %arg17: memref<1x128xf32, #tpu.memory_space<vmem>>, %arg18: memref<1x128xf32, #tpu.memory_space<vmem>>, %arg19: memref<128x128xf32, #tpu.memory_space<vmem>>, %arg20: memref<128x128xf32, #tpu.memory_space<vmem>>, %arg21: memref<128x128xf32, #tpu.memory_space<vmem>>) attributes {dimension_semantics = [#tpu.dimension_semantics<parallel>, #tpu.dimension_semantics<arbitrary>], iteration_bounds = array<i64: 1, 4>, scalar_prefetch = 1 : i64, scratch_operands = 1 : i64, tpu.core_type = #tpu.core_type<tc>, window_params = [{transform_indices = @transform_0, window_bounds = array<i64: 128, 128>}, {transform_indices = @transform_1, window_bounds = array<i64: 128, 128>}, {transform_indices = @transform_2, window_bounds = array<i64: 1, 128>}, {transform_indices = @transform_3, window_bounds = array<i64: 128, 128>}, {pipeline_mode = #tpu.pipeline_mode<synchronous>, transform_indices = @transform_4, window_bounds = array<i64: 128, 128>}, {pipeline_mode = #tpu.pipeline_mode<synchronous>, transform_indices = @transform_5, window_bounds = array<i64: 1, 128>}, {pipeline_mode = #tpu.pipeline_mode<synchronous>, transform_indices = @transform_6, window_bounds = array<i64: 128, 128>}, {pipeline_mode = #tpu.pipeline_mode<synchronous>, transform_indices = @transform_7, window_bounds = array<i64: 1, 128>}, {pipeline_mode = #tpu.pipeline_mode<synchronous>, transform_indices = @transform_8, window_bounds = array<i64: 128, 128>}, {pipeline_mode = #tpu.pipeline_mode<synchronous>, transform_indices = @transform_9, window_bounds = array<i64: 2, 128, 128>}, {pipeline_mode = #tpu.pipeline_mode<synchronous>, transform_indices = @transform_10, window_bounds = array<i64: 2, 1, 128>}, {pipeline_mode = #tpu.pipeline_mode<synchronous>, transform_indices = @transform_11, window_bounds = array<i64: 2, 128, 128>}, {pipeline_mode = #tpu.pipeline_mode<synchronous>, transform_indices = @transform_12, window_bounds = array<i64: 2, 1, 128>}, {pipeline_mode = #tpu.pipeline_mode<synchronous>, transform_indices = @transform_13, window_bounds = array<i64: 128, 128>}, {pipeline_mode = #tpu.pipeline_mode<synchronous>, transform_indices = @transform_14, window_bounds = array<i64: 1, 128>}, {pipeline_mode = #tpu.pipeline_mode<synchronous>, transform_indices = @transform_15, window_bounds = array<i64: 1, 128>}, {transform_indices = @transform_16, window_bounds = array<i64: 128, 128>}, {transform_indices = @transform_17, window_bounds = array<i64: 128, 128>}]} {
    %c128_i32 = arith.constant 128 : i32
    %0 = arith.muli %arg0, %c128_i32 : i32
    %1 = tpu.assume_multiple %0, 128 : i32
    %c128_i32_0 = arith.constant 128 : i32
    %2 = arith.muli %arg1, %c128_i32_0 : i32
    %3 = tpu.assume_multiple %2, 128 : i32
    %c0_i32 = arith.constant 0 : i32
    %4 = arith.cmpi eq, %arg1, %c0_i32 : i32
    %5 = arith.extui %4 : i1 to i32
    %c0_i32_1 = arith.constant 0 : i32
    %6 = arith.cmpi ne, %5, %c0_i32_1 : i32
    scf.if %6 {
      %cst = arith.constant 0.000000e+00 : f32
      %22 = vector.broadcast %cst : f32 to vector<128x128xf32>
      %c0 = arith.constant 0 : index
      %c0_6 = arith.constant 0 : index
      %23 = vector.load %arg21[%c0, %c0_6] : memref<128x128xf32, #tpu.memory_space<vmem>>, vector<128x128xf32>
      tpu.vector_store %arg21[%c0, %c0_6], %22 {strides = array<i32>} : memref<128x128xf32, #tpu.memory_space<vmem>>, vector<128x128xf32>,
    } else {
    }
    %7 = arith.index_cast %3 : i32 to index
    %8 = memref.load %arg2[%7] : memref<512xi32, #tpu.memory_space<smem>>
    %c128_i32_2 = arith.constant 128 : i32
    %9 = arith.addi %3, %c128_i32_2 : i32
    %c1_i32 = arith.constant 1 : i32
    %10 = arith.subi %9, %c1_i32 : i32
    %11 = arith.index_cast %10 : i32 to index
    %12 = memref.load %arg2[%11] : memref<512xi32, #tpu.memory_space<smem>>
    %13 = arith.cmpi sge, %12, %1 : i32
    %c128_i32_3 = arith.constant 128 : i32
    %14 = arith.addi %1, %c128_i32_3 : i32
    %15 = arith.cmpi slt, %8, %14 : i32
    %16 = arith.andi %13, %15 : i1
    %17 = arith.extui %16 : i1 to i32
    %c0_i32_4 = arith.constant 0 : i32
    %18 = arith.cmpi ne, %17, %c0_i32_4 : i32
    scf.if %18 {
      %c0 = arith.constant 0 : index
      %c0_6 = arith.constant 0 : index
      %22 = vector.load %arg3[%c0, %c0_6] : memref<128x128xf32, #tpu.memory_space<vmem>>, vector<128x128xf32>
      %cst = arith.constant 0.000000e+00 : f32
      %23 = vector.broadcast %cst : f32 to vector<128x128xf32>
      %24 = arith.maximumf %22, %23 : vector<128x128xf32>
      %25 = math.absf %22 : vector<128x128xf32>
      %cst_7 = arith.constant 0.000000e+00 : f32
      %26 = vector.broadcast %cst_7 : f32 to vector<128x128xf32>
      %27 = arith.subf %26, %25 : vector<128x128xf32>
      %28 = math.exp %27 : vector<128x128xf32>
      %29 = math.log1p %28 : vector<128x128xf32>
      %30 = arith.addf %24, %29 : vector<128x128xf32>
      %cst_8 = arith.constant 0.693147182 : f32
      %31 = vector.broadcast %cst_8 : f32 to vector<128x128xf32>
      %32 = arith.subf %30, %31 : vector<128x128xf32>
      %33 = arith.truncf %32 : vector<128x128xf32> to vector<128x128xbf16>
      %c0_9 = arith.constant 0 : index
      %c0_10 = arith.constant 0 : index
      %34 = vector.load %arg7[%c0_9, %c0_10] : memref<128x128xbf16, #tpu.memory_space<vmem>>, vector<128x128xbf16>
      %cst_11 = arith.constant dense<0.000000e+00> : vector<128x128xf32>
      %35 = tpu.matmul %33, %34, %cst_11 {dimension_numbers = #tpu.dot_dimension_numbers<[1], [0], [0], [1], [0, 0, 1, 1], [], []>} : vector<128x128xbf16>, vector<128x128xbf16>, vector<128x128xf32> -> vector<128x128xf32>
      %c0_12 = arith.constant 0 : index
      %c0_13 = arith.constant 0 : index
      %36 = vector.load %arg8[%c0_12, %c0_13] : memref<1x128xf32, #tpu.memory_space<vmem>>, vector<1x128xf32>
      %37 = vector.broadcast %36 : vector<1x128xf32> to vector<128x128xf32>
      %38 = arith.addf %35, %37 : vector<128x128xf32>
      %cst_14 = arith.constant 0.000000e+00 : f32
      %39 = vector.broadcast %cst_14 : f32 to vector<128x128xf32>
      %40 = arith.maximumf %38, %39 : vector<128x128xf32>
      %41 = math.absf %38 : vector<128x128xf32>
      %cst_15 = arith.constant 0.000000e+00 : f32
      %42 = vector.broadcast %cst_15 : f32 to vector<128x128xf32>
      %43 = arith.subf %42, %41 : vector<128x128xf32>
      %44 = math.exp %43 : vector<128x128xf32>
      %45 = math.log1p %44 : vector<128x128xf32>
      %46 = arith.addf %40, %45 : vector<128x128xf32>
      %cst_16 = arith.constant 0.693147182 : f32
      %47 = vector.broadcast %cst_16 : f32 to vector<128x128xf32>
      %48 = arith.subf %46, %47 : vector<128x128xf32>
      %c0_17 = arith.constant 0 : index
      %c0_18 = arith.constant 0 : index
      %49 = vector.load %arg4[%c0_17, %c0_18] : memref<128x128xbf16, #tpu.memory_space<vmem>>, vector<128x128xbf16>
      %c0_19 = arith.constant 0 : index
      %c0_20 = arith.constant 0 : index
      %50 = vector.load %arg11[%c0_19, %c0_20] : memref<128x128xbf16, #tpu.memory_space<vmem>>, vector<128x128xbf16>
      %cst_21 = arith.constant dense<0.000000e+00> : vector<128x128xf32>
      %51 = tpu.matmul %49, %50, %cst_21 {dimension_numbers = #tpu.dot_dimension_numbers<[1], [0], [0], [1], [0, 0, 1, 1], [], []>} : vector<128x128xbf16>, vector<128x128xbf16>, vector<128x128xf32> -> vector<128x128xf32>
      %52 = arith.mulf %48, %51 : vector<128x128xf32>
      %53 = tpu.iota {dimensions = array<i32: 0>} : vector<128x128xi32>
      %54 = vector.broadcast %1 : i32 to vector<128x128xi32>
      %55 = arith.addi %54, %53 : vector<128x128xi32>
      %c0_22 = arith.constant 0 : index
      %c0_23 = arith.constant 0 : index
      %56 = vector.load %arg5[%c0_22, %c0_23] : memref<1x128xi32, #tpu.memory_space<vmem>>, vector<1x128xi32>
      %57 = vector.broadcast %56 : vector<1x128xi32> to vector<128x128xi32>
      %58 = arith.cmpi eq, %55, %57 : vector<128x128xi32>
      %59 = arith.extui %58 : vector<128x128xi1> to vector<128x128xi32>
      %60 = arith.sitofp %59 : vector<128x128xi32> to vector<128x128xf32>
      %61 = arith.truncf %60 : vector<128x128xf32> to vector<128x128xbf16>
      %c0_24 = arith.constant 0 : index
      %c0_25 = arith.constant 0 : index
      %62 = vector.load %arg21[%c0_24, %c0_25] : memref<128x128xf32, #tpu.memory_space<vmem>>, vector<128x128xf32>
      %63 = arith.truncf %52 : vector<128x128xf32> to vector<128x128xbf16>
      %cst_26 = arith.constant dense<0.000000e+00> : vector<128x128xf32>
      %64 = tpu.matmul %61, %63, %cst_26 {dimension_numbers = #tpu.dot_dimension_numbers<[1], [0], [0], [1], [0, 0, 1, 1], [], []>} : vector<128x128xbf16>, vector<128x128xbf16>, vector<128x128xf32> -> vector<128x128xf32>
      %65 = arith.addf %62, %64 : vector<128x128xf32>
      %c0_27 = arith.constant 0 : index
      %c0_28 = arith.constant 0 : index
      %66 = vector.load %arg21[%c0_27, %c0_28] : memref<128x128xf32, #tpu.memory_space<vmem>>, vector<128x128xf32>
      tpu.vector_store %arg21[%c0_27, %c0_28], %65 {strides = array<i32>} : memref<128x128xf32, #tpu.memory_space<vmem>>, vector<128x128xf32>,
    } else {
    }
    %c3_i32 = arith.constant 3 : i32
    %19 = arith.cmpi eq, %arg1, %c3_i32 : i32
    %20 = arith.extui %19 : i1 to i32
    %c0_i32_5 = arith.constant 0 : i32
    %21 = arith.cmpi ne, %20, %c0_i32_5 : i32
    scf.if %21 {
      %c0 = arith.constant 0 : index
      %c0_6 = arith.constant 0 : index
      %22 = vector.load %arg6[%c0, %c0_6] : memref<128x128xf32, #tpu.memory_space<vmem>>, vector<128x128xf32>
      %cst = arith.constant 0.000000e+00 : f32
      %23 = vector.broadcast %cst : f32 to vector<128x128xf32>
      %24 = arith.maximumf %22, %23 : vector<128x128xf32>
      %25 = math.absf %22 : vector<128x128xf32>
      %cst_7 = arith.constant 0.000000e+00 : f32
      %26 = vector.broadcast %cst_7 : f32 to vector<128x128xf32>
      %27 = arith.subf %26, %25 : vector<128x128xf32>
      %28 = math.exp %27 : vector<128x128xf32>
      %29 = math.log1p %28 : vector<128x128xf32>
      %30 = arith.addf %24, %29 : vector<128x128xf32>
      %cst_8 = arith.constant 0.693147182 : f32
      %31 = vector.broadcast %cst_8 : f32 to vector<128x128xf32>
      %32 = arith.subf %30, %31 : vector<128x128xf32>
      %33 = arith.truncf %32 : vector<128x128xf32> to vector<128x128xbf16>
      %c0_9 = arith.constant 0 : index
      %c0_10 = arith.constant 0 : index
      %34 = vector.load %arg9[%c0_9, %c0_10] : memref<128x128xbf16, #tpu.memory_space<vmem>>, vector<128x128xbf16>
      %cst_11 = arith.constant dense<0.000000e+00> : vector<128x128xf32>
      %35 = tpu.matmul %33, %34, %cst_11 {dimension_numbers = #tpu.dot_dimension_numbers<[1], [0], [0], [1], [0, 0, 1, 1], [], []>} : vector<128x128xbf16>, vector<128x128xbf16>, vector<128x128xf32> -> vector<128x128xf32>
      %c0_12 = arith.constant 0 : index
      %c0_13 = arith.constant 0 : index
      %36 = vector.load %arg10[%c0_12, %c0_13] : memref<1x128xf32, #tpu.memory_space<vmem>>, vector<1x128xf32>
      %37 = vector.broadcast %36 : vector<1x128xf32> to vector<128x128xf32>
      %38 = arith.addf %35, %37 : vector<128x128xf32>
      %cst_14 = arith.constant 0.000000e+00 : f32
      %39 = vector.broadcast %cst_14 : f32 to vector<128x128xf32>
      %40 = arith.maximumf %38, %39 : vector<128x128xf32>
      %41 = math.absf %38 : vector<128x128xf32>
      %cst_15 = arith.constant 0.000000e+00 : f32
      %42 = vector.broadcast %cst_15 : f32 to vector<128x128xf32>
      %43 = arith.subf %42, %41 : vector<128x128xf32>
      %44 = math.exp %43 : vector<128x128xf32>
      %45 = math.log1p %44 : vector<128x128xf32>
      %46 = arith.addf %40, %45 : vector<128x128xf32>
      %cst_16 = arith.constant 0.693147182 : f32
      %47 = vector.broadcast %cst_16 : f32 to vector<128x128xf32>
      %48 = arith.subf %46, %47 : vector<128x128xf32>
      %c0_17 = arith.constant 0 : index
      %c0_18 = arith.constant 0 : index
      %49 = vector.load %arg21[%c0_17, %c0_18] : memref<128x128xf32, #tpu.memory_space<vmem>>, vector<128x128xf32>
      %50 = arith.addf %48, %49 : vector<128x128xf32>
      %c0_19 = arith.constant 0 : index
      %c0_20 = arith.constant 0 : index
      %51 = vector.load %arg20[%c0_19, %c0_20] : memref<128x128xf32, #tpu.memory_space<vmem>>, vector<128x128xf32>
      tpu.vector_store %arg20[%c0_19, %c0_20], %50 {strides = array<i32>} : memref<128x128xf32, #tpu.memory_space<vmem>>, vector<128x128xf32>,
      %cst_21 = arith.constant 0.000000e+00 : f32
      %52 = vector.broadcast %cst_21 : f32 to vector<128x128xf32>
      %53 = arith.maximumf %50, %52 : vector<128x128xf32>
      %54 = math.absf %50 : vector<128x128xf32>
      %cst_22 = arith.constant 0.000000e+00 : f32
      %55 = vector.broadcast %cst_22 : f32 to vector<128x128xf32>
      %56 = arith.subf %55, %54 : vector<128x128xf32>
      %57 = math.exp %56 : vector<128x128xf32>
      %58 = math.log1p %57 : vector<128x128xf32>
      %59 = arith.addf %53, %58 : vector<128x128xf32>
      %cst_23 = arith.constant 0.693147182 : f32
      %60 = vector.broadcast %cst_23 : f32 to vector<128x128xf32>
      %61 = arith.subf %59, %60 : vector<128x128xf32>
      %62 = arith.truncf %61 : vector<128x128xf32> to vector<128x128xbf16>
      %c0_24 = arith.constant 0 : index
      %c0_25 = arith.constant 0 : index
      %c0_26 = arith.constant 0 : index
      %63 = vector.load %arg12[%c0_24, %c0_25, %c0_26] : memref<2x128x128xbf16, #tpu.memory_space<vmem>>, vector<1x128x128xbf16>
      %64 = vector.shape_cast %63 : vector<1x128x128xbf16> to vector<128x128xbf16>
      %cst_27 = arith.constant dense<0.000000e+00> : vector<128x128xf32>
      %65 = tpu.matmul %62, %64, %cst_27 {dimension_numbers = #tpu.dot_dimension_numbers<[1], [0], [0], [1], [0, 0, 1, 1], [], []>} : vector<128x128xbf16>, vector<128x128xbf16>, vector<128x128xf32> -> vector<128x128xf32>
      %c0_28 = arith.constant 0 : index
      %c0_29 = arith.constant 0 : index
      %c0_30 = arith.constant 0 : index
      %66 = vector.load %arg13[%c0_28, %c0_29, %c0_30] : memref<2x1x128xf32, #tpu.memory_space<vmem>>, vector<1x1x128xf32>
      %67 = vector.shape_cast %66 : vector<1x1x128xf32> to vector<1x128xf32>
      %68 = vector.broadcast %67 : vector<1x128xf32> to vector<128x128xf32>
      %69 = arith.addf %65, %68 : vector<128x128xf32>
      %cst_31 = arith.constant 0.000000e+00 : f32
      %70 = vector.broadcast %cst_31 : f32 to vector<128x128xf32>
      %71 = arith.maximumf %69, %70 : vector<128x128xf32>
      %72 = math.absf %69 : vector<128x128xf32>
      %cst_32 = arith.constant 0.000000e+00 : f32
      %73 = vector.broadcast %cst_32 : f32 to vector<128x128xf32>
      %74 = arith.subf %73, %72 : vector<128x128xf32>
      %75 = math.exp %74 : vector<128x128xf32>
      %76 = math.log1p %75 : vector<128x128xf32>
      %77 = arith.addf %71, %76 : vector<128x128xf32>
      %cst_33 = arith.constant 0.693147182 : f32
      %78 = vector.broadcast %cst_33 : f32 to vector<128x128xf32>
      %79 = arith.subf %77, %78 : vector<128x128xf32>
      %80 = arith.truncf %79 : vector<128x128xf32> to vector<128x128xbf16>
      %c0_34 = arith.constant 0 : index
      %c0_35 = arith.constant 0 : index
      %c0_36 = arith.constant 0 : index
      %81 = vector.load %arg14[%c0_34, %c0_35, %c0_36] : memref<2x128x128xbf16, #tpu.memory_space<vmem>>, vector<1x128x128xbf16>
      %82 = vector.shape_cast %81 : vector<1x128x128xbf16> to vector<128x128xbf16>
      %cst_37 = arith.constant dense<0.000000e+00> : vector<128x128xf32>
      %83 = tpu.matmul %80, %82, %cst_37 {dimension_numbers = #tpu.dot_dimension_numbers<[1], [0], [0], [1], [0, 0, 1, 1], [], []>} : vector<128x128xbf16>, vector<128x128xbf16>, vector<128x128xf32> -> vector<128x128xf32>
      %c0_38 = arith.constant 0 : index
      %c0_39 = arith.constant 0 : index
      %c0_40 = arith.constant 0 : index
      %84 = vector.load %arg15[%c0_38, %c0_39, %c0_40] : memref<2x1x128xf32, #tpu.memory_space<vmem>>, vector<1x1x128xf32>
      %85 = vector.shape_cast %84 : vector<1x1x128xf32> to vector<1x128xf32>
      %86 = vector.broadcast %85 : vector<1x128xf32> to vector<128x128xf32>
      %87 = arith.addf %83, %86 : vector<128x128xf32>
      %88 = arith.addf %50, %87 : vector<128x128xf32>
      %cst_41 = arith.constant 0.000000e+00 : f32
      %89 = vector.broadcast %cst_41 : f32 to vector<128x128xf32>
      %90 = arith.maximumf %88, %89 : vector<128x128xf32>
      %91 = math.absf %88 : vector<128x128xf32>
      %cst_42 = arith.constant 0.000000e+00 : f32
      %92 = vector.broadcast %cst_42 : f32 to vector<128x128xf32>
      %93 = arith.subf %92, %91 : vector<128x128xf32>
      %94 = math.exp %93 : vector<128x128xf32>
      %95 = math.log1p %94 : vector<128x128xf32>
      %96 = arith.addf %90, %95 : vector<128x128xf32>
      %cst_43 = arith.constant 0.693147182 : f32
      %97 = vector.broadcast %cst_43 : f32 to vector<128x128xf32>
      %98 = arith.subf %96, %97 : vector<128x128xf32>
      %99 = arith.truncf %98 : vector<128x128xf32> to vector<128x128xbf16>
      %c1 = arith.constant 1 : index
      %c0_44 = arith.constant 0 : index
      %c0_45 = arith.constant 0 : index
      %100 = vector.load %arg12[%c1, %c0_44, %c0_45] : memref<2x128x128xbf16, #tpu.memory_space<vmem>>, vector<1x128x128xbf16>
      %101 = vector.shape_cast %100 : vector<1x128x128xbf16> to vector<128x128xbf16>
      %cst_46 = arith.constant dense<0.000000e+00> : vector<128x128xf32>
      %102 = tpu.matmul %99, %101, %cst_46 {dimension_numbers = #tpu.dot_dimension_numbers<[1], [0], [0], [1], [0, 0, 1, 1], [], []>} : vector<128x128xbf16>, vector<128x128xbf16>, vector<128x128xf32> -> vector<128x128xf32>
      %c1_47 = arith.constant 1 : index
      %c0_48 = arith.constant 0 : index
      %c0_49 = arith.constant 0 : index
      %103 = vector.load %arg13[%c1_47, %c0_48, %c0_49] : memref<2x1x128xf32, #tpu.memory_space<vmem>>, vector<1x1x128xf32>
      %104 = vector.shape_cast %103 : vector<1x1x128xf32> to vector<1x128xf32>
      %105 = vector.broadcast %104 : vector<1x128xf32> to vector<128x128xf32>
      %106 = arith.addf %102, %105 : vector<128x128xf32>
      %cst_50 = arith.constant 0.000000e+00 : f32
      %107 = vector.broadcast %cst_50 : f32 to vector<128x128xf32>
      %108 = arith.maximumf %106, %107 : vector<128x128xf32>
      %109 = math.absf %106 : vector<128x128xf32>
      %cst_51 = arith.constant 0.000000e+00 : f32
      %110 = vector.broadcast %cst_51 : f32 to vector<128x128xf32>
      %111 = arith.subf %110, %109 : vector<128x128xf32>
      %112 = math.exp %111 : vector<128x128xf32>
      %113 = math.log1p %112 : vector<128x128xf32>
      %114 = arith.addf %108, %113 : vector<128x128xf32>
      %cst_52 = arith.constant 0.693147182 : f32
      %115 = vector.broadcast %cst_52 : f32 to vector<128x128xf32>
      %116 = arith.subf %114, %115 : vector<128x128xf32>
      %117 = arith.truncf %116 : vector<128x128xf32> to vector<128x128xbf16>
      %c1_53 = arith.constant 1 : index
      %c0_54 = arith.constant 0 : index
      %c0_55 = arith.constant 0 : index
      %118 = vector.load %arg14[%c1_53, %c0_54, %c0_55] : memref<2x128x128xbf16, #tpu.memory_space<vmem>>, vector<1x128x128xbf16>
      %119 = vector.shape_cast %118 : vector<1x128x128xbf16> to vector<128x128xbf16>
      %cst_56 = arith.constant dense<0.000000e+00> : vector<128x128xf32>
      %120 = tpu.matmul %117, %119, %cst_56 {dimension_numbers = #tpu.dot_dimension_numbers<[1], [0], [0], [1], [0, 0, 1, 1], [], []>} : vector<128x128xbf16>, vector<128x128xbf16>, vector<128x128xf32> -> vector<128x128xf32>
      %c1_57 = arith.constant 1 : index
      %c0_58 = arith.constant 0 : index
      %c0_59 = arith.constant 0 : index
      %121 = vector.load %arg15[%c1_57, %c0_58, %c0_59] : memref<2x1x128xf32, #tpu.memory_space<vmem>>, vector<1x1x128xf32>
      %122 = vector.shape_cast %121 : vector<1x1x128xf32> to vector<1x128xf32>
      %123 = vector.broadcast %122 : vector<1x128xf32> to vector<128x128xf32>
      %124 = arith.addf %120, %123 : vector<128x128xf32>
      %125 = arith.addf %88, %124 : vector<128x128xf32>
      %126 = arith.truncf %125 : vector<128x128xf32> to vector<128x128xbf16>
      %c0_60 = arith.constant 0 : index
      %c0_61 = arith.constant 0 : index
      %127 = vector.load %arg16[%c0_60, %c0_61] : memref<128x128xbf16, #tpu.memory_space<vmem>>, vector<128x128xbf16>
      %cst_62 = arith.constant dense<0.000000e+00> : vector<128x128xf32>
      %128 = tpu.matmul %126, %127, %cst_62 {dimension_numbers = #tpu.dot_dimension_numbers<[1], [0], [0], [1], [0, 0, 1, 1], [], []>} : vector<128x128xbf16>, vector<128x128xbf16>, vector<128x128xf32> -> vector<128x128xf32>
      %c0_63 = arith.constant 0 : index
      %c0_64 = arith.constant 0 : index
      %129 = vector.load %arg17[%c0_63, %c0_64] : memref<1x128xf32, #tpu.memory_space<vmem>>, vector<1x128xf32>
      %130 = vector.broadcast %129 : vector<1x128xf32> to vector<128x128xf32>
      %131 = arith.addf %128, %130 : vector<128x128xf32>
      %c0_65 = arith.constant 0 : index
      %c0_66 = arith.constant 0 : index
      %132 = vector.load %arg18[%c0_65, %c0_66] : memref<1x128xf32, #tpu.memory_space<vmem>>, vector<1x128xf32>
      %133 = vector.broadcast %132 : vector<1x128xf32> to vector<128x128xf32>
      %134 = arith.mulf %22, %133 : vector<128x128xf32>
      %135 = arith.addf %131, %134 : vector<128x128xf32>
      %c0_67 = arith.constant 0 : index
      %c0_68 = arith.constant 0 : index
      %136 = vector.load %arg19[%c0_67, %c0_68] : memref<128x128xf32, #tpu.memory_space<vmem>>, vector<128x128xf32>
      tpu.vector_store %arg19[%c0_67, %c0_68], %135 {strides = array<i32>} : memref<128x128xf32, #tpu.memory_space<vmem>>, vector<128x128xf32>,
    } else {
    }
    return
  }
  func.func @transform_0(%arg0: i32, %arg1: i32, %arg2: memref<512xi32, #tpu.memory_space<smem>>) -> (i32, i32) {
    %c0_i32 = arith.constant 0 : i32
    %c0_i32_0 = arith.constant 0 : i32
    return %arg1, %c0_i32 : i32, i32
  }
  func.func @transform_1(%arg0: i32, %arg1: i32, %arg2: memref<512xi32, #tpu.memory_space<smem>>) -> (i32, i32) {
    %c0_i32 = arith.constant 0 : i32
    %c0_i32_0 = arith.constant 0 : i32
    return %arg1, %c0_i32 : i32, i32
  }
  func.func @transform_2(%arg0: i32, %arg1: i32, %arg2: memref<512xi32, #tpu.memory_space<smem>>) -> (i32, i32) {
    %c0_i32 = arith.constant 0 : i32
    %c0_i32_0 = arith.constant 0 : i32
    return %c0_i32, %arg1 : i32, i32
  }
  func.func @transform_3(%arg0: i32, %arg1: i32, %arg2: memref<512xi32, #tpu.memory_space<smem>>) -> (i32, i32) {
    %c0_i32 = arith.constant 0 : i32
    %c0_i32_0 = arith.constant 0 : i32
    return %arg0, %c0_i32 : i32, i32
  }
  func.func @transform_4(%arg0: i32, %arg1: i32, %arg2: memref<512xi32, #tpu.memory_space<smem>>) -> (i32, i32) {
    %c0_i32 = arith.constant 0 : i32
    %c0_i32_0 = arith.constant 0 : i32
    %c0_i32_1 = arith.constant 0 : i32
    return %c0_i32, %c0_i32_0 : i32, i32
  }
  func.func @transform_5(%arg0: i32, %arg1: i32, %arg2: memref<512xi32, #tpu.memory_space<smem>>) -> (i32, i32) {
    %c0_i32 = arith.constant 0 : i32
    %c0_i32_0 = arith.constant 0 : i32
    %c0_i32_1 = arith.constant 0 : i32
    return %c0_i32, %c0_i32_0 : i32, i32
  }
  func.func @transform_6(%arg0: i32, %arg1: i32, %arg2: memref<512xi32, #tpu.memory_space<smem>>) -> (i32, i32) {
    %c0_i32 = arith.constant 0 : i32
    %c0_i32_0 = arith.constant 0 : i32
    %c0_i32_1 = arith.constant 0 : i32
    return %c0_i32, %c0_i32_0 : i32, i32
  }
  func.func @transform_7(%arg0: i32, %arg1: i32, %arg2: memref<512xi32, #tpu.memory_space<smem>>) -> (i32, i32) {
    %c0_i32 = arith.constant 0 : i32
    %c0_i32_0 = arith.constant 0 : i32
    %c0_i32_1 = arith.constant 0 : i32
    return %c0_i32, %c0_i32_0 : i32, i32
  }
  func.func @transform_8(%arg0: i32, %arg1: i32, %arg2: memref<512xi32, #tpu.memory_space<smem>>) -> (i32, i32) {
    %c0_i32 = arith.constant 0 : i32
    %c0_i32_0 = arith.constant 0 : i32
    %c0_i32_1 = arith.constant 0 : i32
    return %c0_i32, %c0_i32_0 : i32, i32
  }
  func.func @transform_9(%arg0: i32, %arg1: i32, %arg2: memref<512xi32, #tpu.memory_space<smem>>) -> (i32, i32, i32) {
    %c0_i32 = arith.constant 0 : i32
    %c0_i32_0 = arith.constant 0 : i32
    %c0_i32_1 = arith.constant 0 : i32
    %c0_i32_2 = arith.constant 0 : i32
    return %c0_i32, %c0_i32_0, %c0_i32_1 : i32, i32, i32
  }
  func.func @transform_10(%arg0: i32, %arg1: i32, %arg2: memref<512xi32, #tpu.memory_space<smem>>) -> (i32, i32, i32) {
    %c0_i32 = arith.constant 0 : i32
    %c0_i32_0 = arith.constant 0 : i32
    %c0_i32_1 = arith.constant 0 : i32
    %c0_i32_2 = arith.constant 0 : i32
    return %c0_i32, %c0_i32_0, %c0_i32_1 : i32, i32, i32
  }
  func.func @transform_11(%arg0: i32, %arg1: i32, %arg2: memref<512xi32, #tpu.memory_space<smem>>) -> (i32, i32, i32) {
    %c0_i32 = arith.constant 0 : i32
    %c0_i32_0 = arith.constant 0 : i32
    %c0_i32_1 = arith.constant 0 : i32
    %c0_i32_2 = arith.constant 0 : i32
    return %c0_i32, %c0_i32_0, %c0_i32_1 : i32, i32, i32
  }
  func.func @transform_12(%arg0: i32, %arg1: i32, %arg2: memref<512xi32, #tpu.memory_space<smem>>) -> (i32, i32, i32) {
    %c0_i32 = arith.constant 0 : i32
    %c0_i32_0 = arith.constant 0 : i32
    %c0_i32_1 = arith.constant 0 : i32
    %c0_i32_2 = arith.constant 0 : i32
    return %c0_i32, %c0_i32_0, %c0_i32_1 : i32, i32, i32
  }
  func.func @transform_13(%arg0: i32, %arg1: i32, %arg2: memref<512xi32, #tpu.memory_space<smem>>) -> (i32, i32) {
    %c0_i32 = arith.constant 0 : i32
    %c0_i32_0 = arith.constant 0 : i32
    %c0_i32_1 = arith.constant 0 : i32
    return %c0_i32, %c0_i32_0 : i32, i32
  }
  func.func @transform_14(%arg0: i32, %arg1: i32, %arg2: memref<512xi32, #tpu.memory_space<smem>>) -> (i32, i32) {
    %c0_i32 = arith.constant 0 : i32
    %c0_i32_0 = arith.constant 0 : i32
    %c0_i32_1 = arith.constant 0 : i32
    return %c0_i32, %c0_i32_0 : i32, i32
  }
  func.func @transform_15(%arg0: i32, %arg1: i32, %arg2: memref<512xi32, #tpu.memory_space<smem>>) -> (i32, i32) {
    %c0_i32 = arith.constant 0 : i32
    %c0_i32_0 = arith.constant 0 : i32
    %c0_i32_1 = arith.constant 0 : i32
    return %c0_i32, %c0_i32_0 : i32, i32
  }
  func.func @transform_16(%arg0: i32, %arg1: i32, %arg2: memref<512xi32, #tpu.memory_space<smem>>) -> (i32, i32) {
    %c0_i32 = arith.constant 0 : i32
    %c0_i32_0 = arith.constant 0 : i32
    return %arg0, %c0_i32 : i32, i32
  }
  func.func @transform_17(%arg0: i32, %arg1: i32, %arg2: memref<512xi32, #tpu.memory_space<smem>>) -> (i32, i32) {
    %c0_i32 = arith.constant 0 : i32
    %c0_i32_0 = arith.constant 0 : i32
    return %arg0, %c0_i32 : i32, i32
  }
}

</mosaic_0001>

<llo_original>
// kernel: tpu_custom_call.1
$region0: #{tpu_custom_call.1}
  #allocation0 [shape = 'u32[]', space=smem, size = 0x4, offset = 0x4, fixed_abs, tag = 'smem constant byte address 0x4 - core index']
  #allocation1 [shape = 'u32[144,128]{1,0:T(1,128)}', space=vmem, size = 0x12000, scoped, tag = 'internal scratch']
  #allocation2 [shape = 'f32[128,128]{1,0:T(8,128)}', space=vmem, size = 0x10000, scoped, tag = 'scratch operand']
  #allocation3 [shape = 's32[1]{0}', space=sflag, size = 0x4, scoped, tag = 'scoped memory for tpu_custom_call.1']
  #allocation4 [shape = 'u8[2048]{0}', space=smem, size = 0x800, scoped, tag = 'prefetched SMEM operand 0']
  %s0 = inlined_call_operand.hbm [shape: s32[512], index: 0, kind: input, shape index: {}]
  %s1 = inlined_call_operand.hbm [shape: f32[512,128], index: 1, kind: input, shape index: {}]
  %s2 = inlined_call_operand.hbm [shape: bf16[512,128], index: 2, kind: input, shape index: {}]
  %s3 = inlined_call_operand.vmem [shape: s32[1,512], index: 3, kind: input, shape index: {}]
  %s4 = inlined_call_operand.hbm [shape: f32[128,128], index: 4, kind: input, shape index: {}]
  %s5 = inlined_call_operand.hbm [shape: bf16[128,128], index: 5, kind: input, shape index: {}]
  %s6 = inlined_call_operand.vmem [shape: f32[1,128], index: 6, kind: input, shape index: {}]
  %s7 = inlined_call_operand.hbm [shape: bf16[128,128], index: 7, kind: input, shape index: {}]
  %s8 = inlined_call_operand.vmem [shape: f32[1,128], index: 8, kind: input, shape index: {}]
  %s9 = inlined_call_operand.hbm [shape: bf16[128,128], index: 9, kind: input, shape index: {}]
  %s10 = inlined_call_operand.hbm [shape: bf16[2,128,128], index: 10, kind: input, shape index: {}]
  %s11 = inlined_call_operand.vmem [shape: f32[2,1,128], index: 11, kind: input, shape index: {}]
  %s12 = inlined_call_operand.hbm [shape: bf16[2,128,128], index: 12, kind: input, shape index: {}]
  %s13 = inlined_call_operand.vmem [shape: f32[2,1,128], index: 13, kind: input, shape index: {}]
  %s14 = inlined_call_operand.hbm [shape: bf16[128,128], index: 14, kind: input, shape index: {}]
  %s15 = inlined_call_operand.vmem [shape: f32[1,128], index: 15, kind: input, shape index: {}]
  %s16 = inlined_call_operand.vmem [shape: f32[1,128], index: 16, kind: input, shape index: {}]
  %s17 = inlined_call_operand.hbm [shape: f32[128,128], index: 17, kind: output, shape index: {0}]
  %s18 = inlined_call_operand.hbm [shape: f32[128,128], index: 18, kind: output, shape index: {1}]
  %19 = xla_tuple %s17, %s18
  %s20 = sld [smem:[#allocation0]]
  $region153: #{tpu_custom_call.1} parent=0
    _
  %s22 = ssub.s32 1, %s20
  %s23 = scalar_select 0, %s22, %s20
  %25 = dma.hbm_to_smem %s0, 64, [#allocation4], [#allocation3]
  %26 = dma.done [#allocation3], 64
  %27 = sfence
  $region1: #{tpu_custom_call.1} parent=0
    #allocation5 [shape = 'u8[131072]{0}', space=vmem, size = 0x20000, scoped, tag = 'input window, operand 1']
    #allocation6 [shape = 's32[2]{0}', space=sflag, size = 0x8, scoped, tag = 'scoped memory for tpu_custom_call.1']
    #allocation7 [shape = 's32[2]{0}', space=sflag, size = 0x8, scoped, tag = 'scoped memory for tpu_custom_call.1']
    #allocation8 [shape = 'u8[65536]{0}', space=vmem, size = 0x10000, scoped, tag = 'input window, operand 2']
    #allocation9 [shape = 's32[2]{0}', space=sflag, size = 0x8, scoped, tag = 'scoped memory for tpu_custom_call.1']
    #allocation10 [shape = 'u8[65536]{0}', space=vmem, size = 0x10000, scoped, tag = 'input window, operand 4, single buffered']
    #allocation11 [shape = 'u8[32768]{0}', space=vmem, size = 0x8000, scoped, tag = 'input window, operand 5, single buffered']
    #allocation12 [shape = 's32[1]{0}', space=sflag, size = 0x4, scoped, tag = 'scoped memory for tpu_custom_call.1']
    #allocation13 [shape = 'u8[32768]{0}', space=vmem, size = 0x8000, scoped, tag = 'input window, operand 7, single buffered']
    #allocation14 [shape = 'u8[32768]{0}', space=vmem, size = 0x8000, scoped, tag = 'input window, operand 9, single buffered']
    #allocation15 [shape = 's32[1]{0}', space=sflag, size = 0x4, scoped, tag = 'scoped memory for tpu_custom_call.1']
    #allocation16 [shape = 'u8[65536]{0}', space=vmem, size = 0x10000, scoped, tag = 'input window, operand 10, single buffered']
    #allocation17 [shape = 'u8[65536]{0}', space=vmem, size = 0x10000, scoped, tag = 'input window, operand 12, single buffered']
    #allocation18 [shape = 's32[1]{0}', space=sflag, size = 0x4, scoped, tag = 'scoped memory for tpu_custom_call.1']
    #allocation19 [shape = 'u8[32768]{0}', space=vmem, size = 0x8000, scoped, tag = 'input window, operand 14, single buffered']
    #allocation20 [shape = 'u8[65536]{0}', space=vmem, size = 0x10000, scoped, tag = 'output window, operand 0, single buffered']
    #allocation21 [shape = 'u8[65536]{0}', space=vmem, size = 0x10000, scoped, tag = 'output window, operand 1, single buffered']
    #allocation22 [shape = 's32[1]{0}', space=sflag, size = 0x4, scoped, tag = 'scoped memory for tpu_custom_call.1']
    %28 = vsyncpa [#allocation6], 0
    %s29 = scalar_lea.sflag [#allocation6], 1
    %30 = vsyncpa %s29, 0
    %31 = vsyncpa [#allocation9], 0
    %s32 = scalar_lea.sflag [#allocation9], 1
    %33 = vsyncpa %s32, 0
    %34 = vsyncpa [#allocation12], 0
    %35 = vsyncpa [#allocation15], 0
    %36 = vsyncpa [#allocation18], 0
    %37 = vsyncpa [#allocation7], 0
    %38 = vsyncpa [#allocation22], 0
    loop: start=0, step=1, limit=6
    $region2: #{tpu_custom_call.1} parent=1 // loop_pre_header
      _
    $region3: #{tpu_custom_call.1} parent=1 // loop_header
      %s40 = sphi 0, %s44
      %p41 = scmp.ge.s32.totalorder %s40, 6
      %s47 = sphi 0, %s59
      %s48 = sphi 0, %s55
      %s49 = sphi 0, %s47
      %s50 = sphi 0, %s48
      %s51 = sphi 0, %s49
      %s52 = sphi 0, %s50
      %s62 = sphi 0, %s64
      %s65 = sphi 0, %s62
      %s66 = sphi 0, %s65
      %s82 = sphi 0, %s66
      %s88 = sphi 0, %s90
      %s91 = sphi 0, %s88
      %s92 = sphi 0, %s91
      %s108 = sphi 0, %s92
      %s114 = sphi 0, %s116
      %s117 = sphi 0, %s114
      %s118 = sphi 0, %s117
      %s134 = sphi 0, %s118
      %s140 = sphi 0, %s142
      %s143 = sphi 0, %s140
      %s144 = sphi 0, %s143
      %s160 = sphi 0, %s144
      %s164 = sphi 0, %s164
      %s166 = sphi 0, %s164
      %s167 = sphi 0, %s166
      %s181 = sphi 0, %s167
      %s185 = sphi 0, %s185
      %s187 = sphi 0, %s185
      %s188 = sphi 0, %s187
      %s202 = sphi 0, %s188
      %s206 = sphi 0, %s206
      %s208 = sphi 0, %s206
      %s209 = sphi 0, %s208
      %s223 = sphi 0, %s209
      %s227 = sphi 0, %s227
      %s229 = sphi 0, %s227
      %s230 = sphi 0, %s229
      %s244 = sphi 0, %s230
      %s248 = sphi 0, %s248
      %s250 = sphi 0, %s248
      %s251 = sphi 0, %s250
      %s265 = sphi 0, %s251
      %s269 = sphi 0, %s269
      %s271 = sphi 0, %s269
      %s272 = sphi 0, %s271
      %s286 = sphi 0, %s272
      %s290 = sphi 0, %s290
      %s292 = sphi 0, %s290
      %s293 = sphi 0, %s292
      %s307 = sphi 0, %s293
      %s311 = sphi 0, %s311
      %s313 = sphi 0, %s311
      %s314 = sphi 0, %s313
      %s328 = sphi 0, %s314
      %s332 = sphi 0, %s332
      %s334 = sphi 0, %s332
      %s335 = sphi 0, %s334
      %s349 = sphi 0, %s335
      %s353 = sphi 0, %s353
      %s355 = sphi 0, %s353
      %s356 = sphi 0, %s355
      %s370 = sphi 0, %s356
      %s374 = sphi 0, %s374
      %s376 = sphi 0, %s374
      %s377 = sphi 0, %s376
      %s391 = sphi 0, %s377
      %s395 = sphi 0, %s395
      %s397 = sphi 0, %s395
      %s398 = sphi 0, %s397
      %s412 = sphi 0, %s398
      %s418 = sphi 0, %s420
      %s421 = sphi 0, %s418
      %s422 = sphi 0, %s421
      %s438 = sphi 0, %s422
      %s444 = sphi 0, %s446
      %s447 = sphi 0, %s444
      %s448 = sphi 0, %s447
      %s464 = sphi 0, %s448
    $region4: #{tpu_custom_call.1} parent=1 // loop_header_branch
      %43 = sbr.rel (%p41) target = $region8
    $region5: #{tpu_custom_call.1} parent=1 // loop_body
      %s45 = ssub.s32 %s40, 1
      %s46 = ssub.s32 %s40, 2
      %s53 = sadd.s32 1, %s48
      %p54 = scmp.ge.s32.totalorder %s53, 4
      %s55 = scalar_select %p54, 0, %s53
      %s56 = sadd.s32 1, %s47
      %s57 = scalar_select %p54, %s56, %s47
      %p58 = scmp.ge.s32.totalorder %s57, 1
      %s59 = scalar_select %p58, 0, %s57
      %s60 = ssub.s32 %s48, %s55
      %p61 = scmp.eq.s32.totalorder %s60, 0
      %s63 = sadd.s32 %s62, 1
      %s64 = scalar_select %p61, %s62, %s63
      %p67 = pneg %p61
      %p68 = scmp.eq.s32.totalorder %s40, 3
      %p69 = por %p67, %p68
      %p70 = scmp.ne.s32.totalorder %s62, %s65
      %p71 = scmp.eq.s32.totalorder %s40, 0
      %p72 = por %p70, %p71
      %p73 = scmp.ne.s32.totalorder %s62, %s65
      %p74 = scmp.eq.s32.totalorder %s45, 3
      %p75 = por %p73, %p74
      %p76 = scmp.ne.s32.totalorder %s65, %s66
      %p77 = scmp.eq.s32.totalorder %s45, 0
      %p78 = por %p76, %p77
      %p79 = scmp.ne.s32.totalorder %s65, %s66
      %p80 = scmp.eq.s32.totalorder %s46, 3
      %p81 = por %p79, %p80
      %p83 = scmp.ne.s32.totalorder %s66, %s82
      %p84 = scmp.eq.s32.totalorder %s46, 0
      %p85 = por %p83, %p84
      %s86 = ssub.s32 %s48, %s55
      %p87 = scmp.eq.s32.totalorder %s86, 0
      %s89 = sadd.s32 %s88, 1
      %s90 = scalar_select %p87, %s88, %s89
      %p93 = pneg %p87
      %p94 = scmp.eq.s32.totalorder %s40, 3
      %p95 = por %p93, %p94
      %p96 = scmp.ne.s32.totalorder %s88, %s91
      %p97 = scmp.eq.s32.totalorder %s40, 0
      %p98 = por %p96, %p97
      %p99 = scmp.ne.s32.totalorder %s88, %s91
      %p100 = scmp.eq.s32.totalorder %s45, 3
      %p101 = por %p99, %p100
      %p102 = scmp.ne.s32.totalorder %s91, %s92
      %p103 = scmp.eq.s32.totalorder %s45, 0
      %p104 = por %p102, %p103
      %p105 = scmp.ne.s32.totalorder %s91, %s92
      %p106 = scmp.eq.s32.totalorder %s46, 3
      %p107 = por %p105, %p106
      %p109 = scmp.ne.s32.totalorder %s92, %s108
      %p110 = scmp.eq.s32.totalorder %s46, 0
      %p111 = por %p109, %p110
      %s112 = ssub.s32 %s48, %s55
      %p113 = scmp.eq.s32.totalorder %s112, 0
      %s115 = sadd.s32 %s114, 1
      %s116 = scalar_select %p113, %s114, %s115
      %p119 = pneg %p113
      %p120 = scmp.eq.s32.totalorder %s40, 3
      %p121 = por %p119, %p120
      %p122 = scmp.ne.s32.totalorder %s114, %s117
      %p123 = scmp.eq.s32.totalorder %s40, 0
      %p124 = por %p122, %p123
      %p125 = scmp.ne.s32.totalorder %s114, %s117
      %p126 = scmp.eq.s32.totalorder %s45, 3
      %p127 = por %p125, %p126
      %p128 = scmp.ne.s32.totalorder %s117, %s118
      %p129 = scmp.eq.s32.totalorder %s45, 0
      %p130 = por %p128, %p129
      %p131 = scmp.ne.s32.totalorder %s117, %s118
      %p132 = scmp.eq.s32.totalorder %s46, 3
      %p133 = por %p131, %p132
      %p135 = scmp.ne.s32.totalorder %s118, %s134
      %p136 = scmp.eq.s32.totalorder %s46, 0
      %p137 = por %p135, %p136
      %s138 = ssub.s32 %s47, %s59
      %p139 = scmp.eq.s32.totalorder %s138, 0
      %s141 = sadd.s32 %s140, 1
      %s142 = scalar_select %p139, %s140, %s141
      %p145 = pneg %p139
      %p146 = scmp.eq.s32.totalorder %s40, 3
      %p147 = por %p145, %p146
      %p148 = scmp.ne.s32.totalorder %s140, %s143
      %p149 = scmp.eq.s32.totalorder %s40, 0
      %p150 = por %p148, %p149
      %p151 = scmp.ne.s32.totalorder %s140, %s143
      %p152 = scmp.eq.s32.totalorder %s45, 3
      %p153 = por %p151, %p152
      %p154 = scmp.ne.s32.totalorder %s143, %s144
      %p155 = scmp.eq.s32.totalorder %s45, 0
      %p156 = por %p154, %p155
      %p157 = scmp.ne.s32.totalorder %s143, %s144
      %p158 = scmp.eq.s32.totalorder %s46, 3
      %p159 = por %p157, %p158
      %p161 = scmp.ne.s32.totalorder %s144, %s160
      %p162 = scmp.eq.s32.totalorder %s46, 0
      %p163 = por %p161, %p162
      %s165 = sadd.s32 %s164, 1
      %p168 = scmp.eq.s32.totalorder %s40, 3
      %p169 = scmp.ne.s32.totalorder %s164, %s166
      %p170 = scmp.eq.s32.totalorder %s40, 0
      %p171 = por %p169, %p170
      %p172 = scmp.ne.s32.totalorder %s164, %s166
      %p173 = scmp.eq.s32.totalorder %s45, 3
      %p174 = por %p172, %p173
      %p175 = scmp.ne.s32.totalorder %s166, %s167
      %p176 = scmp.eq.s32.totalorder %s45, 0
      %p177 = por %p175, %p176
      %p178 = scmp.ne.s32.totalorder %s166, %s167
      %p179 = scmp.eq.s32.totalorder %s46, 3
      %p180 = por %p178, %p179
      %p182 = scmp.ne.s32.totalorder %s167, %s181
      %p183 = scmp.eq.s32.totalorder %s46, 0
      %p184 = por %p182, %p183
      %s186 = sadd.s32 %s185, 1
      %p189 = scmp.eq.s32.totalorder %s40, 3
      %p190 = scmp.ne.s32.totalorder %s185, %s187
      %p191 = scmp.eq.s32.totalorder %s40, 0
      %p192 = por %p190, %p191
      %p193 = scmp.ne.s32.totalorder %s185, %s187
      %p194 = scmp.eq.s32.totalorder %s45, 3
      %p195 = por %p193, %p194
      %p196 = scmp.ne.s32.totalorder %s187, %s188
      %p197 = scmp.eq.s32.totalorder %s45, 0
      %p198 = por %p196, %p197
      %p199 = scmp.ne.s32.totalorder %s187, %s188
      %p200 = scmp.eq.s32.totalorder %s46, 3
      %p201 = por %p199, %p200
      %p203 = scmp.ne.s32.totalorder %s188, %s202
      %p204 = scmp.eq.s32.totalorder %s46, 0
      %p205 = por %p203, %p204
      %s207 = sadd.s32 %s206, 1
      %p210 = scmp.eq.s32.totalorder %s40, 3
      %p211 = scmp.ne.s32.totalorder %s206, %s208
      %p212 = scmp.eq.s32.totalorder %s40, 0
      %p213 = por %p211, %p212
      %p214 = scmp.ne.s32.totalorder %s206, %s208
      %p215 = scmp.eq.s32.totalorder %s45, 3
      %p216 = por %p214, %p215
      %p217 = scmp.ne.s32.totalorder %s208, %s209
      %p218 = scmp.eq.s32.totalorder %s45, 0
      %p219 = por %p217, %p218
      %p220 = scmp.ne.s32.totalorder %s208, %s209
      %p221 = scmp.eq.s32.totalorder %s46, 3
      %p222 = por %p220, %p221
      %p224 = scmp.ne.s32.totalorder %s209, %s223
      %p225 = scmp.eq.s32.totalorder %s46, 0
      %p226 = por %p224, %p225
      %s228 = sadd.s32 %s227, 1
      %p231 = scmp.eq.s32.totalorder %s40, 3
      %p232 = scmp.ne.s32.totalorder %s227, %s229
      %p233 = scmp.eq.s32.totalorder %s40, 0
      %p234 = por %p232, %p233
      %p235 = scmp.ne.s32.totalorder %s227, %s229
      %p236 = scmp.eq.s32.totalorder %s45, 3
      %p237 = por %p235, %p236
      %p238 = scmp.ne.s32.totalorder %s229, %s230
      %p239 = scmp.eq.s32.totalorder %s45, 0
      %p240 = por %p238, %p239
      %p241 = scmp.ne.s32.totalorder %s229, %s230
      %p242 = scmp.eq.s32.totalorder %s46, 3
      %p243 = por %p241, %p242
      %p245 = scmp.ne.s32.totalorder %s230, %s244
      %p246 = scmp.eq.s32.totalorder %s46, 0
      %p247 = por %p245, %p246
      %s249 = sadd.s32 %s248, 1
      %p252 = scmp.eq.s32.totalorder %s40, 3
      %p253 = scmp.ne.s32.totalorder %s248, %s250
      %p254 = scmp.eq.s32.totalorder %s40, 0
      %p255 = por %p253, %p254
      %p256 = scmp.ne.s32.totalorder %s248, %s250
      %p257 = scmp.eq.s32.totalorder %s45, 3
      %p258 = por %p256, %p257
      %p259 = scmp.ne.s32.totalorder %s250, %s251
      %p260 = scmp.eq.s32.totalorder %s45, 0
      %p261 = por %p259, %p260
      %p262 = scmp.ne.s32.totalorder %s250, %s251
      %p263 = scmp.eq.s32.totalorder %s46, 3
      %p264 = por %p262, %p263
      %p266 = scmp.ne.s32.totalorder %s251, %s265
      %p267 = scmp.eq.s32.totalorder %s46, 0
      %p268 = por %p266, %p267
      %s270 = sadd.s32 %s269, 1
      %p273 = scmp.eq.s32.totalorder %s40, 3
      %p274 = scmp.ne.s32.totalorder %s269, %s271
      %p275 = scmp.eq.s32.totalorder %s40, 0
      %p276 = por %p274, %p275
      %p277 = scmp.ne.s32.totalorder %s269, %s271
      %p278 = scmp.eq.s32.totalorder %s45, 3
      %p279 = por %p277, %p278
      %p280 = scmp.ne.s32.totalorder %s271, %s272
      %p281 = scmp.eq.s32.totalorder %s45, 0
      %p282 = por %p280, %p281
      %p283 = scmp.ne.s32.totalorder %s271, %s272
      %p284 = scmp.eq.s32.totalorder %s46, 3
      %p285 = por %p283, %p284
      %p287 = scmp.ne.s32.totalorder %s272, %s286
      %p288 = scmp.eq.s32.totalorder %s46, 0
      %p289 = por %p287, %p288
      %s291 = sadd.s32 %s290, 1
      %p294 = scmp.eq.s32.totalorder %s40, 3
      %p295 = scmp.ne.s32.totalorder %s290, %s292
      %p296 = scmp.eq.s32.totalorder %s40, 0
      %p297 = por %p295, %p296
      %p298 = scmp.ne.s32.totalorder %s290, %s292
      %p299 = scmp.eq.s32.totalorder %s45, 3
      %p300 = por %p298, %p299
      %p301 = scmp.ne.s32.totalorder %s292, %s293
      %p302 = scmp.eq.s32.totalorder %s45, 0
      %p303 = por %p301, %p302
      %p304 = scmp.ne.s32.totalorder %s292, %s293
      %p305 = scmp.eq.s32.totalorder %s46, 3
      %p306 = por %p304, %p305
      %p308 = scmp.ne.s32.totalorder %s293, %s307
      %p309 = scmp.eq.s32.totalorder %s46, 0
      %p310 = por %p308, %p309
      %s312 = sadd.s32 %s311, 1
      %p315 = scmp.eq.s32.totalorder %s40, 3
      %p316 = scmp.ne.s32.totalorder %s311, %s313
      %p317 = scmp.eq.s32.totalorder %s40, 0
      %p318 = por %p316, %p317
      %p319 = scmp.ne.s32.totalorder %s311, %s313
      %p320 = scmp.eq.s32.totalorder %s45, 3
      %p321 = por %p319, %p320
      %p322 = scmp.ne.s32.totalorder %s313, %s314
      %p323 = scmp.eq.s32.totalorder %s45, 0
      %p324 = por %p322, %p323
      %p325 = scmp.ne.s32.totalorder %s313, %s314
      %p326 = scmp.eq.s32.totalorder %s46, 3
      %p327 = por %p325, %p326
      %p329 = scmp.ne.s32.totalorder %s314, %s328
      %p330 = scmp.eq.s32.totalorder %s46, 0
      %p331 = por %p329, %p330
      %s333 = sadd.s32 %s332, 1
      %p336 = scmp.eq.s32.totalorder %s40, 3
      %p337 = scmp.ne.s32.totalorder %s332, %s334
      %p338 = scmp.eq.s32.totalorder %s40, 0
      %p339 = por %p337, %p338
      %p340 = scmp.ne.s32.totalorder %s332, %s334
      %p341 = scmp.eq.s32.totalorder %s45, 3
      %p342 = por %p340, %p341
      %p343 = scmp.ne.s32.totalorder %s334, %s335
      %p344 = scmp.eq.s32.totalorder %s45, 0
      %p345 = por %p343, %p344
      %p346 = scmp.ne.s32.totalorder %s334, %s335
      %p347 = scmp.eq.s32.totalorder %s46, 3
      %p348 = por %p346, %p347
      %p350 = scmp.ne.s32.totalorder %s335, %s349
      %p351 = scmp.eq.s32.totalorder %s46, 0
      %p352 = por %p350, %p351
      %s354 = sadd.s32 %s353, 1
      %p357 = scmp.eq.s32.totalorder %s40, 3
      %p358 = scmp.ne.s32.totalorder %s353, %s355
      %p359 = scmp.eq.s32.totalorder %s40, 0
      %p360 = por %p358, %p359
      %p361 = scmp.ne.s32.totalorder %s353, %s355
      %p362 = scmp.eq.s32.totalorder %s45, 3
      %p363 = por %p361, %p362
      %p364 = scmp.ne.s32.totalorder %s355, %s356
      %p365 = scmp.eq.s32.totalorder %s45, 0
      %p366 = por %p364, %p365
      %p367 = scmp.ne.s32.totalorder %s355, %s356
      %p368 = scmp.eq.s32.totalorder %s46, 3
      %p369 = por %p367, %p368
      %p371 = scmp.ne.s32.totalorder %s356, %s370
      %p372 = scmp.eq.s32.totalorder %s46, 0
      %p373 = por %p371, %p372
      %s375 = sadd.s32 %s374, 1
      %p378 = scmp.eq.s32.totalorder %s40, 3
      %p379 = scmp.ne.s32.totalorder %s374, %s376
      %p380 = scmp.eq.s32.totalorder %s40, 0
      %p381 = por %p379, %p380
      %p382 = scmp.ne.s32.totalorder %s374, %s376
      %p383 = scmp.eq.s32.totalorder %s45, 3
      %p384 = por %p382, %p383
      %p385 = scmp.ne.s32.totalorder %s376, %s377
      %p386 = scmp.eq.s32.totalorder %s45, 0
      %p387 = por %p385, %p386
      %p388 = scmp.ne.s32.totalorder %s376, %s377
      %p389 = scmp.eq.s32.totalorder %s46, 3
      %p390 = por %p388, %p389
      %p392 = scmp.ne.s32.totalorder %s377, %s391
      %p393 = scmp.eq.s32.totalorder %s46, 0
      %p394 = por %p392, %p393
      %s396 = sadd.s32 %s395, 1
      %p399 = scmp.eq.s32.totalorder %s40, 3
      %p400 = scmp.ne.s32.totalorder %s395, %s397
      %p401 = scmp.eq.s32.totalorder %s40, 0
      %p402 = por %p400, %p401
      %p403 = scmp.ne.s32.totalorder %s395, %s397
      %p404 = scmp.eq.s32.totalorder %s45, 3
      %p405 = por %p403, %p404
      %p406 = scmp.ne.s32.totalorder %s397, %s398
      %p407 = scmp.eq.s32.totalorder %s45, 0
      %p408 = por %p406, %p407
      %p409 = scmp.ne.s32.totalorder %s397, %s398
      %p410 = scmp.eq.s32.totalorder %s46, 3
      %p411 = por %p409, %p410
      %p413 = scmp.ne.s32.totalorder %s398, %s412
      %p414 = scmp.eq.s32.totalorder %s46, 0
      %p415 = por %p413, %p414
      %s416 = ssub.s32 %s47, %s59
      %p417 = scmp.eq.s32.totalorder %s416, 0
      %s419 = sadd.s32 %s418, 1
      %s420 = scalar_select %p417, %s418, %s419
      %p423 = pneg %p417
      %p424 = scmp.eq.s32.totalorder %s40, 3
      %p425 = por %p423, %p424
      %p426 = scmp.ne.s32.totalorder %s418, %s421
      %p427 = scmp.eq.s32.totalorder %s40, 0
      %p428 = por %p426, %p427
      %p429 = scmp.ne.s32.totalorder %s418, %s421
      %p430 = scmp.eq.s32.totalorder %s45, 3
      %p431 = por %p429, %p430
      %p432 = scmp.ne.s32.totalorder %s421, %s422
      %p433 = scmp.eq.s32.totalorder %s45, 0
      %p434 = por %p432, %p433
      %p435 = scmp.ne.s32.totalorder %s421, %s422
      %p436 = scmp.eq.s32.totalorder %s46, 3
      %p437 = por %p435, %p436
      %p439 = scmp.ne.s32.totalorder %s422, %s438
      %p440 = scmp.eq.s32.totalorder %s46, 0
      %p441 = por %p439, %p440
      %s442 = ssub.s32 %s47, %s59
      %p443 = scmp.eq.s32.totalorder %s442, 0
      %s445 = sadd.s32 %s444, 1
      %s446 = scalar_select %p443, %s444, %s445
      %p449 = pneg %p443
      %p450 = scmp.eq.s32.totalorder %s40, 3
      %p451 = por %p449, %p450
      %p452 = scmp.ne.s32.totalorder %s444, %s447
      %p453 = scmp.eq.s32.totalorder %s40, 0
      %p454 = por %p452, %p453
      %p455 = scmp.ne.s32.totalorder %s444, %s447
      %p456 = scmp.eq.s32.totalorder %s45, 3
      %p457 = por %p455, %p456
      %p458 = scmp.ne.s32.totalorder %s447, %s448
      %p459 = scmp.eq.s32.totalorder %s45, 0
      %p460 = por %p458, %p459
      %p461 = scmp.ne.s32.totalorder %s447, %s448
      %p462 = scmp.eq.s32.totalorder %s46, 3
      %p463 = por %p461, %p462
      %p465 = scmp.ne.s32.totalorder %s448, %s464
      %p466 = scmp.eq.s32.totalorder %s46, 0
      %p467 = por %p465, %p466
      %p468 = scmp.le.s32.totalorder 1, %s40
      %p469 = scmp.lt.s32.totalorder %s40, 5
      %p470 = pnand %p468, %p469
      %p471 = pneg %p470
      // Predicated region
      $region9: #{tpu_custom_call.1} parent=5 // pred_check
        _
      $region10: #{tpu_custom_call.1} parent=5 // pred_check_branch
        %473 = sbr.rel (%p470) target = $region12
      $region11: #{tpu_custom_call.1} parent=5 // pred_region
        %s474 = ssub.s32 %s40, 1
        // Predicated region
        $region13: #{tpu_custom_call.1} parent=11 // pred_check
          %p475 = pneg %p156
        $region14: #{tpu_custom_call.1} parent=11 // pred_check_branch
          %477 = sbr.rel (%p475) target = $region16
        $region15: #{tpu_custom_call.1} parent=11 // pred_region
          %s478 = smul.u32 16, %s49
          %s480 = ssub.s32 2048, 2048
          %481 = vsyncadd [#allocation9], %s480
          %s482 = smul.addr %s478, 128
          %s483 = scalar_lea.hbm %s4, %s482
          %s484 = sshll.u32 [#allocation10], 4
          %s485 = int_to_ptr.vmem [resolvable:$true] %s484
          %490 = dma.hbm_to_vmem [thread:$0]  %s483, 2048, %s485, [#allocation9], 128, 128, 8
        $region16: #{tpu_custom_call.1} parent=11 // pred_fallthru
          _
        // Predicated region
        $region17: #{tpu_custom_call.1} parent=11 // pred_check
          %p491 = pneg %p177
        $region18: #{tpu_custom_call.1} parent=11 // pred_check_branch
          %493 = sbr.rel (%p491) target = $region20
        $region19: #{tpu_custom_call.1} parent=11 // pred_region
          %s495 = ssub.s32 1024, 1024
          %496 = vsyncadd [#allocation12], %s495
          %s497 = sshll.u32 [#allocation11], 4
          %s498 = int_to_ptr.vmem [resolvable:$true] %s497
          %503 = dma.hbm_to_vmem [thread:$0]  %s5, 1024, %s498, [#allocation12], 64, 64, 4
        $region20: #{tpu_custom_call.1} parent=11 // pred_fallthru
          _
        // Predicated region
        $region21: #{tpu_custom_call.1} parent=11 // pred_check
          %p504 = pneg %p198
        $region22: #{tpu_custom_call.1} parent=11 // pred_check_branch
          %506 = sbr.rel (%p504) target = $region24
        $region23: #{tpu_custom_call.1} parent=11 // pred_region
          _
        $region24: #{tpu_custom_call.1} parent=11 // pred_fallthru
          _
        // Predicated region
        $region25: #{tpu_custom_call.1} parent=11 // pred_check
          %p507 = pneg %p219
        $region26: #{tpu_custom_call.1} parent=11 // pred_check_branch
          %509 = sbr.rel (%p507) target = $region28
        $region27: #{tpu_custom_call.1} parent=11 // pred_region
          %s511 = ssub.s32 1024, 1024
          %512 = vsyncadd [#allocation12], %s511
          %s513 = sshll.u32 [#allocation13], 4
          %s514 = int_to_ptr.vmem [resolvable:$true] %s513
          %519 = dma.hbm_to_vmem [thread:$0]  %s7, 1024, %s514, [#allocation12], 64, 64, 4
        $region28: #{tpu_custom_call.1} parent=11 // pred_fallthru
          _
        // Predicated region
        $region29: #{tpu_custom_call.1} parent=11 // pred_check
          %p520 = pneg %p240
        $region30: #{tpu_custom_call.1} parent=11 // pred_check_branch
          %522 = sbr.rel (%p520) target = $region32
        $region31: #{tpu_custom_call.1} parent=11 // pred_region
          _
        $region32: #{tpu_custom_call.1} parent=11 // pred_fallthru
          _
        // Predicated region
        $region33: #{tpu_custom_call.1} parent=11 // pred_check
          %p523 = pneg %p261
        $region34: #{tpu_custom_call.1} parent=11 // pred_check_branch
          %525 = sbr.rel (%p523) target = $region36
        $region35: #{tpu_custom_call.1} parent=11 // pred_region
          %s527 = ssub.s32 1024, 1024
          %528 = vsyncadd [#allocation15], %s527
          %s529 = sshll.u32 [#allocation14], 4
          %s530 = int_to_ptr.vmem [resolvable:$true] %s529
          %535 = dma.hbm_to_vmem [thread:$0]  %s9, 1024, %s530, [#allocation15], 64, 64, 4
        $region36: #{tpu_custom_call.1} parent=11 // pred_fallthru
          _
        // Predicated region
        $region37: #{tpu_custom_call.1} parent=11 // pred_check
          %p536 = pneg %p282
        $region38: #{tpu_custom_call.1} parent=11 // pred_check_branch
          %538 = sbr.rel (%p536) target = $region40
        $region39: #{tpu_custom_call.1} parent=11 // pred_region
          %s540 = ssub.s32 2048, 2048
          %541 = vsyncadd [#allocation15], %s540
          %s542 = sshll.u32 [#allocation16], 4
          %s543 = int_to_ptr.vmem [resolvable:$true] %s542
          %548 = dma.hbm_to_vmem [thread:$0]  %s10, 2048, %s543, [#allocation15], 64, 64, 4
        $region40: #{tpu_custom_call.1} parent=11 // pred_fallthru
          _
        // Predicated region
        $region41: #{tpu_custom_call.1} parent=11 // pred_check
          %p549 = pneg %p303
        $region42: #{tpu_custom_call.1} parent=11 // pred_check_branch
          %551 = sbr.rel (%p549) target = $region44
        $region43: #{tpu_custom_call.1} parent=11 // pred_region
          _
        $region44: #{tpu_custom_call.1} parent=11 // pred_fallthru
          _
        // Predicated region
        $region45: #{tpu_custom_call.1} parent=11 // pred_check
          %p552 = pneg %p324
        $region46: #{tpu_custom_call.1} parent=11 // pred_check_branch
          %554 = sbr.rel (%p552) target = $region48
        $region47: #{tpu_custom_call.1} parent=11 // pred_region
          %s556 = ssub.s32 2048, 2048
          %557 = vsyncadd [#allocation18], %s556
          %s558 = sshll.u32 [#allocation17], 4
          %s559 = int_to_ptr.vmem [resolvable:$true] %s558
          %564 = dma.hbm_to_vmem [thread:$0]  %s12, 2048, %s559, [#allocation18], 64, 64, 4
        $region48: #{tpu_custom_call.1} parent=11 // pred_fallthru
          _
        // Predicated region
        $region49: #{tpu_custom_call.1} parent=11 // pred_check
          %p565 = pneg %p345
        $region50: #{tpu_custom_call.1} parent=11 // pred_check_branch
          %567 = sbr.rel (%p565) target = $region52
        $region51: #{tpu_custom_call.1} parent=11 // pred_region
          _
        $region52: #{tpu_custom_call.1} parent=11 // pred_fallthru
          _
        // Predicated region
        $region53: #{tpu_custom_call.1} parent=11 // pred_check
          %p568 = pneg %p366
        $region54: #{tpu_custom_call.1} parent=11 // pred_check_branch
          %570 = sbr.rel (%p568) target = $region56
        $region55: #{tpu_custom_call.1} parent=11 // pred_region
          %s572 = ssub.s32 1024, 1024
          %573 = vsyncadd [#allocation18], %s572
          %s574 = sshll.u32 [#allocation19], 4
          %s575 = int_to_ptr.vmem [resolvable:$true] %s574
          %580 = dma.hbm_to_vmem [thread:$0]  %s14, 1024, %s575, [#allocation18], 64, 64, 4
        $region56: #{tpu_custom_call.1} parent=11 // pred_fallthru
          _
        // Predicated region
        $region57: #{tpu_custom_call.1} parent=11 // pred_check
          %p581 = pneg %p387
        $region58: #{tpu_custom_call.1} parent=11 // pred_check_branch
          %583 = sbr.rel (%p581) target = $region60
        $region59: #{tpu_custom_call.1} parent=11 // pred_region
          _
        $region60: #{tpu_custom_call.1} parent=11 // pred_fallthru
          _
        // Predicated region
        $region61: #{tpu_custom_call.1} parent=11 // pred_check
          %p584 = pneg %p408
        $region62: #{tpu_custom_call.1} parent=11 // pred_check_branch
          %586 = sbr.rel (%p584) target = $region64
        $region63: #{tpu_custom_call.1} parent=11 // pred_region
          _
        $region64: #{tpu_custom_call.1} parent=11 // pred_fallthru
          _
      $region12: #{tpu_custom_call.1} parent=5 // pred_fallthru
        _
      %p587 = scmp.lt.s32.totalorder %s40, 4
      // Predicated region
      $region65: #{tpu_custom_call.1} parent=5 // pred_check
        %p588 = pneg %p587
      $region66: #{tpu_custom_call.1} parent=5 // pred_check_branch
        %590 = sbr.rel (%p588) target = $region68
      $region67: #{tpu_custom_call.1} parent=5 // pred_region
        // Predicated region
        $region69: #{tpu_custom_call.1} parent=67 // pred_check
          %p591 = pneg %p72
        $region70: #{tpu_custom_call.1} parent=67 // pred_check_branch
          %593 = sbr.rel (%p591) target = $region72
        $region71: #{tpu_custom_call.1} parent=67 // pred_region
          %s594 = sand.u32 %s62, 1
          %s595 = scalar_lea.sflag [#allocation6], %s594
          %s596 = sand.u32 %s62, 1
          %s597 = smul.addr %s596, 128
          %s598 = scalar_lea.vmem [#allocation5], %s597
          %s599 = smul.u32 16, %s48
          %s601 = ssub.s32 2048, 2048
          %602 = vsyncadd %s595, %s601
          %s603 = smul.addr %s599, 128
          %s604 = scalar_lea.hbm %s1, %s603
          %s605 = sshll.u32 %s598, 4
          %s606 = int_to_ptr.vmem [resolvable:$true] %s605
          %611 = dma.hbm_to_vmem [thread:$0]  %s604, 2048, %s606, %s595, 128, 128, 8
        $region72: #{tpu_custom_call.1} parent=67 // pred_fallthru
          _
        // Predicated region
        $region73: #{tpu_custom_call.1} parent=67 // pred_check
          %p612 = pneg %p98
        $region74: #{tpu_custom_call.1} parent=67 // pred_check_branch
          %614 = sbr.rel (%p612) target = $region76
        $region75: #{tpu_custom_call.1} parent=67 // pred_region
          %s615 = sand.u32 %s40, 1
          %s616 = scalar_lea.sflag [#allocation9], %s615
          %s617 = sand.u32 %s88, 1
          %s618 = smul.addr %s617, 64
          %s619 = scalar_lea.vmem [#allocation8], %s618
          %s620 = smul.u32 16, %s48
          %s622 = ssub.s32 1024, 1024
          %623 = vsyncadd %s616, %s622
          %s624 = smul.addr %s620, 64
          %s625 = scalar_lea.hbm %s2, %s624
          %s626 = sshll.u32 %s619, 4
          %s627 = int_to_ptr.vmem [resolvable:$true] %s626
          %632 = dma.hbm_to_vmem [thread:$0]  %s625, 1024, %s627, %s616, 64, 64, 4
        $region76: #{tpu_custom_call.1} parent=67 // pred_fallthru
          _
        // Predicated region
        $region77: #{tpu_custom_call.1} parent=67 // pred_check
          %p633 = pneg %p124
        $region78: #{tpu_custom_call.1} parent=67 // pred_check_branch
          %635 = sbr.rel (%p633) target = $region80
        $region79: #{tpu_custom_call.1} parent=67 // pred_region
          %p636 = scmp.lt.s32.totalorder %s48, 3
          %s637 = scalar_select %p636, %s48, 3
          %s638 = scalar_lea.vmem %s3, %s637
        $region80: #{tpu_custom_call.1} parent=67 // pred_fallthru
          _
      $region68: #{tpu_custom_call.1} parent=5 // pred_fallthru
        _
      %p639 = scmp.le.s32.totalorder 1, %s40
      %p640 = scmp.lt.s32.totalorder %s40, 5
      %p641 = pnand %p639, %p640
      %p642 = pneg %p641
      // Predicated region
      $region81: #{tpu_custom_call.1} parent=5 // pred_check
        _
      $region82: #{tpu_custom_call.1} parent=5 // pred_check_branch
        %644 = sbr.rel (%p641) target = $region84
      $region83: #{tpu_custom_call.1} parent=5 // pred_region
        %s645 = ssub.s32 %s40, 1
        %s646 = sand.u32 %s65, 1
        %s647 = scalar_lea.sflag [#allocation6], %s646
        %s648 = sand.u32 %s65, 1
        %s649 = smul.addr %s648, 128
        %s650 = scalar_lea.vmem [#allocation5], %s649
        // Predicated region
        $region85: #{tpu_custom_call.1} parent=83 // pred_check
          %p651 = pneg %p78
        $region86: #{tpu_custom_call.1} parent=83 // pred_check_branch
          %653 = sbr.rel (%p651) target = $region88
        $region87: #{tpu_custom_call.1} parent=83 // pred_region
          %654 = dma.done %s647, 2048
        $region88: #{tpu_custom_call.1} parent=83 // pred_fallthru
          _
        %s655 = sand.u32 %s45, 1
        %s656 = scalar_lea.sflag [#allocation9], %s655
        %s657 = sand.u32 %s91, 1
        %s658 = smul.addr %s657, 64
        %s659 = scalar_lea.vmem [#allocation8], %s658
        // Predicated region
        $region89: #{tpu_custom_call.1} parent=83 // pred_check
          %p660 = pneg %p104
        $region90: #{tpu_custom_call.1} parent=83 // pred_check_branch
          %662 = sbr.rel (%p660) target = $region92
        $region91: #{tpu_custom_call.1} parent=83 // pred_region
          %663 = dma.done %s656, 1024
        $region92: #{tpu_custom_call.1} parent=83 // pred_fallthru
          _
        // Predicated region
        $region93: #{tpu_custom_call.1} parent=83 // pred_check
          %p664 = pneg %p156
        $region94: #{tpu_custom_call.1} parent=83 // pred_check_branch
          %666 = sbr.rel (%p664) target = $region96
        $region95: #{tpu_custom_call.1} parent=83 // pred_region
          %667 = dma.done [#allocation9], 2048
        $region96: #{tpu_custom_call.1} parent=83 // pred_fallthru
          _
        // Predicated region
        $region97: #{tpu_custom_call.1} parent=83 // pred_check
          %p668 = pneg %p177
        $region98: #{tpu_custom_call.1} parent=83 // pred_check_branch
          %670 = sbr.rel (%p668) target = $region100
        $region99: #{tpu_custom_call.1} parent=83 // pred_region
          %671 = dma.done [#allocation12], 1024
        $region100: #{tpu_custom_call.1} parent=83 // pred_fallthru
          _
        // Predicated region
        $region101: #{tpu_custom_call.1} parent=83 // pred_check
          %p672 = pneg %p219
        $region102: #{tpu_custom_call.1} parent=83 // pred_check_branch
          %674 = sbr.rel (%p672) target = $region104
        $region103: #{tpu_custom_call.1} parent=83 // pred_region
          %675 = dma.done [#allocation12], 1024
        $region104: #{tpu_custom_call.1} parent=83 // pred_fallthru
          _
        // Predicated region
        $region105: #{tpu_custom_call.1} parent=83 // pred_check
          %p676 = pneg %p261
        $region106: #{tpu_custom_call.1} parent=83 // pred_check_branch
          %678 = sbr.rel (%p676) target = $region108
        $region107: #{tpu_custom_call.1} parent=83 // pred_region
          %679 = dma.done [#allocation15], 1024
        $region108: #{tpu_custom_call.1} parent=83 // pred_fallthru
          _
        // Predicated region
        $region109: #{tpu_custom_call.1} parent=83 // pred_check
          %p680 = pneg %p282
        $region110: #{tpu_custom_call.1} parent=83 // pred_check_branch
          %682 = sbr.rel (%p680) target = $region112
        $region111: #{tpu_custom_call.1} parent=83 // pred_region
          %683 = dma.done [#allocation15], 2048
        $region112: #{tpu_custom_call.1} parent=83 // pred_fallthru
          _
        // Predicated region
        $region113: #{tpu_custom_call.1} parent=83 // pred_check
          %p684 = pneg %p324
        $region114: #{tpu_custom_call.1} parent=83 // pred_check_branch
          %686 = sbr.rel (%p684) target = $region116
        $region115: #{tpu_custom_call.1} parent=83 // pred_region
          %687 = dma.done [#allocation18], 2048
        $region116: #{tpu_custom_call.1} parent=83 // pred_fallthru
          _
        // Predicated region
        $region117: #{tpu_custom_call.1} parent=83 // pred_check
          %p688 = pneg %p366
        $region118: #{tpu_custom_call.1} parent=83 // pred_check_branch
          %690 = sbr.rel (%p688) target = $region120
        $region119: #{tpu_custom_call.1} parent=83 // pred_region
          %691 = dma.done [#allocation18], 1024
        $region120: #{tpu_custom_call.1} parent=83 // pred_fallthru
          _
        %s692 = sand.u32 %s65, 1
        %s693 = scalar_lea.sflag [#allocation6], %s692
        %s694 = sand.u32 %s65, 1
        %s695 = smul.addr %s694, 128
        %s696 = scalar_lea.vmem [#allocation5], %s695
        %p697 = pneg %p78
        %p698 = pneg %p75
        %s699 = sand.u32 %s45, 1
        %s700 = scalar_lea.sflag [#allocation9], %s699
        %s701 = sand.u32 %s91, 1
        %s702 = smul.addr %s701, 64
        %s703 = scalar_lea.vmem [#allocation8], %s702
        %p704 = pneg %p104
        %p705 = pneg %p101
        %p706 = scmp.lt.s32.totalorder %s50, 3
        %s707 = scalar_select %p706, %s50, 3
        %s708 = scalar_lea.vmem %s3, %s707
        %p709 = pneg %p130
        %p710 = pneg %p127
        %p711 = pneg %p156
        %p712 = pneg %p153
        %p713 = pneg %p177
        %p714 = pneg %p174
        %p715 = pneg %p198
        %p716 = pneg %p195
        %p717 = pneg %p219
        %p718 = pneg %p216
        %p719 = pneg %p240
        %p720 = pneg %p237
        %p721 = pneg %p261
        %p722 = pneg %p258
        %p723 = pneg %p282
        %p724 = pneg %p279
        %p725 = pneg %p303
        %p726 = pneg %p300
        %p727 = pneg %p324
        %p728 = pneg %p321
        %p729 = pneg %p345
        %p730 = pneg %p342
        %p731 = pneg %p366
        %p732 = pneg %p363
        %p733 = pneg %p387
        %p734 = pneg %p384
        %p735 = pneg %p408
        %p736 = pneg %p405
        %p737 = pneg %p434
        %p738 = pneg %p431
        %p739 = pneg %p460
        %p740 = pneg %p457
        %s741 = smul.u32 16, %s50
        %s742 = smul.u32 16, %s50
        %p743 = scmp.lt.s32.totalorder %s50, 3
        %s744 = scalar_select %p743, %s50, 3
        %s745 = scalar_lea.vmem %s3, %s744
        %s746 = smul.u32 16, %s49
        %s747 = smul.u32 16, %s49
        %s748 = smul.u32 16, %s49
        %s750 = smul.u32 %s49, 128
        %s751 = smul.u32 %s50, 128
        %p752 = scmp.eq.s32.totalorder %s50, 0
        // Predicated region
        $region121: #{tpu_custom_call.1} parent=83 // pred_check
          %p753 = pneg %p752
        $region122: #{tpu_custom_call.1} parent=83 // pred_check_branch
          %755 = sbr.rel (%p753) target = $region124
        $region123: #{tpu_custom_call.1} parent=83 // pred_region
          %756 = vst [vmem:[#allocation2] sm:$0xff] 0.0
          %757 = vst [vmem:[#allocation2 + $0x8] sm:$0xff] 0.0
          %758 = vst [vmem:[#allocation2 + $0x10] sm:$0xff] 0.0
          %759 = vst [vmem:[#allocation2 + $0x18] sm:$0xff] 0.0
          %760 = vst [vmem:[#allocation2 + $0x20] sm:$0xff] 0.0
          %761 = vst [vmem:[#allocation2 + $0x28] sm:$0xff] 0.0
          %762 = vst [vmem:[#allocation2 + $0x30] sm:$0xff] 0.0
          %763 = vst [vmem:[#allocation2 + $0x38] sm:$0xff] 0.0
          %764 = vst [vmem:[#allocation2 + $0x40] sm:$0xff] 0.0
          %765 = vst [vmem:[#allocation2 + $0x48] sm:$0xff] 0.0
          %766 = vst [vmem:[#allocation2 + $0x50] sm:$0xff] 0.0
          %767 = vst [vmem:[#allocation2 + $0x58] sm:$0xff] 0.0
          %768 = vst [vmem:[#allocation2 + $0x60] sm:$0xff] 0.0
          %769 = vst [vmem:[#allocation2 + $0x68] sm:$0xff] 0.0
          %770 = vst [vmem:[#allocation2 + $0x70] sm:$0xff] 0.0
          %771 = vst [vmem:[#allocation2 + $0x78] sm:$0xff] 0.0
        $region124: #{tpu_custom_call.1} parent=83 // pred_fallthru
          _
        %s772 = sld [smem:[#allocation4 + %s751]]
        %s773 = sadd.s32 %s751, 127
        %s774 = sld [smem:[#allocation4 + %s773]]
        %p775 = scmp.ge.s32.totalorder %s774, %s750
        %s776 = sadd.s32 %s750, 128
        %p777 = scmp.lt.s32.totalorder %s772, %s776
        %p778 = pnand %p775, %p777
        %p779 = pneg %p778
        // Predicated region
        $region125: #{tpu_custom_call.1} parent=83 // pred_check
          _
        $region126: #{tpu_custom_call.1} parent=83 // pred_check_branch
          %781 = sbr.rel (%p778) target = $region128
        $region127: #{tpu_custom_call.1} parent=83 // pred_region
          %v782 = vld [vmem:[%s650] sm:$0xff]
          %v783 = vld [vmem:[%s650 + $0x8] sm:$0xff]
          %v784 = vld [vmem:[%s650 + $0x10] sm:$0xff]
          %v785 = vld [vmem:[%s650 + $0x18] sm:$0xff]
          %v786 = vld [vmem:[%s650 + $0x20] sm:$0xff]
          %v787 = vld [vmem:[%s650 + $0x28] sm:$0xff]
          %v788 = vld [vmem:[%s650 + $0x30] sm:$0xff]
          %v789 = vld [vmem:[%s650 + $0x38] sm:$0xff]
          %v790 = vld [vmem:[%s650 + $0x40] sm:$0xff]
          %v791 = vld [vmem:[%s650 + $0x48] sm:$0xff]
          %v792 = vld [vmem:[%s650 + $0x50] sm:$0xff]
          %v793 = vld [vmem:[%s650 + $0x58] sm:$0xff]
          %v794 = vld [vmem:[%s650 + $0x60] sm:$0xff]
          %v795 = vld [vmem:[%s650 + $0x68] sm:$0xff]
          %v796 = vld [vmem:[%s650 + $0x70] sm:$0xff]
          %v797 = vld [vmem:[%s650 + $0x78] sm:$0xff]
          %v798 = vmax.f32 %v782, 0.0
          %v799 = vmax.f32 %v783, 0.0
          %v800 = vmax.f32 %v784, 0.0
          %v801 = vmax.f32 %v785, 0.0
          %v802 = vmax.f32 %v786, 0.0
          %v803 = vmax.f32 %v787, 0.0
          %v804 = vmax.f32 %v788, 0.0
          %v805 = vmax.f32 %v789, 0.0
          %v806 = vmax.f32 %v790, 0.0
          %v807 = vmax.f32 %v791, 0.0
          %v808 = vmax.f32 %v792, 0.0
          %v809 = vmax.f32 %v793, 0.0
          %v810 = vmax.f32 %v794, 0.0
          %v811 = vmax.f32 %v795, 0.0
          %v812 = vmax.f32 %v796, 0.0
          %v813 = vmax.f32 %v797, 0.0
          %v814 = vand.u32 2147483647, %v782
          %v815 = vand.u32 2147483647, %v783
          %v816 = vand.u32 2147483647, %v784
          %v817 = vand.u32 2147483647, %v785
          %v818 = vand.u32 2147483647, %v786
          %v819 = vand.u32 2147483647, %v787
          %v820 = vand.u32 2147483647, %v788
          %v821 = vand.u32 2147483647, %v789
          %v822 = vand.u32 2147483647, %v790
          %v823 = vand.u32 2147483647, %v791
          %v824 = vand.u32 2147483647, %v792
          %v825 = vand.u32 2147483647, %v793
          %v826 = vand.u32 2147483647, %v794
          %v827 = vand.u32 2147483647, %v795
          %v828 = vand.u32 2147483647, %v796
          %v829 = vand.u32 2147483647, %v797
          %v830 = vsub.f32 0.0, %v814
          %v831 = vsub.f32 0.0, %v815
          %v832 = vsub.f32 0.0, %v816
          %v833 = vsub.f32 0.0, %v817
          %v834 = vsub.f32 0.0, %v818
          %v835 = vsub.f32 0.0, %v819
          %v836 = vsub.f32 0.0, %v820
          %v837 = vsub.f32 0.0, %v821
          %v838 = vsub.f32 0.0, %v822
          %v839 = vsub.f32 0.0, %v823
          %v840 = vsub.f32 0.0, %v824
          %v841 = vsub.f32 0.0, %v825
          %v842 = vsub.f32 0.0, %v826
          %v843 = vsub.f32 0.0, %v827
          %v844 = vsub.f32 0.0, %v828
          %v845 = vsub.f32 0.0, %v829
          %v846 = vmul.f32 %v830, 1.442695
          %v847 = vpow.pop %v846
          %v848 = vmul.f32 %v831, 1.442695
          %v849 = vpow.pop %v848
          %v850 = vmul.f32 %v832, 1.442695
          %v851 = vpow.pop %v850
          %v852 = vmul.f32 %v833, 1.442695
          %v853 = vpow.pop %v852
          %v854 = vmul.f32 %v834, 1.442695
          %v855 = vpow.pop %v854
          %v856 = vmul.f32 %v835, 1.442695
          %v857 = vpow.pop %v856
          %v858 = vmul.f32 %v836, 1.442695
          %v859 = vpow.pop %v858
          %v860 = vmul.f32 %v837, 1.442695
          %v861 = vpow.pop %v860
          %v862 = vmul.f32 %v838, 1.442695
          %v863 = vpow.pop %v862
          %v864 = vmul.f32 %v839, 1.442695
          %v865 = vpow.pop %v864
          %v866 = vmul.f32 %v840, 1.442695
          %v867 = vpow.pop %v866
          %v868 = vmul.f32 %v841, 1.442695
          %v869 = vpow.pop %v868
          %v870 = vmul.f32 %v842, 1.442695
          %v871 = vpow.pop %v870
          %v872 = vmul.f32 %v843, 1.442695
          %v873 = vpow.pop %v872
          %v874 = vmul.f32 %v844, 1.442695
          %v875 = vpow.pop %v874
          %v876 = vmul.f32 %v845, 1.442695
          %v877 = vpow.pop %v876
          %v878 = vadd.f32 %v847, 1.0
          %v879 = vlog2.pop %v878
          %v880 = vmul.f32 %v879, 0.6931472
          %v881 = vmul.f32 -0.5, %v847
          %v882 = vadd.f32 %v881, 1.0
          %v883 = vmul.f32 %v882, %v847
          %v884 = vand.u32 2147483647, %v847
          %vm885 = vcmp.lt.f32.partialorder %v884, 0.0004427343
          %v886 = vsel %vm885, %v883, %v880
          %v887 = vadd.f32 %v849, 1.0
          %v888 = vlog2.pop %v887
          %v889 = vmul.f32 %v888, 0.6931472
          %v890 = vmul.f32 -0.5, %v849
          %v891 = vadd.f32 %v890, 1.0
          %v892 = vmul.f32 %v891, %v849
          %v893 = vand.u32 2147483647, %v849
          %vm894 = vcmp.lt.f32.partialorder %v893, 0.0004427343
          %v895 = vsel %vm894, %v892, %v889
          %v896 = vadd.f32 %v851, 1.0
          %v897 = vlog2.pop %v896
          %v898 = vmul.f32 %v897, 0.6931472
          %v899 = vmul.f32 -0.5, %v851
          %v900 = vadd.f32 %v899, 1.0
          %v901 = vmul.f32 %v900, %v851
          %v902 = vand.u32 2147483647, %v851
          %vm903 = vcmp.lt.f32.partialorder %v902, 0.0004427343
          %v904 = vsel %vm903, %v901, %v898
          %v905 = vadd.f32 %v853, 1.0
          %v906 = vlog2.pop %v905
          %v907 = vmul.f32 %v906, 0.6931472
          %v908 = vmul.f32 -0.5, %v853
          %v909 = vadd.f32 %v908, 1.0
          %v910 = vmul.f32 %v909, %v853
          %v911 = vand.u32 2147483647, %v853
          %vm912 = vcmp.lt.f32.partialorder %v911, 0.0004427343
          %v913 = vsel %vm912, %v910, %v907
          %v914 = vadd.f32 %v855, 1.0
          %v915 = vlog2.pop %v914
          %v916 = vmul.f32 %v915, 0.6931472
          %v917 = vmul.f32 -0.5, %v855
          %v918 = vadd.f32 %v917, 1.0
          %v919 = vmul.f32 %v918, %v855
          %v920 = vand.u32 2147483647, %v855
          %vm921 = vcmp.lt.f32.partialorder %v920, 0.0004427343
          %v922 = vsel %vm921, %v919, %v916
          %v923 = vadd.f32 %v857, 1.0
          %v924 = vlog2.pop %v923
          %v925 = vmul.f32 %v924, 0.6931472
          %v926 = vmul.f32 -0.5, %v857
          %v927 = vadd.f32 %v926, 1.0
          %v928 = vmul.f32 %v927, %v857
          %v929 = vand.u32 2147483647, %v857
          %vm930 = vcmp.lt.f32.partialorder %v929, 0.0004427343
          %v931 = vsel %vm930, %v928, %v925
          %v932 = vadd.f32 %v859, 1.0
          %v933 = vlog2.pop %v932
          %v934 = vmul.f32 %v933, 0.6931472
          %v935 = vmul.f32 -0.5, %v859
          %v936 = vadd.f32 %v935, 1.0
          %v937 = vmul.f32 %v936, %v859
          %v938 = vand.u32 2147483647, %v859
          %vm939 = vcmp.lt.f32.partialorder %v938, 0.0004427343
          %v940 = vsel %vm939, %v937, %v934
          %v941 = vadd.f32 %v861, 1.0
          %v942 = vlog2.pop %v941
          %v943 = vmul.f32 %v942, 0.6931472
          %v944 = vmul.f32 -0.5, %v861
          %v945 = vadd.f32 %v944, 1.0
          %v946 = vmul.f32 %v945, %v861
          %v947 = vand.u32 2147483647, %v861
          %vm948 = vcmp.lt.f32.partialorder %v947, 0.0004427343
          %v949 = vsel %vm948, %v946, %v943
          %v950 = vadd.f32 %v863, 1.0
          %v951 = vlog2.pop %v950
          %v952 = vmul.f32 %v951, 0.6931472
          %v953 = vmul.f32 -0.5, %v863
          %v954 = vadd.f32 %v953, 1.0
          %v955 = vmul.f32 %v954, %v863
          %v956 = vand.u32 2147483647, %v863
          %vm957 = vcmp.lt.f32.partialorder %v956, 0.0004427343
          %v958 = vsel %vm957, %v955, %v952
          %v959 = vadd.f32 %v865, 1.0
          %v960 = vlog2.pop %v959
          %v961 = vmul.f32 %v960, 0.6931472
          %v962 = vmul.f32 -0.5, %v865
          %v963 = vadd.f32 %v962, 1.0
          %v964 = vmul.f32 %v963, %v865
          %v965 = vand.u32 2147483647, %v865
          %vm966 = vcmp.lt.f32.partialorder %v965, 0.0004427343
          %v967 = vsel %vm966, %v964, %v961
          %v968 = vadd.f32 %v867, 1.0
          %v969 = vlog2.pop %v968
          %v970 = vmul.f32 %v969, 0.6931472
          %v971 = vmul.f32 -0.5, %v867
          %v972 = vadd.f32 %v971, 1.0
          %v973 = vmul.f32 %v972, %v867
          %v974 = vand.u32 2147483647, %v867
          %vm975 = vcmp.lt.f32.partialorder %v974, 0.0004427343
          %v976 = vsel %vm975, %v973, %v970
          %v977 = vadd.f32 %v869, 1.0
          %v978 = vlog2.pop %v977
          %v979 = vmul.f32 %v978, 0.6931472
          %v980 = vmul.f32 -0.5, %v869
          %v981 = vadd.f32 %v980, 1.0
          %v982 = vmul.f32 %v981, %v869
          %v983 = vand.u32 2147483647, %v869
          %vm984 = vcmp.lt.f32.partialorder %v983, 0.0004427343
          %v985 = vsel %vm984, %v982, %v979
          %v986 = vadd.f32 %v871, 1.0
          %v987 = vlog2.pop %v986
          %v988 = vmul.f32 %v987, 0.6931472
          %v989 = vmul.f32 -0.5, %v871
          %v990 = vadd.f32 %v989, 1.0
          %v991 = vmul.f32 %v990, %v871
          %v992 = vand.u32 2147483647, %v871
          %vm993 = vcmp.lt.f32.partialorder %v992, 0.0004427343
          %v994 = vsel %vm993, %v991, %v988
          %v995 = vadd.f32 %v873, 1.0
          %v996 = vlog2.pop %v995
          %v997 = vmul.f32 %v996, 0.6931472
          %v998 = vmul.f32 -0.5, %v873
          %v999 = vadd.f32 %v998, 1.0
          %v1000 = vmul.f32 %v999, %v873
          %v1001 = vand.u32 2147483647, %v873
          %vm1002 = vcmp.lt.f32.partialorder %v1001, 0.0004427343
          %v1003 = vsel %vm1002, %v1000, %v997
          %v1004 = vadd.f32 %v875, 1.0
          %v1005 = vlog2.pop %v1004
          %v1006 = vmul.f32 %v1005, 0.6931472
          %v1007 = vmul.f32 -0.5, %v875
          %v1008 = vadd.f32 %v1007, 1.0
          %v1009 = vmul.f32 %v1008, %v875
          %v1010 = vand.u32 2147483647, %v875
          %vm1011 = vcmp.lt.f32.partialorder %v1010, 0.0004427343
          %v1012 = vsel %vm1011, %v1009, %v1006
          %v1013 = vadd.f32 %v877, 1.0
          %v1014 = vlog2.pop %v1013
          %v1015 = vmul.f32 %v1014, 0.6931472
          %v1016 = vmul.f32 -0.5, %v877
          %v1017 = vadd.f32 %v1016, 1.0
          %v1018 = vmul.f32 %v1017, %v877
          %v1019 = vand.u32 2147483647, %v877
          %vm1020 = vcmp.lt.f32.partialorder %v1019, 0.0004427343
          %v1021 = vsel %vm1020, %v1018, %v1015
          %v1022 = vadd.f32 %v798, %v886
          %v1023 = vadd.f32 %v799, %v895
          %v1024 = vadd.f32 %v800, %v904
          %v1025 = vadd.f32 %v801, %v913
          %v1026 = vadd.f32 %v802, %v922
          %v1027 = vadd.f32 %v803, %v931
          %v1028 = vadd.f32 %v804, %v940
          %v1029 = vadd.f32 %v805, %v949
          %v1030 = vadd.f32 %v806, %v958
          %v1031 = vadd.f32 %v807, %v967
          %v1032 = vadd.f32 %v808, %v976
          %v1033 = vadd.f32 %v809, %v985
          %v1034 = vadd.f32 %v810, %v994
          %v1035 = vadd.f32 %v811, %v1003
          %v1036 = vadd.f32 %v812, %v1012
          %v1037 = vadd.f32 %v813, %v1021
          %v1038 = vsub.f32 %v1022, 0.6931472
          %v1039 = vsub.f32 %v1023, 0.6931472
          %v1040 = vsub.f32 %v1024, 0.6931472
          %v1041 = vsub.f32 %v1025, 0.6931472
          %v1042 = vsub.f32 %v1026, 0.6931472
          %v1043 = vsub.f32 %v1027, 0.6931472
          %v1044 = vsub.f32 %v1028, 0.6931472
          %v1045 = vsub.f32 %v1029, 0.6931472
          %v1046 = vsub.f32 %v1030, 0.6931472
          %v1047 = vsub.f32 %v1031, 0.6931472
          %v1048 = vsub.f32 %v1032, 0.6931472
          %v1049 = vsub.f32 %v1033, 0.6931472
          %v1050 = vsub.f32 %v1034, 0.6931472
          %v1051 = vsub.f32 %v1035, 0.6931472
          %v1052 = vsub.f32 %v1036, 0.6931472
          %v1053 = vsub.f32 %v1037, 0.6931472
          %v1054 = vpack.c.bf16 %v1039, %v1038
          %v1055 = vpack.c.bf16 %v1041, %v1040
          %v1056 = vpack.c.bf16 %v1043, %v1042
          %v1057 = vpack.c.bf16 %v1045, %v1044
          %v1058 = vpack.c.bf16 %v1047, %v1046
          %v1059 = vpack.c.bf16 %v1049, %v1048
          %v1060 = vpack.c.bf16 %v1051, %v1050
          %v1061 = vpack.c.bf16 %v1053, %v1052
          %v1062 = vld [vmem:[#allocation11] sm:$0xf]
          %v1063 = vld [vmem:[#allocation11 + $0x4] sm:$0xf]
          %v1064 = vld [vmem:[#allocation11 + $0x8] sm:$0xf]
          %v1065 = vld [vmem:[#allocation11 + $0xc] sm:$0xf]
          %v1066 = vld [vmem:[#allocation11 + $0x10] sm:$0xf]
          %v1067 = vld [vmem:[#allocation11 + $0x14] sm:$0xf]
          %v1068 = vld [vmem:[#allocation11 + $0x18] sm:$0xf]
          %v1069 = vld [vmem:[#allocation11 + $0x1c] sm:$0xf]
          %v1070 = vld [vmem:[#allocation11 + $0x20] sm:$0xf]
          %v1071 = vld [vmem:[#allocation11 + $0x24] sm:$0xf]
          %v1072 = vld [vmem:[#allocation11 + $0x28] sm:$0xf]
          %v1073 = vld [vmem:[#allocation11 + $0x2c] sm:$0xf]
          %v1074 = vld [vmem:[#allocation11 + $0x30] sm:$0xf]
          %v1075 = vld [vmem:[#allocation11 + $0x34] sm:$0xf]
          %v1076 = vld [vmem:[#allocation11 + $0x38] sm:$0xf]
          %v1077 = vld [vmem:[#allocation11 + $0x3c] sm:$0xf]
          %v1078 = vld [vmem:[%s6] sm:$0x1]
          %v1080 = vlaneseq
          %v1081 = vshrl.u32 %v1080, 7
          %v1082 = vsub.s32 0, %v1081
          %v1083 = vrot.slane %v1078, %v1082
          %v1101 = vunpack.c.l.b16 %v1062
          %v1102 = vunpack.c.l.b16 %v1063
          %v1103 = vunpack.c.l.b16 %v1064
          %v1104 = vunpack.c.l.b16 %v1065
          %v1105 = vunpack.c.l.b16 %v1066
          %v1106 = vunpack.c.l.b16 %v1067
          %v1107 = vunpack.c.l.b16 %v1068
          %v1108 = vunpack.c.l.b16 %v1069
          %v1109 = vunpack.c.l.b16 %v1070
          %v1110 = vunpack.c.l.b16 %v1071
          %v1111 = vunpack.c.l.b16 %v1072
          %v1112 = vunpack.c.l.b16 %v1073
          %v1113 = vunpack.c.l.b16 %v1074
          %v1114 = vunpack.c.l.b16 %v1075
          %v1115 = vunpack.c.l.b16 %v1076
          %v1116 = vunpack.c.l.b16 %v1077
          %v1117 = vpack.c.b16 %v1102, %v1101
          %v1118 = vpack.c.b16 %v1104, %v1103
          %v1119 = vpack.c.b16 %v1106, %v1105
          %v1120 = vpack.c.b16 %v1108, %v1107
          %v1121 = vpack.c.b16 %v1110, %v1109
          %v1122 = vpack.c.b16 %v1112, %v1111
          %v1123 = vpack.c.b16 %v1114, %v1113
          %v1124 = vpack.c.b16 %v1116, %v1115
          %1133 = vmatprep.subr.bf16.mxu0 0
          %1134 = vmatpush1.bf16.msra.mxu0 %v1117
          %1135 = vmatprep.subr.bf16.mxu0 0
          %1136 = vmatpush1.bf16.msra.mxu0 %v1118
          %1137 = vmatprep.subr.bf16.mxu0 0
          %1138 = vmatpush1.bf16.msra.mxu0 %v1119
          %1139 = vmatprep.subr.bf16.mxu0 0
          %1140 = vmatpush1.bf16.msra.mxu0 %v1120
          %1141 = vmatprep.subr.bf16.mxu0 0
          %1142 = vmatpush1.bf16.msra.mxu0 %v1121
          %1143 = vmatprep.subr.bf16.mxu0 0
          %1144 = vmatpush1.bf16.msra.mxu0 %v1122
          %1145 = vmatprep.subr.bf16.mxu0 0
          %1146 = vmatpush1.bf16.msra.mxu0 %v1123
          %1147 = vmatprep.subr.bf16.mxu0 0
          %1148 = vmatpush1.bf16.msra.mxu0 %v1124
          %1149 = vmatprep.subr.bf16.mxu0 0
          %1150 = vmatpush1.bf16.msra.mxu0 0
          %1151 = vmatprep.subr.bf16.mxu0 0
          %1152 = vmatpush1.bf16.msra.mxu0 0
          %1153 = vmatprep.subr.bf16.mxu0 0
          %1154 = vmatpush1.bf16.msra.mxu0 0
          %1155 = vmatprep.subr.bf16.mxu0 0
          %1156 = vmatpush1.bf16.msra.mxu0 0
          %1157 = vmatprep.subr.bf16.mxu0 0
          %1158 = vmatpush1.bf16.msra.mxu0 0
          %1159 = vmatprep.subr.bf16.mxu0 0
          %1160 = vmatpush1.bf16.msra.mxu0 0
          %1161 = vmatprep.subr.bf16.mxu0 0
          %1162 = vmatpush1.bf16.msra.mxu0 0
          %1163 = vmatprep.subr.bf16.mxu0 0
          %1164 = vmatpush1.bf16.msra.mxu0 0
          %1165 = vmatprep.mubr.bf16.mxu0 0
          %1166 = vmatmul.mubr.bf16.gmra.mrb[0].mxu0 %v1054
          %v1167 = vpop.f32.mrb[0].mxu0
          %v1168 = vadd.f32 %v1083, %v1167
          %v1169 = vpop.f32.mrb[0].mxu0
          %v1170 = vpop.f32.mrb[0].mxu0
          %v1171 = vadd.f32 %v1083, %v1170
          %v1172 = vpop.f32.mrb[0].mxu0
          %1173 = vmatprep.mubr.bf16.mxu0 0
          %1174 = vmatmul.mubr.bf16.gmra.mrb[0].mxu0 %v1055
          %v1175 = vpop.f32.mrb[0].mxu0
          %v1176 = vadd.f32 %v1083, %v1175
          %v1177 = vpop.f32.mrb[0].mxu0
          %v1178 = vpop.f32.mrb[0].mxu0
          %v1179 = vadd.f32 %v1083, %v1178
          %v1180 = vpop.f32.mrb[0].mxu0
          %1181 = vmatprep.mubr.bf16.mxu0 0
          %1182 = vmatmul.mubr.bf16.gmra.mrb[0].mxu0 %v1056
          %v1183 = vpop.f32.mrb[0].mxu0
          %v1184 = vadd.f32 %v1083, %v1183
          %v1185 = vpop.f32.mrb[0].mxu0
          %v1186 = vpop.f32.mrb[0].mxu0
          %v1187 = vadd.f32 %v1083, %v1186
          %v1188 = vpop.f32.mrb[0].mxu0
          %1189 = vmatprep.mubr.bf16.mxu0 0
          %1190 = vmatmul.mubr.bf16.gmra.mrb[0].mxu0 %v1057
          %v1191 = vpop.f32.mrb[0].mxu0
          %v1192 = vadd.f32 %v1083, %v1191
          %v1193 = vpop.f32.mrb[0].mxu0
          %v1194 = vpop.f32.mrb[0].mxu0
          %v1195 = vadd.f32 %v1083, %v1194
          %v1196 = vpop.f32.mrb[0].mxu0
          %1197 = vmatprep.mubr.bf16.mxu0 0
          %1198 = vmatmul.mubr.bf16.gmra.mrb[0].mxu0 %v1058
          %v1199 = vpop.f32.mrb[0].mxu0
          %v1200 = vadd.f32 %v1083, %v1199
          %v1201 = vpop.f32.mrb[0].mxu0
          %v1202 = vpop.f32.mrb[0].mxu0
          %v1203 = vadd.f32 %v1083, %v1202
          %v1204 = vpop.f32.mrb[0].mxu0
          %1205 = vmatprep.mubr.bf16.mxu0 0
          %1206 = vmatmul.mubr.bf16.gmra.mrb[0].mxu0 %v1059
          %v1207 = vpop.f32.mrb[0].mxu0
          %v1208 = vadd.f32 %v1083, %v1207
          %v1209 = vpop.f32.mrb[0].mxu0
          %v1210 = vpop.f32.mrb[0].mxu0
          %v1211 = vadd.f32 %v1083, %v1210
          %v1212 = vpop.f32.mrb[0].mxu0
          %1213 = vmatprep.mubr.bf16.mxu0 0
          %1214 = vmatmul.mubr.bf16.gmra.mrb[0].mxu0 %v1060
          %v1215 = vpop.f32.mrb[0].mxu0
          %v1216 = vadd.f32 %v1083, %v1215
          %v1217 = vpop.f32.mrb[0].mxu0
          %v1218 = vpop.f32.mrb[0].mxu0
          %v1219 = vadd.f32 %v1083, %v1218
          %v1220 = vpop.f32.mrb[0].mxu0
          %1221 = vmatprep.mubr.bf16.mxu0 0
          %1222 = vmatmul.mubr.bf16.gmra.mrb[0].mxu0 %v1061
          %v1223 = vpop.f32.mrb[0].mxu0
          %v1224 = vadd.f32 %v1083, %v1223
          %v1225 = vpop.f32.mrb[0].mxu0
          %v1226 = vpop.f32.mrb[0].mxu0
          %v1227 = vadd.f32 %v1083, %v1226
          %v1228 = vpop.f32.mrb[0].mxu0
          %1229 = vdwg.mxu0
          %v1230 = vmax.f32 %v1168, 0.0
          %v1231 = vmax.f32 %v1171, 0.0
          %v1232 = vmax.f32 %v1176, 0.0
          %v1233 = vmax.f32 %v1179, 0.0
          %v1234 = vmax.f32 %v1184, 0.0
          %v1235 = vmax.f32 %v1187, 0.0
          %v1236 = vmax.f32 %v1192, 0.0
          %v1237 = vmax.f32 %v1195, 0.0
          %v1238 = vmax.f32 %v1200, 0.0
          %v1239 = vmax.f32 %v1203, 0.0
          %v1240 = vmax.f32 %v1208, 0.0
          %v1241 = vmax.f32 %v1211, 0.0
          %v1242 = vmax.f32 %v1216, 0.0
          %v1243 = vmax.f32 %v1219, 0.0
          %v1244 = vmax.f32 %v1224, 0.0
          %v1245 = vmax.f32 %v1227, 0.0
          %v1246 = vand.u32 2147483647, %v1168
          %v1247 = vand.u32 2147483647, %v1171
          %v1248 = vand.u32 2147483647, %v1176
          %v1249 = vand.u32 2147483647, %v1179
          %v1250 = vand.u32 2147483647, %v1184
          %v1251 = vand.u32 2147483647, %v1187
          %v1252 = vand.u32 2147483647, %v1192
          %v1253 = vand.u32 2147483647, %v1195
          %v1254 = vand.u32 2147483647, %v1200
          %v1255 = vand.u32 2147483647, %v1203
          %v1256 = vand.u32 2147483647, %v1208
          %v1257 = vand.u32 2147483647, %v1211
          %v1258 = vand.u32 2147483647, %v1216
          %v1259 = vand.u32 2147483647, %v1219
          %v1260 = vand.u32 2147483647, %v1224
          %v1261 = vand.u32 2147483647, %v1227
          %v1262 = vsub.f32 0.0, %v1246
          %v1263 = vsub.f32 0.0, %v1247
          %v1264 = vsub.f32 0.0, %v1248
          %v1265 = vsub.f32 0.0, %v1249
          %v1266 = vsub.f32 0.0, %v1250
          %v1267 = vsub.f32 0.0, %v1251
          %v1268 = vsub.f32 0.0, %v1252
          %v1269 = vsub.f32 0.0, %v1253
          %v1270 = vsub.f32 0.0, %v1254
          %v1271 = vsub.f32 0.0, %v1255
          %v1272 = vsub.f32 0.0, %v1256
          %v1273 = vsub.f32 0.0, %v1257
          %v1274 = vsub.f32 0.0, %v1258
          %v1275 = vsub.f32 0.0, %v1259
          %v1276 = vsub.f32 0.0, %v1260
          %v1277 = vsub.f32 0.0, %v1261
          %v1278 = vmul.f32 %v1262, 1.442695
          %v1279 = vpow.pop %v1278
          %v1280 = vmul.f32 %v1263, 1.442695
          %v1281 = vpow.pop %v1280
          %v1282 = vmul.f32 %v1264, 1.442695
          %v1283 = vpow.pop %v1282
          %v1284 = vmul.f32 %v1265, 1.442695
          %v1285 = vpow.pop %v1284
          %v1286 = vmul.f32 %v1266, 1.442695
          %v1287 = vpow.pop %v1286
          %v1288 = vmul.f32 %v1267, 1.442695
          %v1289 = vpow.pop %v1288
          %v1290 = vmul.f32 %v1268, 1.442695
          %v1291 = vpow.pop %v1290
          %v1292 = vmul.f32 %v1269, 1.442695
          %v1293 = vpow.pop %v1292
          %v1294 = vmul.f32 %v1270, 1.442695
          %v1295 = vpow.pop %v1294
          %v1296 = vmul.f32 %v1271, 1.442695
          %v1297 = vpow.pop %v1296
          %v1298 = vmul.f32 %v1272, 1.442695
          %v1299 = vpow.pop %v1298
          %v1300 = vmul.f32 %v1273, 1.442695
          %v1301 = vpow.pop %v1300
          %v1302 = vmul.f32 %v1274, 1.442695
          %v1303 = vpow.pop %v1302
          %v1304 = vmul.f32 %v1275, 1.442695
          %v1305 = vpow.pop %v1304
          %v1306 = vmul.f32 %v1276, 1.442695
          %v1307 = vpow.pop %v1306
          %v1308 = vmul.f32 %v1277, 1.442695
          %v1309 = vpow.pop %v1308
          %v1310 = vadd.f32 %v1279, 1.0
          %v1311 = vlog2.pop %v1310
          %v1312 = vmul.f32 %v1311, 0.6931472
          %v1313 = vmul.f32 -0.5, %v1279
          %v1314 = vadd.f32 %v1313, 1.0
          %v1315 = vmul.f32 %v1314, %v1279
          %v1316 = vand.u32 2147483647, %v1279
          %vm1317 = vcmp.lt.f32.partialorder %v1316, 0.0004427343
          %v1318 = vsel %vm1317, %v1315, %v1312
          %v1319 = vadd.f32 %v1281, 1.0
          %v1320 = vlog2.pop %v1319
          %v1321 = vmul.f32 %v1320, 0.6931472
          %v1322 = vmul.f32 -0.5, %v1281
          %v1323 = vadd.f32 %v1322, 1.0
          %v1324 = vmul.f32 %v1323, %v1281
          %v1325 = vand.u32 2147483647, %v1281
          %vm1326 = vcmp.lt.f32.partialorder %v1325, 0.0004427343
          %v1327 = vsel %vm1326, %v1324, %v1321
          %v1328 = vadd.f32 %v1283, 1.0
          %v1329 = vlog2.pop %v1328
          %v1330 = vmul.f32 %v1329, 0.6931472
          %v1331 = vmul.f32 -0.5, %v1283
          %v1332 = vadd.f32 %v1331, 1.0
          %v1333 = vmul.f32 %v1332, %v1283
          %v1334 = vand.u32 2147483647, %v1283
          %vm1335 = vcmp.lt.f32.partialorder %v1334, 0.0004427343
          %v1336 = vsel %vm1335, %v1333, %v1330
          %v1337 = vadd.f32 %v1285, 1.0
          %v1338 = vlog2.pop %v1337
          %v1339 = vmul.f32 %v1338, 0.6931472
          %v1340 = vmul.f32 -0.5, %v1285
          %v1341 = vadd.f32 %v1340, 1.0
          %v1342 = vmul.f32 %v1341, %v1285
          %v1343 = vand.u32 2147483647, %v1285
          %vm1344 = vcmp.lt.f32.partialorder %v1343, 0.0004427343
          %v1345 = vsel %vm1344, %v1342, %v1339
          %v1346 = vadd.f32 %v1287, 1.0
          %v1347 = vlog2.pop %v1346
          %v1348 = vmul.f32 %v1347, 0.6931472
          %v1349 = vmul.f32 -0.5, %v1287
          %v1350 = vadd.f32 %v1349, 1.0
          %v1351 = vmul.f32 %v1350, %v1287
          %v1352 = vand.u32 2147483647, %v1287
          %vm1353 = vcmp.lt.f32.partialorder %v1352, 0.0004427343
          %v1354 = vsel %vm1353, %v1351, %v1348
          %v1355 = vadd.f32 %v1289, 1.0
          %v1356 = vlog2.pop %v1355
          %v1357 = vmul.f32 %v1356, 0.6931472
          %v1358 = vmul.f32 -0.5, %v1289
          %v1359 = vadd.f32 %v1358, 1.0
          %v1360 = vmul.f32 %v1359, %v1289
          %v1361 = vand.u32 2147483647, %v1289
          %vm1362 = vcmp.lt.f32.partialorder %v1361, 0.0004427343
          %v1363 = vsel %vm1362, %v1360, %v1357
          %v1364 = vadd.f32 %v1291, 1.0
          %v1365 = vlog2.pop %v1364
          %v1366 = vmul.f32 %v1365, 0.6931472
          %v1367 = vmul.f32 -0.5, %v1291
          %v1368 = vadd.f32 %v1367, 1.0
          %v1369 = vmul.f32 %v1368, %v1291
          %v1370 = vand.u32 2147483647, %v1291
          %vm1371 = vcmp.lt.f32.partialorder %v1370, 0.0004427343
          %v1372 = vsel %vm1371, %v1369, %v1366
          %v1373 = vadd.f32 %v1293, 1.0
          %v1374 = vlog2.pop %v1373
          %v1375 = vmul.f32 %v1374, 0.6931472
          %v1376 = vmul.f32 -0.5, %v1293
          %v1377 = vadd.f32 %v1376, 1.0
          %v1378 = vmul.f32 %v1377, %v1293
          %v1379 = vand.u32 2147483647, %v1293
          %vm1380 = vcmp.lt.f32.partialorder %v1379, 0.0004427343
          %v1381 = vsel %vm1380, %v1378, %v1375
          %v1382 = vadd.f32 %v1295, 1.0
          %v1383 = vlog2.pop %v1382
          %v1384 = vmul.f32 %v1383, 0.6931472
          %v1385 = vmul.f32 -0.5, %v1295
          %v1386 = vadd.f32 %v1385, 1.0
          %v1387 = vmul.f32 %v1386, %v1295
          %v1388 = vand.u32 2147483647, %v1295
          %vm1389 = vcmp.lt.f32.partialorder %v1388, 0.0004427343
          %v1390 = vsel %vm1389, %v1387, %v1384
          %v1391 = vadd.f32 %v1297, 1.0
          %v1392 = vlog2.pop %v1391
          %v1393 = vmul.f32 %v1392, 0.6931472
          %v1394 = vmul.f32 -0.5, %v1297
          %v1395 = vadd.f32 %v1394, 1.0
          %v1396 = vmul.f32 %v1395, %v1297
          %v1397 = vand.u32 2147483647, %v1297
          %vm1398 = vcmp.lt.f32.partialorder %v1397, 0.0004427343
          %v1399 = vsel %vm1398, %v1396, %v1393
          %v1400 = vadd.f32 %v1299, 1.0
          %v1401 = vlog2.pop %v1400
          %v1402 = vmul.f32 %v1401, 0.6931472
          %v1403 = vmul.f32 -0.5, %v1299
          %v1404 = vadd.f32 %v1403, 1.0
          %v1405 = vmul.f32 %v1404, %v1299
          %v1406 = vand.u32 2147483647, %v1299
          %vm1407 = vcmp.lt.f32.partialorder %v1406, 0.0004427343
          %v1408 = vsel %vm1407, %v1405, %v1402
          %v1409 = vadd.f32 %v1301, 1.0
          %v1410 = vlog2.pop %v1409
          %v1411 = vmul.f32 %v1410, 0.6931472
          %v1412 = vmul.f32 -0.5, %v1301
          %v1413 = vadd.f32 %v1412, 1.0
          %v1414 = vmul.f32 %v1413, %v1301
          %v1415 = vand.u32 2147483647, %v1301
          %vm1416 = vcmp.lt.f32.partialorder %v1415, 0.0004427343
          %v1417 = vsel %vm1416, %v1414, %v1411
          %v1418 = vadd.f32 %v1303, 1.0
          %v1419 = vlog2.pop %v1418
          %v1420 = vmul.f32 %v1419, 0.6931472
          %v1421 = vmul.f32 -0.5, %v1303
          %v1422 = vadd.f32 %v1421, 1.0
          %v1423 = vmul.f32 %v1422, %v1303
          %v1424 = vand.u32 2147483647, %v1303
          %vm1425 = vcmp.lt.f32.partialorder %v1424, 0.0004427343
          %v1426 = vsel %vm1425, %v1423, %v1420
          %v1427 = vadd.f32 %v1305, 1.0
          %v1428 = vlog2.pop %v1427
          %v1429 = vmul.f32 %v1428, 0.6931472
          %v1430 = vmul.f32 -0.5, %v1305
          %v1431 = vadd.f32 %v1430, 1.0
          %v1432 = vmul.f32 %v1431, %v1305
          %v1433 = vand.u32 2147483647, %v1305
          %vm1434 = vcmp.lt.f32.partialorder %v1433, 0.0004427343
          %v1435 = vsel %vm1434, %v1432, %v1429
          %v1436 = vadd.f32 %v1307, 1.0
          %v1437 = vlog2.pop %v1436
          %v1438 = vmul.f32 %v1437, 0.6931472
          %v1439 = vmul.f32 -0.5, %v1307
          %v1440 = vadd.f32 %v1439, 1.0
          %v1441 = vmul.f32 %v1440, %v1307
          %v1442 = vand.u32 2147483647, %v1307
          %vm1443 = vcmp.lt.f32.partialorder %v1442, 0.0004427343
          %v1444 = vsel %vm1443, %v1441, %v1438
          %v1445 = vadd.f32 %v1309, 1.0
          %v1446 = vlog2.pop %v1445
          %v1447 = vmul.f32 %v1446, 0.6931472
          %v1448 = vmul.f32 -0.5, %v1309
          %v1449 = vadd.f32 %v1448, 1.0
          %v1450 = vmul.f32 %v1449, %v1309
          %v1451 = vand.u32 2147483647, %v1309
          %vm1452 = vcmp.lt.f32.partialorder %v1451, 0.0004427343
          %v1453 = vsel %vm1452, %v1450, %v1447
          %v1454 = vadd.f32 %v1230, %v1318
          %v1455 = vadd.f32 %v1231, %v1327
          %v1456 = vadd.f32 %v1232, %v1336
          %v1457 = vadd.f32 %v1233, %v1345
          %v1458 = vadd.f32 %v1234, %v1354
          %v1459 = vadd.f32 %v1235, %v1363
          %v1460 = vadd.f32 %v1236, %v1372
          %v1461 = vadd.f32 %v1237, %v1381
          %v1462 = vadd.f32 %v1238, %v1390
          %v1463 = vadd.f32 %v1239, %v1399
          %v1464 = vadd.f32 %v1240, %v1408
          %v1465 = vadd.f32 %v1241, %v1417
          %v1466 = vadd.f32 %v1242, %v1426
          %v1467 = vadd.f32 %v1243, %v1435
          %v1468 = vadd.f32 %v1244, %v1444
          %v1469 = vadd.f32 %v1245, %v1453
          %v1470 = vsub.f32 %v1454, 0.6931472
          %v1471 = vsub.f32 %v1455, 0.6931472
          %v1472 = vsub.f32 %v1456, 0.6931472
          %v1473 = vsub.f32 %v1457, 0.6931472
          %v1474 = vsub.f32 %v1458, 0.6931472
          %v1475 = vsub.f32 %v1459, 0.6931472
          %v1476 = vsub.f32 %v1460, 0.6931472
          %v1477 = vsub.f32 %v1461, 0.6931472
          %v1478 = vsub.f32 %v1462, 0.6931472
          %v1479 = vsub.f32 %v1463, 0.6931472
          %v1480 = vsub.f32 %v1464, 0.6931472
          %v1481 = vsub.f32 %v1465, 0.6931472
          %v1482 = vsub.f32 %v1466, 0.6931472
          %v1483 = vsub.f32 %v1467, 0.6931472
          %v1484 = vsub.f32 %v1468, 0.6931472
          %v1485 = vsub.f32 %v1469, 0.6931472
          %v1486 = vld [vmem:[%s659] sm:$0xf]
          %v1487 = vld [vmem:[%s659 + $0x4] sm:$0xf]
          %v1488 = vld [vmem:[%s659 + $0x8] sm:$0xf]
          %v1489 = vld [vmem:[%s659 + $0xc] sm:$0xf]
          %v1490 = vld [vmem:[%s659 + $0x10] sm:$0xf]
          %v1491 = vld [vmem:[%s659 + $0x14] sm:$0xf]
          %v1492 = vld [vmem:[%s659 + $0x18] sm:$0xf]
          %v1493 = vld [vmem:[%s659 + $0x1c] sm:$0xf]
          %v1494 = vld [vmem:[%s659 + $0x20] sm:$0xf]
          %v1495 = vld [vmem:[%s659 + $0x24] sm:$0xf]
          %v1496 = vld [vmem:[%s659 + $0x28] sm:$0xf]
          %v1497 = vld [vmem:[%s659 + $0x2c] sm:$0xf]
          %v1498 = vld [vmem:[%s659 + $0x30] sm:$0xf]
          %v1499 = vld [vmem:[%s659 + $0x34] sm:$0xf]
          %v1500 = vld [vmem:[%s659 + $0x38] sm:$0xf]
          %v1501 = vld [vmem:[%s659 + $0x3c] sm:$0xf]
          %v1502 = vld [vmem:[#allocation14] sm:$0xf]
          %v1503 = vld [vmem:[#allocation14 + $0x4] sm:$0xf]
          %v1504 = vld [vmem:[#allocation14 + $0x8] sm:$0xf]
          %v1505 = vld [vmem:[#allocation14 + $0xc] sm:$0xf]
          %v1506 = vld [vmem:[#allocation14 + $0x10] sm:$0xf]
          %v1507 = vld [vmem:[#allocation14 + $0x14] sm:$0xf]
          %v1508 = vld [vmem:[#allocation14 + $0x18] sm:$0xf]
          %v1509 = vld [vmem:[#allocation14 + $0x1c] sm:$0xf]
          %v1510 = vld [vmem:[#allocation14 + $0x20] sm:$0xf]
          %v1511 = vld [vmem:[#allocation14 + $0x24] sm:$0xf]
          %v1512 = vld [vmem:[#allocation14 + $0x28] sm:$0xf]
          %v1513 = vld [vmem:[#allocation14 + $0x2c] sm:$0xf]
          %v1514 = vld [vmem:[#allocation14 + $0x30] sm:$0xf]
          %v1515 = vld [vmem:[#allocation14 + $0x34] sm:$0xf]
          %v1516 = vld [vmem:[#allocation14 + $0x38] sm:$0xf]
          %v1517 = vld [vmem:[#allocation14 + $0x3c] sm:$0xf]
          %v1534 = vunpack.c.l.b16 %v1486
          %v1535 = vunpack.c.l.b16 %v1487
          %v1536 = vunpack.c.l.b16 %v1488
          %v1537 = vunpack.c.l.b16 %v1489
          %v1538 = vunpack.c.l.b16 %v1490
          %v1539 = vunpack.c.l.b16 %v1491
          %v1540 = vunpack.c.l.b16 %v1492
          %v1541 = vunpack.c.l.b16 %v1493
          %v1542 = vunpack.c.l.b16 %v1494
          %v1543 = vunpack.c.l.b16 %v1495
          %v1544 = vunpack.c.l.b16 %v1496
          %v1545 = vunpack.c.l.b16 %v1497
          %v1546 = vunpack.c.l.b16 %v1498
          %v1547 = vunpack.c.l.b16 %v1499
          %v1548 = vunpack.c.l.b16 %v1500
          %v1549 = vunpack.c.l.b16 %v1501
          %v1550 = vpack.c.b16 %v1535, %v1534
          %v1551 = vpack.c.b16 %v1537, %v1536
          %v1552 = vpack.c.b16 %v1539, %v1538
          %v1553 = vpack.c.b16 %v1541, %v1540
          %v1554 = vpack.c.b16 %v1543, %v1542
          %v1555 = vpack.c.b16 %v1545, %v1544
          %v1556 = vpack.c.b16 %v1547, %v1546
          %v1557 = vpack.c.b16 %v1549, %v1548
          %v1582 = vunpack.c.l.b16 %v1502
          %v1583 = vunpack.c.l.b16 %v1503
          %v1584 = vunpack.c.l.b16 %v1504
          %v1585 = vunpack.c.l.b16 %v1505
          %v1586 = vunpack.c.l.b16 %v1506
          %v1587 = vunpack.c.l.b16 %v1507
          %v1588 = vunpack.c.l.b16 %v1508
          %v1589 = vunpack.c.l.b16 %v1509
          %v1590 = vunpack.c.l.b16 %v1510
          %v1591 = vunpack.c.l.b16 %v1511
          %v1592 = vunpack.c.l.b16 %v1512
          %v1593 = vunpack.c.l.b16 %v1513
          %v1594 = vunpack.c.l.b16 %v1514
          %v1595 = vunpack.c.l.b16 %v1515
          %v1596 = vunpack.c.l.b16 %v1516
          %v1597 = vunpack.c.l.b16 %v1517
          %v1598 = vpack.c.b16 %v1583, %v1582
          %v1599 = vpack.c.b16 %v1585, %v1584
          %v1600 = vpack.c.b16 %v1587, %v1586
          %v1601 = vpack.c.b16 %v1589, %v1588
          %v1602 = vpack.c.b16 %v1591, %v1590
          %v1603 = vpack.c.b16 %v1593, %v1592
          %v1604 = vpack.c.b16 %v1595, %v1594
          %v1605 = vpack.c.b16 %v1597, %v1596
          %1614 = vmatprep.subr.bf16.mxu0 0
          %1615 = vmatpush1.bf16.msra.mxu0 %v1598
          %1616 = vmatprep.subr.bf16.mxu0 0
          %1617 = vmatpush1.bf16.msra.mxu0 %v1599
          %1618 = vmatprep.subr.bf16.mxu0 0
          %1619 = vmatpush1.bf16.msra.mxu0 %v1600
          %1620 = vmatprep.subr.bf16.mxu0 0
          %1621 = vmatpush1.bf16.msra.mxu0 %v1601
          %1622 = vmatprep.subr.bf16.mxu0 0
          %1623 = vmatpush1.bf16.msra.mxu0 %v1602
          %1624 = vmatprep.subr.bf16.mxu0 0
          %1625 = vmatpush1.bf16.msra.mxu0 %v1603
          %1626 = vmatprep.subr.bf16.mxu0 0
          %1627 = vmatpush1.bf16.msra.mxu0 %v1604
          %1628 = vmatprep.subr.bf16.mxu0 0
          %1629 = vmatpush1.bf16.msra.mxu0 %v1605
          %1630 = vmatprep.subr.bf16.mxu0 0
          %1631 = vmatpush1.bf16.msra.mxu0 0
          %1632 = vmatprep.subr.bf16.mxu0 0
          %1633 = vmatpush1.bf16.msra.mxu0 0
          %1634 = vmatprep.subr.bf16.mxu0 0
          %1635 = vmatpush1.bf16.msra.mxu0 0
          %1636 = vmatprep.subr.bf16.mxu0 0
          %1637 = vmatpush1.bf16.msra.mxu0 0
          %1638 = vmatprep.subr.bf16.mxu0 0
          %1639 = vmatpush1.bf16.msra.mxu0 0
          %1640 = vmatprep.subr.bf16.mxu0 0
          %1641 = vmatpush1.bf16.msra.mxu0 0
          %1642 = vmatprep.subr.bf16.mxu0 0
          %1643 = vmatpush1.bf16.msra.mxu0 0
          %1644 = vmatprep.subr.bf16.mxu0 0
          %1645 = vmatpush1.bf16.msra.mxu0 0
          %1646 = vmatprep.mubr.bf16.mxu0 0
          %1647 = vmatmul.mubr.bf16.gmra.mrb[0].mxu0 %v1550
          %v1648 = vpop.f32.mrb[0].mxu0
          %v1649 = vadd.f32 0.0, %v1648
          %v1650 = vpop.f32.mrb[0].mxu0
          %v1651 = vpop.f32.mrb[0].mxu0
          %v1652 = vadd.f32 0.0, %v1651
          %v1653 = vpop.f32.mrb[0].mxu0
          %1654 = vmatprep.mubr.bf16.mxu0 0
          %1655 = vmatmul.mubr.bf16.gmra.mrb[0].mxu0 %v1551
          %v1656 = vpop.f32.mrb[0].mxu0
          %v1657 = vadd.f32 0.0, %v1656
          %v1658 = vpop.f32.mrb[0].mxu0
          %v1659 = vpop.f32.mrb[0].mxu0
          %v1660 = vadd.f32 0.0, %v1659
          %v1661 = vpop.f32.mrb[0].mxu0
          %1662 = vmatprep.mubr.bf16.mxu0 0
          %1663 = vmatmul.mubr.bf16.gmra.mrb[0].mxu0 %v1552
          %v1664 = vpop.f32.mrb[0].mxu0
          %v1665 = vadd.f32 0.0, %v1664
          %v1666 = vpop.f32.mrb[0].mxu0
          %v1667 = vpop.f32.mrb[0].mxu0
          %v1668 = vadd.f32 0.0, %v1667
          %v1669 = vpop.f32.mrb[0].mxu0
          %1670 = vmatprep.mubr.bf16.mxu0 0
          %1671 = vmatmul.mubr.bf16.gmra.mrb[0].mxu0 %v1553
          %v1672 = vpop.f32.mrb[0].mxu0
          %v1673 = vadd.f32 0.0, %v1672
          %v1674 = vpop.f32.mrb[0].mxu0
          %v1675 = vpop.f32.mrb[0].mxu0
          %v1676 = vadd.f32 0.0, %v1675
          %v1677 = vpop.f32.mrb[0].mxu0
          %1678 = vmatprep.mubr.bf16.mxu0 0
          %1679 = vmatmul.mubr.bf16.gmra.mrb[0].mxu0 %v1554
          %v1680 = vpop.f32.mrb[0].mxu0
          %v1681 = vadd.f32 0.0, %v1680
          %v1682 = vpop.f32.mrb[0].mxu0
          %v1683 = vpop.f32.mrb[0].mxu0
          %v1684 = vadd.f32 0.0, %v1683
          %v1685 = vpop.f32.mrb[0].mxu0
          %1686 = vmatprep.mubr.bf16.mxu0 0
          %1687 = vmatmul.mubr.bf16.gmra.mrb[0].mxu0 %v1555
          %v1688 = vpop.f32.mrb[0].mxu0
          %v1689 = vadd.f32 0.0, %v1688
          %v1690 = vpop.f32.mrb[0].mxu0
          %v1691 = vpop.f32.mrb[0].mxu0
          %v1692 = vadd.f32 0.0, %v1691
          %v1693 = vpop.f32.mrb[0].mxu0
          %1694 = vmatprep.mubr.bf16.mxu0 0
          %1695 = vmatmul.mubr.bf16.gmra.mrb[0].mxu0 %v1556
          %v1696 = vpop.f32.mrb[0].mxu0
          %v1697 = vadd.f32 0.0, %v1696
          %v1698 = vpop.f32.mrb[0].mxu0
          %v1699 = vpop.f32.mrb[0].mxu0
          %v1700 = vadd.f32 0.0, %v1699
          %v1701 = vpop.f32.mrb[0].mxu0
          %1702 = vmatprep.mubr.bf16.mxu0 0
          %1703 = vmatmul.mubr.bf16.gmra.mrb[0].mxu0 %v1557
          %v1704 = vpop.f32.mrb[0].mxu0
          %v1705 = vadd.f32 0.0, %v1704
          %v1706 = vpop.f32.mrb[0].mxu0
          %v1707 = vpop.f32.mrb[0].mxu0
          %v1708 = vadd.f32 0.0, %v1707
          %v1709 = vpop.f32.mrb[0].mxu0
          %1710 = vdwg.mxu0
          %v1711 = vmul.f32 %v1470, %v1649
          %v1712 = vmul.f32 %v1471, %v1652
          %v1713 = vmul.f32 %v1472, %v1657
          %v1714 = vmul.f32 %v1473, %v1660
          %v1715 = vmul.f32 %v1474, %v1665
          %v1716 = vmul.f32 %v1475, %v1668
          %v1717 = vmul.f32 %v1476, %v1673
          %v1718 = vmul.f32 %v1477, %v1676
          %v1719 = vmul.f32 %v1478, %v1681
          %v1720 = vmul.f32 %v1479, %v1684
          %v1721 = vmul.f32 %v1480, %v1689
          %v1722 = vmul.f32 %v1481, %v1692
          %v1723 = vmul.f32 %v1482, %v1697
          %v1724 = vmul.f32 %v1483, %v1700
          %v1725 = vmul.f32 %v1484, %v1705
          %v1726 = vmul.f32 %v1485, %v1708
          %v1727 = vlaneseq
          %v1728 = vshrl.u32 %v1727, 7
          %v1729 = vadd.s32 %v1728, 8
          %v1730 = vadd.s32 %v1728, 16
          %v1731 = vadd.s32 %v1728, 24
          %v1732 = vadd.s32 %v1728, 32
          %v1733 = vadd.s32 %v1728, 40
          %v1734 = vadd.s32 %v1728, 48
          %v1735 = vadd.s32 %v1728, 56
          %v1736 = vadd.s32 %v1728, 64
          %v1737 = vadd.s32 %v1728, 72
          %v1738 = vadd.s32 %v1728, 80
          %v1739 = vadd.s32 %v1728, 88
          %v1740 = vadd.s32 %v1728, 96
          %v1741 = vadd.s32 %v1728, 104
          %v1742 = vadd.s32 %v1728, 112
          %v1743 = vadd.s32 %v1728, 120
          %v1744 = vstv %s750
          %v1745 = vadd.s32 %v1744, %v1728
          %v1746 = vadd.s32 %v1744, %v1729
          %v1747 = vadd.s32 %v1744, %v1730
          %v1748 = vadd.s32 %v1744, %v1731
          %v1749 = vadd.s32 %v1744, %v1732
          %v1750 = vadd.s32 %v1744, %v1733
          %v1751 = vadd.s32 %v1744, %v1734
          %v1752 = vadd.s32 %v1744, %v1735
          %v1753 = vadd.s32 %v1744, %v1736
          %v1754 = vadd.s32 %v1744, %v1737
          %v1755 = vadd.s32 %v1744, %v1738
          %v1756 = vadd.s32 %v1744, %v1739
          %v1757 = vadd.s32 %v1744, %v1740
          %v1758 = vadd.s32 %v1744, %v1741
          %v1759 = vadd.s32 %v1744, %v1742
          %v1760 = vadd.s32 %v1744, %v1743
          %v1761 = vld [vmem:[%s745] sm:$0x1]
          %v1762 = vlaneseq
          %v1763 = vshrl.u32 %v1762, 7
          %v1764 = vsub.s32 0, %v1763
          %v1765 = vrot.slane %v1761, %v1764
          %vm1766 = vcmp.eq.s32.totalorder %v1745, %v1765
          %vm1767 = vcmp.eq.s32.totalorder %v1746, %v1765
          %vm1768 = vcmp.eq.s32.totalorder %v1747, %v1765
          %vm1769 = vcmp.eq.s32.totalorder %v1748, %v1765
          %vm1770 = vcmp.eq.s32.totalorder %v1749, %v1765
          %vm1771 = vcmp.eq.s32.totalorder %v1750, %v1765
          %vm1772 = vcmp.eq.s32.totalorder %v1751, %v1765
          %vm1773 = vcmp.eq.s32.totalorder %v1752, %v1765
          %vm1774 = vcmp.eq.s32.totalorder %v1753, %v1765
          %vm1775 = vcmp.eq.s32.totalorder %v1754, %v1765
          %vm1776 = vcmp.eq.s32.totalorder %v1755, %v1765
          %vm1777 = vcmp.eq.s32.totalorder %v1756, %v1765
          %vm1778 = vcmp.eq.s32.totalorder %v1757, %v1765
          %vm1779 = vcmp.eq.s32.totalorder %v1758, %v1765
          %vm1780 = vcmp.eq.s32.totalorder %v1759, %v1765
          %vm1781 = vcmp.eq.s32.totalorder %v1760, %v1765
          %v1782 = vsel %vm1766, 1, 0
          %v1783 = vsel %vm1767, 1, 0
          %v1784 = vsel %vm1768, 1, 0
          %v1785 = vsel %vm1769, 1, 0
          %v1786 = vsel %vm1770, 1, 0
          %v1787 = vsel %vm1771, 1, 0
          %v1788 = vsel %vm1772, 1, 0
          %v1789 = vsel %vm1773, 1, 0
          %v1790 = vsel %vm1774, 1, 0
          %v1791 = vsel %vm1775, 1, 0
          %v1792 = vsel %vm1776, 1, 0
          %v1793 = vsel %vm1777, 1, 0
          %v1794 = vsel %vm1778, 1, 0
          %v1795 = vsel %vm1779, 1, 0
          %v1796 = vsel %vm1780, 1, 0
          %v1797 = vsel %vm1781, 1, 0
          %v1798 = vcvt.s32.f32 %v1782
          %v1799 = vcvt.s32.f32 %v1783
          %v1800 = vcvt.s32.f32 %v1784
          %v1801 = vcvt.s32.f32 %v1785
          %v1802 = vcvt.s32.f32 %v1786
          %v1803 = vcvt.s32.f32 %v1787
          %v1804 = vcvt.s32.f32 %v1788
          %v1805 = vcvt.s32.f32 %v1789
          %v1806 = vcvt.s32.f32 %v1790
          %v1807 = vcvt.s32.f32 %v1791
          %v1808 = vcvt.s32.f32 %v1792
          %v1809 = vcvt.s32.f32 %v1793
          %v1810 = vcvt.s32.f32 %v1794
          %v1811 = vcvt.s32.f32 %v1795
          %v1812 = vcvt.s32.f32 %v1796
          %v1813 = vcvt.s32.f32 %v1797
          %v1814 = vpack.c.bf16 %v1799, %v1798
          %v1815 = vpack.c.bf16 %v1801, %v1800
          %v1816 = vpack.c.bf16 %v1803, %v1802
          %v1817 = vpack.c.bf16 %v1805, %v1804
          %v1818 = vpack.c.bf16 %v1807, %v1806
          %v1819 = vpack.c.bf16 %v1809, %v1808
          %v1820 = vpack.c.bf16 %v1811, %v1810
          %v1821 = vpack.c.bf16 %v1813, %v1812
          %v1822 = vld [vmem:[#allocation2] sm:$0xff]
          %v1823 = vld [vmem:[#allocation2 + $0x8] sm:$0xff]
          %v1824 = vld [vmem:[#allocation2 + $0x10] sm:$0xff]
          %v1825 = vld [vmem:[#allocation2 + $0x18] sm:$0xff]
          %v1826 = vld [vmem:[#allocation2 + $0x20] sm:$0xff]
          %v1827 = vld [vmem:[#allocation2 + $0x28] sm:$0xff]
          %v1828 = vld [vmem:[#allocation2 + $0x30] sm:$0xff]
          %v1829 = vld [vmem:[#allocation2 + $0x38] sm:$0xff]
          %v1830 = vld [vmem:[#allocation2 + $0x40] sm:$0xff]
          %v1831 = vld [vmem:[#allocation2 + $0x48] sm:$0xff]
          %v1832 = vld [vmem:[#allocation2 + $0x50] sm:$0xff]
          %v1833 = vld [vmem:[#allocation2 + $0x58] sm:$0xff]
          %v1834 = vld [vmem:[#allocation2 + $0x60] sm:$0xff]
          %v1835 = vld [vmem:[#allocation2 + $0x68] sm:$0xff]
          %v1836 = vld [vmem:[#allocation2 + $0x70] sm:$0xff]
          %v1837 = vld [vmem:[#allocation2 + $0x78] sm:$0xff]
          %v1838 = vpack.c.bf16 %v1712, %v1711
          %v1839 = vpack.c.bf16 %v1714, %v1713
          %v1840 = vpack.c.bf16 %v1716, %v1715
          %v1841 = vpack.c.bf16 %v1718, %v1717
          %v1842 = vpack.c.bf16 %v1720, %v1719
          %v1843 = vpack.c.bf16 %v1722, %v1721
          %v1844 = vpack.c.bf16 %v1724, %v1723
          %v1845 = vpack.c.bf16 %v1726, %v1725
          %1846 = vmatprep.subr.bf16.mxu0 0
          %1847 = vmatpush1.bf16.msra.mxu0 %v1838
          %1848 = vmatprep.subr.bf16.mxu0 0
          %1849 = vmatpush1.bf16.msra.mxu0 %v1839
          %1850 = vmatprep.subr.bf16.mxu0 0
          %1851 = vmatpush1.bf16.msra.mxu0 %v1840
          %1852 = vmatprep.subr.bf16.mxu0 0
          %1853 = vmatpush1.bf16.msra.mxu0 %v1841
          %1854 = vmatprep.subr.bf16.mxu0 0
          %1855 = vmatpush1.bf16.msra.mxu0 %v1842
          %1856 = vmatprep.subr.bf16.mxu0 0
          %1857 = vmatpush1.bf16.msra.mxu0 %v1843
          %1858 = vmatprep.subr.bf16.mxu0 0
          %1859 = vmatpush1.bf16.msra.mxu0 %v1844
          %1860 = vmatprep.subr.bf16.mxu0 0
          %1861 = vmatpush1.bf16.msra.mxu0 %v1845
          %1862 = vmatprep.subr.bf16.mxu0 0
          %1863 = vmatpush1.bf16.msra.mxu0 0
          %1864 = vmatprep.subr.bf16.mxu0 0
          %1865 = vmatpush1.bf16.msra.mxu0 0
          %1866 = vmatprep.subr.bf16.mxu0 0
          %1867 = vmatpush1.bf16.msra.mxu0 0
          %1868 = vmatprep.subr.bf16.mxu0 0
          %1869 = vmatpush1.bf16.msra.mxu0 0
          %1870 = vmatprep.subr.bf16.mxu0 0
          %1871 = vmatpush1.bf16.msra.mxu0 0
          %1872 = vmatprep.subr.bf16.mxu0 0
          %1873 = vmatpush1.bf16.msra.mxu0 0
          %1874 = vmatprep.subr.bf16.mxu0 0
          %1875 = vmatpush1.bf16.msra.mxu0 0
          %1876 = vmatprep.subr.bf16.mxu0 0
          %1877 = vmatpush1.bf16.msra.mxu0 0
          %1878 = vmatprep.mubr.bf16.mxu0 0
          %1879 = vmatmul.mubr.bf16.gmra.mrb[0].mxu0 %v1814
          %v1880 = vpop.f32.mrb[0].mxu0
          %v1881 = vadd.f32 0.0, %v1880
          %v1882 = vpop.f32.mrb[0].mxu0
          %v1883 = vpop.f32.mrb[0].mxu0
          %v1884 = vadd.f32 0.0, %v1883
          %v1885 = vpop.f32.mrb[0].mxu0
          %1886 = vmatprep.mubr.bf16.mxu0 0
          %1887 = vmatmul.mubr.bf16.gmra.mrb[0].mxu0 %v1815
          %v1888 = vpop.f32.mrb[0].mxu0
          %v1889 = vadd.f32 0.0, %v1888
          %v1890 = vpop.f32.mrb[0].mxu0
          %v1891 = vpop.f32.mrb[0].mxu0
          %v1892 = vadd.f32 0.0, %v1891
          %v1893 = vpop.f32.mrb[0].mxu0
          %1894 = vmatprep.mubr.bf16.mxu0 0
          %1895 = vmatmul.mubr.bf16.gmra.mrb[0].mxu0 %v1816
          %v1896 = vpop.f32.mrb[0].mxu0
          %v1897 = vadd.f32 0.0, %v1896
          %v1898 = vpop.f32.mrb[0].mxu0
          %v1899 = vpop.f32.mrb[0].mxu0
          %v1900 = vadd.f32 0.0, %v1899
          %v1901 = vpop.f32.mrb[0].mxu0
          %1902 = vmatprep.mubr.bf16.mxu0 0
          %1903 = vmatmul.mubr.bf16.gmra.mrb[0].mxu0 %v1817
          %v1904 = vpop.f32.mrb[0].mxu0
          %v1905 = vadd.f32 0.0, %v1904
          %v1906 = vpop.f32.mrb[0].mxu0
          %v1907 = vpop.f32.mrb[0].mxu0
          %v1908 = vadd.f32 0.0, %v1907
          %v1909 = vpop.f32.mrb[0].mxu0
          %1910 = vmatprep.mubr.bf16.mxu0 0
          %1911 = vmatmul.mubr.bf16.gmra.mrb[0].mxu0 %v1818
          %v1912 = vpop.f32.mrb[0].mxu0
          %v1913 = vadd.f32 0.0, %v1912
          %v1914 = vpop.f32.mrb[0].mxu0
          %v1915 = vpop.f32.mrb[0].mxu0
          %v1916 = vadd.f32 0.0, %v1915
          %v1917 = vpop.f32.mrb[0].mxu0
          %1918 = vmatprep.mubr.bf16.mxu0 0
          %1919 = vmatmul.mubr.bf16.gmra.mrb[0].mxu0 %v1819
          %v1920 = vpop.f32.mrb[0].mxu0
          %v1921 = vadd.f32 0.0, %v1920
          %v1922 = vpop.f32.mrb[0].mxu0
          %v1923 = vpop.f32.mrb[0].mxu0
          %v1924 = vadd.f32 0.0, %v1923
          %v1925 = vpop.f32.mrb[0].mxu0
          %1926 = vmatprep.mubr.bf16.mxu0 0
          %1927 = vmatmul.mubr.bf16.gmra.mrb[0].mxu0 %v1820
          %v1928 = vpop.f32.mrb[0].mxu0
          %v1929 = vadd.f32 0.0, %v1928
          %v1930 = vpop.f32.mrb[0].mxu0
          %v1931 = vpop.f32.mrb[0].mxu0
          %v1932 = vadd.f32 0.0, %v1931
          %v1933 = vpop.f32.mrb[0].mxu0
          %1934 = vmatprep.mubr.bf16.mxu0 0
          %1935 = vmatmul.mubr.bf16.gmra.mrb[0].mxu0 %v1821
          %v1936 = vpop.f32.mrb[0].mxu0
          %v1937 = vadd.f32 0.0, %v1936
          %v1938 = vpop.f32.mrb[0].mxu0
          %v1939 = vpop.f32.mrb[0].mxu0
          %v1940 = vadd.f32 0.0, %v1939
          %v1941 = vpop.f32.mrb[0].mxu0
          %1942 = vdwg.mxu0
          %v1943 = vadd.f32 %v1822, %v1881
          %v1944 = vadd.f32 %v1823, %v1884
          %v1945 = vadd.f32 %v1824, %v1889
          %v1946 = vadd.f32 %v1825, %v1892
          %v1947 = vadd.f32 %v1826, %v1897
          %v1948 = vadd.f32 %v1827, %v1900
          %v1949 = vadd.f32 %v1828, %v1905
          %v1950 = vadd.f32 %v1829, %v1908
          %v1951 = vadd.f32 %v1830, %v1913
          %v1952 = vadd.f32 %v1831, %v1916
          %v1953 = vadd.f32 %v1832, %v1921
          %v1954 = vadd.f32 %v1833, %v1924
          %v1955 = vadd.f32 %v1834, %v1929
          %v1956 = vadd.f32 %v1835, %v1932
          %v1957 = vadd.f32 %v1836, %v1937
          %v1958 = vadd.f32 %v1837, %v1940
          %1959 = vst [vmem:[#allocation2] sm:$0xff] %v1943
          %1960 = vst [vmem:[#allocation2 + $0x8] sm:$0xff] %v1944
          %1961 = vst [vmem:[#allocation2 + $0x10] sm:$0xff] %v1945
          %1962 = vst [vmem:[#allocation2 + $0x18] sm:$0xff] %v1946
          %1963 = vst [vmem:[#allocation2 + $0x20] sm:$0xff] %v1947
          %1964 = vst [vmem:[#allocation2 + $0x28] sm:$0xff] %v1948
          %1965 = vst [vmem:[#allocation2 + $0x30] sm:$0xff] %v1949
          %1966 = vst [vmem:[#allocation2 + $0x38] sm:$0xff] %v1950
          %1967 = vst [vmem:[#allocation2 + $0x40] sm:$0xff] %v1951
          %1968 = vst [vmem:[#allocation2 + $0x48] sm:$0xff] %v1952
          %1969 = vst [vmem:[#allocation2 + $0x50] sm:$0xff] %v1953
          %1970 = vst [vmem:[#allocation2 + $0x58] sm:$0xff] %v1954
          %1971 = vst [vmem:[#allocation2 + $0x60] sm:$0xff] %v1955
          %1972 = vst [vmem:[#allocation2 + $0x68] sm:$0xff] %v1956
          %1973 = vst [vmem:[#allocation2 + $0x70] sm:$0xff] %v1957
          %1974 = vst [vmem:[#allocation2 + $0x78] sm:$0xff] %v1958
        $region128: #{tpu_custom_call.1} parent=83 // pred_fallthru
          _
        %p1975 = scmp.eq.s32.totalorder %s50, 3
        // Predicated region
        $region129: #{tpu_custom_call.1} parent=83 // pred_check
          %p1976 = pneg %p1975
        $region130: #{tpu_custom_call.1} parent=83 // pred_check_branch
          %1978 = sbr.rel (%p1976) target = $region132
        $region131: #{tpu_custom_call.1} parent=83 // pred_region
          %v1979 = vld [vmem:[#allocation10] sm:$0xff]
          %v1980 = vld [vmem:[#allocation10 + $0x8] sm:$0xff]
          %v1981 = vld [vmem:[#allocation10 + $0x10] sm:$0xff]
          %v1982 = vld [vmem:[#allocation10 + $0x18] sm:$0xff]
          %v1983 = vld [vmem:[#allocation10 + $0x20] sm:$0xff]
          %v1984 = vld [vmem:[#allocation10 + $0x28] sm:$0xff]
          %v1985 = vld [vmem:[#allocation10 + $0x30] sm:$0xff]
          %v1986 = vld [vmem:[#allocation10 + $0x38] sm:$0xff]
          %v1987 = vld [vmem:[#allocation10 + $0x40] sm:$0xff]
          %v1988 = vld [vmem:[#allocation10 + $0x48] sm:$0xff]
          %v1989 = vld [vmem:[#allocation10 + $0x50] sm:$0xff]
          %v1990 = vld [vmem:[#allocation10 + $0x58] sm:$0xff]
          %v1991 = vld [vmem:[#allocation10 + $0x60] sm:$0xff]
          %v1992 = vld [vmem:[#allocation10 + $0x68] sm:$0xff]
          %v1993 = vld [vmem:[#allocation10 + $0x70] sm:$0xff]
          %v1994 = vld [vmem:[#allocation10 + $0x78] sm:$0xff]
          %v1995 = vmax.f32 %v1979, 0.0
          %v1996 = vmax.f32 %v1980, 0.0
          %v1997 = vmax.f32 %v1981, 0.0
          %v1998 = vmax.f32 %v1982, 0.0
          %v1999 = vmax.f32 %v1983, 0.0
          %v2000 = vmax.f32 %v1984, 0.0
          %v2001 = vmax.f32 %v1985, 0.0
          %v2002 = vmax.f32 %v1986, 0.0
          %v2003 = vmax.f32 %v1987, 0.0
          %v2004 = vmax.f32 %v1988, 0.0
          %v2005 = vmax.f32 %v1989, 0.0
          %v2006 = vmax.f32 %v1990, 0.0
          %v2007 = vmax.f32 %v1991, 0.0
          %v2008 = vmax.f32 %v1992, 0.0
          %v2009 = vmax.f32 %v1993, 0.0
          %v2010 = vmax.f32 %v1994, 0.0
          %v2011 = vand.u32 2147483647, %v1979
          %v2012 = vand.u32 2147483647, %v1980
          %v2013 = vand.u32 2147483647, %v1981
          %v2014 = vand.u32 2147483647, %v1982
          %v2015 = vand.u32 2147483647, %v1983
          %v2016 = vand.u32 2147483647, %v1984
          %v2017 = vand.u32 2147483647, %v1985
          %v2018 = vand.u32 2147483647, %v1986
          %v2019 = vand.u32 2147483647, %v1987
          %v2020 = vand.u32 2147483647, %v1988
          %v2021 = vand.u32 2147483647, %v1989
          %v2022 = vand.u32 2147483647, %v1990
          %v2023 = vand.u32 2147483647, %v1991
          %v2024 = vand.u32 2147483647, %v1992
          %v2025 = vand.u32 2147483647, %v1993
          %v2026 = vand.u32 2147483647, %v1994
          %v2027 = vsub.f32 0.0, %v2011
          %v2028 = vsub.f32 0.0, %v2012
          %v2029 = vsub.f32 0.0, %v2013
          %v2030 = vsub.f32 0.0, %v2014
          %v2031 = vsub.f32 0.0, %v2015
          %v2032 = vsub.f32 0.0, %v2016
          %v2033 = vsub.f32 0.0, %v2017
          %v2034 = vsub.f32 0.0, %v2018
          %v2035 = vsub.f32 0.0, %v2019
          %v2036 = vsub.f32 0.0, %v2020
          %v2037 = vsub.f32 0.0, %v2021
          %v2038 = vsub.f32 0.0, %v2022
          %v2039 = vsub.f32 0.0, %v2023
          %v2040 = vsub.f32 0.0, %v2024
          %v2041 = vsub.f32 0.0, %v2025
          %v2042 = vsub.f32 0.0, %v2026
          %v2043 = vmul.f32 %v2027, 1.442695
          %v2044 = vpow.pop %v2043
          %v2045 = vmul.f32 %v2028, 1.442695
          %v2046 = vpow.pop %v2045
          %v2047 = vmul.f32 %v2029, 1.442695
          %v2048 = vpow.pop %v2047
          %v2049 = vmul.f32 %v2030, 1.442695
          %v2050 = vpow.pop %v2049
          %v2051 = vmul.f32 %v2031, 1.442695
          %v2052 = vpow.pop %v2051
          %v2053 = vmul.f32 %v2032, 1.442695
          %v2054 = vpow.pop %v2053
          %v2055 = vmul.f32 %v2033, 1.442695
          %v2056 = vpow.pop %v2055
          %v2057 = vmul.f32 %v2034, 1.442695
          %v2058 = vpow.pop %v2057
          %v2059 = vmul.f32 %v2035, 1.442695
          %v2060 = vpow.pop %v2059
          %v2061 = vmul.f32 %v2036, 1.442695
          %v2062 = vpow.pop %v2061
          %v2063 = vmul.f32 %v2037, 1.442695
          %v2064 = vpow.pop %v2063
          %v2065 = vmul.f32 %v2038, 1.442695
          %v2066 = vpow.pop %v2065
          %v2067 = vmul.f32 %v2039, 1.442695
          %v2068 = vpow.pop %v2067
          %v2069 = vmul.f32 %v2040, 1.442695
          %v2070 = vpow.pop %v2069
          %v2071 = vmul.f32 %v2041, 1.442695
          %v2072 = vpow.pop %v2071
          %v2073 = vmul.f32 %v2042, 1.442695
          %v2074 = vpow.pop %v2073
          %v2075 = vadd.f32 %v2044, 1.0
          %v2076 = vlog2.pop %v2075
          %v2077 = vmul.f32 %v2076, 0.6931472
          %v2078 = vmul.f32 -0.5, %v2044
          %v2079 = vadd.f32 %v2078, 1.0
          %v2080 = vmul.f32 %v2079, %v2044
          %v2081 = vand.u32 2147483647, %v2044
          %vm2082 = vcmp.lt.f32.partialorder %v2081, 0.0004427343
          %v2083 = vsel %vm2082, %v2080, %v2077
          %v2084 = vadd.f32 %v2046, 1.0
          %v2085 = vlog2.pop %v2084
          %v2086 = vmul.f32 %v2085, 0.6931472
          %v2087 = vmul.f32 -0.5, %v2046
          %v2088 = vadd.f32 %v2087, 1.0
          %v2089 = vmul.f32 %v2088, %v2046
          %v2090 = vand.u32 2147483647, %v2046
          %vm2091 = vcmp.lt.f32.partialorder %v2090, 0.0004427343
          %v2092 = vsel %vm2091, %v2089, %v2086
          %v2093 = vadd.f32 %v2048, 1.0
          %v2094 = vlog2.pop %v2093
          %v2095 = vmul.f32 %v2094, 0.6931472
          %v2096 = vmul.f32 -0.5, %v2048
          %v2097 = vadd.f32 %v2096, 1.0
          %v2098 = vmul.f32 %v2097, %v2048
          %v2099 = vand.u32 2147483647, %v2048
          %vm2100 = vcmp.lt.f32.partialorder %v2099, 0.0004427343
          %v2101 = vsel %vm2100, %v2098, %v2095
          %v2102 = vadd.f32 %v2050, 1.0
          %v2103 = vlog2.pop %v2102
          %v2104 = vmul.f32 %v2103, 0.6931472
          %v2105 = vmul.f32 -0.5, %v2050
          %v2106 = vadd.f32 %v2105, 1.0
          %v2107 = vmul.f32 %v2106, %v2050
          %v2108 = vand.u32 2147483647, %v2050
          %vm2109 = vcmp.lt.f32.partialorder %v2108, 0.0004427343
          %v2110 = vsel %vm2109, %v2107, %v2104
          %v2111 = vadd.f32 %v2052, 1.0
          %v2112 = vlog2.pop %v2111
          %v2113 = vmul.f32 %v2112, 0.6931472
          %v2114 = vmul.f32 -0.5, %v2052
          %v2115 = vadd.f32 %v2114, 1.0
          %v2116 = vmul.f32 %v2115, %v2052
          %v2117 = vand.u32 2147483647, %v2052
          %vm2118 = vcmp.lt.f32.partialorder %v2117, 0.0004427343
          %v2119 = vsel %vm2118, %v2116, %v2113
          %v2120 = vadd.f32 %v2054, 1.0
          %v2121 = vlog2.pop %v2120
          %v2122 = vmul.f32 %v2121, 0.6931472
          %v2123 = vmul.f32 -0.5, %v2054
          %v2124 = vadd.f32 %v2123, 1.0
          %v2125 = vmul.f32 %v2124, %v2054
          %v2126 = vand.u32 2147483647, %v2054
          %vm2127 = vcmp.lt.f32.partialorder %v2126, 0.0004427343
          %v2128 = vsel %vm2127, %v2125, %v2122
          %v2129 = vadd.f32 %v2056, 1.0
          %v2130 = vlog2.pop %v2129
          %v2131 = vmul.f32 %v2130, 0.6931472
          %v2132 = vmul.f32 -0.5, %v2056
          %v2133 = vadd.f32 %v2132, 1.0
          %v2134 = vmul.f32 %v2133, %v2056
          %v2135 = vand.u32 2147483647, %v2056
          %vm2136 = vcmp.lt.f32.partialorder %v2135, 0.0004427343
          %v2137 = vsel %vm2136, %v2134, %v2131
          %v2138 = vadd.f32 %v2058, 1.0
          %v2139 = vlog2.pop %v2138
          %v2140 = vmul.f32 %v2139, 0.6931472
          %v2141 = vmul.f32 -0.5, %v2058
          %v2142 = vadd.f32 %v2141, 1.0
          %v2143 = vmul.f32 %v2142, %v2058
          %v2144 = vand.u32 2147483647, %v2058
          %vm2145 = vcmp.lt.f32.partialorder %v2144, 0.0004427343
          %v2146 = vsel %vm2145, %v2143, %v2140
          %v2147 = vadd.f32 %v2060, 1.0
          %v2148 = vlog2.pop %v2147
          %v2149 = vmul.f32 %v2148, 0.6931472
          %v2150 = vmul.f32 -0.5, %v2060
          %v2151 = vadd.f32 %v2150, 1.0
          %v2152 = vmul.f32 %v2151, %v2060
          %v2153 = vand.u32 2147483647, %v2060
          %vm2154 = vcmp.lt.f32.partialorder %v2153, 0.0004427343
          %v2155 = vsel %vm2154, %v2152, %v2149
          %v2156 = vadd.f32 %v2062, 1.0
          %v2157 = vlog2.pop %v2156
          %v2158 = vmul.f32 %v2157, 0.6931472
          %v2159 = vmul.f32 -0.5, %v2062
          %v2160 = vadd.f32 %v2159, 1.0
          %v2161 = vmul.f32 %v2160, %v2062
          %v2162 = vand.u32 2147483647, %v2062
          %vm2163 = vcmp.lt.f32.partialorder %v2162, 0.0004427343
          %v2164 = vsel %vm2163, %v2161, %v2158
          %v2165 = vadd.f32 %v2064, 1.0
          %v2166 = vlog2.pop %v2165
          %v2167 = vmul.f32 %v2166, 0.6931472
          %v2168 = vmul.f32 -0.5, %v2064
          %v2169 = vadd.f32 %v2168, 1.0
          %v2170 = vmul.f32 %v2169, %v2064
          %v2171 = vand.u32 2147483647, %v2064
          %vm2172 = vcmp.lt.f32.partialorder %v2171, 0.0004427343
          %v2173 = vsel %vm2172, %v2170, %v2167
          %v2174 = vadd.f32 %v2066, 1.0
          %v2175 = vlog2.pop %v2174
          %v2176 = vmul.f32 %v2175, 0.6931472
          %v2177 = vmul.f32 -0.5, %v2066
          %v2178 = vadd.f32 %v2177, 1.0
          %v2179 = vmul.f32 %v2178, %v2066
          %v2180 = vand.u32 2147483647, %v2066
          %vm2181 = vcmp.lt.f32.partialorder %v2180, 0.0004427343
          %v2182 = vsel %vm2181, %v2179, %v2176
          %v2183 = vadd.f32 %v2068, 1.0
          %v2184 = vlog2.pop %v2183
          %v2185 = vmul.f32 %v2184, 0.6931472
          %v2186 = vmul.f32 -0.5, %v2068
          %v2187 = vadd.f32 %v2186, 1.0
          %v2188 = vmul.f32 %v2187, %v2068
          %v2189 = vand.u32 2147483647, %v2068
          %vm2190 = vcmp.lt.f32.partialorder %v2189, 0.0004427343
          %v2191 = vsel %vm2190, %v2188, %v2185
          %v2192 = vadd.f32 %v2070, 1.0
          %v2193 = vlog2.pop %v2192
          %v2194 = vmul.f32 %v2193, 0.6931472
          %v2195 = vmul.f32 -0.5, %v2070
          %v2196 = vadd.f32 %v2195, 1.0
          %v2197 = vmul.f32 %v2196, %v2070
          %v2198 = vand.u32 2147483647, %v2070
          %vm2199 = vcmp.lt.f32.partialorder %v2198, 0.0004427343
          %v2200 = vsel %vm2199, %v2197, %v2194
          %v2201 = vadd.f32 %v2072, 1.0
          %v2202 = vlog2.pop %v2201
          %v2203 = vmul.f32 %v2202, 0.6931472
          %v2204 = vmul.f32 -0.5, %v2072
          %v2205 = vadd.f32 %v2204, 1.0
          %v2206 = vmul.f32 %v2205, %v2072
          %v2207 = vand.u32 2147483647, %v2072
          %vm2208 = vcmp.lt.f32.partialorder %v2207, 0.0004427343
          %v2209 = vsel %vm2208, %v2206, %v2203
          %v2210 = vadd.f32 %v2074, 1.0
          %v2211 = vlog2.pop %v2210
          %v2212 = vmul.f32 %v2211, 0.6931472
          %v2213 = vmul.f32 -0.5, %v2074
          %v2214 = vadd.f32 %v2213, 1.0
          %v2215 = vmul.f32 %v2214, %v2074
          %v2216 = vand.u32 2147483647, %v2074
          %vm2217 = vcmp.lt.f32.partialorder %v2216, 0.0004427343
          %v2218 = vsel %vm2217, %v2215, %v2212
          %v2219 = vadd.f32 %v1995, %v2083
          %v2220 = vadd.f32 %v1996, %v2092
          %v2221 = vadd.f32 %v1997, %v2101
          %v2222 = vadd.f32 %v1998, %v2110
          %v2223 = vadd.f32 %v1999, %v2119
          %v2224 = vadd.f32 %v2000, %v2128
          %v2225 = vadd.f32 %v2001, %v2137
          %v2226 = vadd.f32 %v2002, %v2146
          %v2227 = vadd.f32 %v2003, %v2155
          %v2228 = vadd.f32 %v2004, %v2164
          %v2229 = vadd.f32 %v2005, %v2173
          %v2230 = vadd.f32 %v2006, %v2182
          %v2231 = vadd.f32 %v2007, %v2191
          %v2232 = vadd.f32 %v2008, %v2200
          %v2233 = vadd.f32 %v2009, %v2209
          %v2234 = vadd.f32 %v2010, %v2218
          %v2235 = vsub.f32 %v2219, 0.6931472
          %v2236 = vsub.f32 %v2220, 0.6931472
          %v2237 = vsub.f32 %v2221, 0.6931472
          %v2238 = vsub.f32 %v2222, 0.6931472
          %v2239 = vsub.f32 %v2223, 0.6931472
          %v2240 = vsub.f32 %v2224, 0.6931472
          %v2241 = vsub.f32 %v2225, 0.6931472
          %v2242 = vsub.f32 %v2226, 0.6931472
          %v2243 = vsub.f32 %v2227, 0.6931472
          %v2244 = vsub.f32 %v2228, 0.6931472
          %v2245 = vsub.f32 %v2229, 0.6931472
          %v2246 = vsub.f32 %v2230, 0.6931472
          %v2247 = vsub.f32 %v2231, 0.6931472
          %v2248 = vsub.f32 %v2232, 0.6931472
          %v2249 = vsub.f32 %v2233, 0.6931472
          %v2250 = vsub.f32 %v2234, 0.6931472
          %v2251 = vpack.c.bf16 %v2236, %v2235
          %v2252 = vpack.c.bf16 %v2238, %v2237
          %v2253 = vpack.c.bf16 %v2240, %v2239
          %v2254 = vpack.c.bf16 %v2242, %v2241
          %v2255 = vpack.c.bf16 %v2244, %v2243
          %v2256 = vpack.c.bf16 %v2246, %v2245
          %v2257 = vpack.c.bf16 %v2248, %v2247
          %v2258 = vpack.c.bf16 %v2250, %v2249
          %v2259 = vld [vmem:[#allocation13] sm:$0xf]
          %v2260 = vld [vmem:[#allocation13 + $0x4] sm:$0xf]
          %v2261 = vld [vmem:[#allocation13 + $0x8] sm:$0xf]
          %v2262 = vld [vmem:[#allocation13 + $0xc] sm:$0xf]
          %v2263 = vld [vmem:[#allocation13 + $0x10] sm:$0xf]
          %v2264 = vld [vmem:[#allocation13 + $0x14] sm:$0xf]
          %v2265 = vld [vmem:[#allocation13 + $0x18] sm:$0xf]
          %v2266 = vld [vmem:[#allocation13 + $0x1c] sm:$0xf]
          %v2267 = vld [vmem:[#allocation13 + $0x20] sm:$0xf]
          %v2268 = vld [vmem:[#allocation13 + $0x24] sm:$0xf]
          %v2269 = vld [vmem:[#allocation13 + $0x28] sm:$0xf]
          %v2270 = vld [vmem:[#allocation13 + $0x2c] sm:$0xf]
          %v2271 = vld [vmem:[#allocation13 + $0x30] sm:$0xf]
          %v2272 = vld [vmem:[#allocation13 + $0x34] sm:$0xf]
          %v2273 = vld [vmem:[#allocation13 + $0x38] sm:$0xf]
          %v2274 = vld [vmem:[#allocation13 + $0x3c] sm:$0xf]
          %v2275 = vld [vmem:[%s8] sm:$0x1]
          %v2277 = vlaneseq
          %v2278 = vshrl.u32 %v2277, 7
          %v2279 = vsub.s32 0, %v2278
          %v2280 = vrot.slane %v2275, %v2279
          %v2298 = vunpack.c.l.b16 %v2259
          %v2299 = vunpack.c.l.b16 %v2260
          %v2300 = vunpack.c.l.b16 %v2261
          %v2301 = vunpack.c.l.b16 %v2262
          %v2302 = vunpack.c.l.b16 %v2263
          %v2303 = vunpack.c.l.b16 %v2264
          %v2304 = vunpack.c.l.b16 %v2265
          %v2305 = vunpack.c.l.b16 %v2266
          %v2306 = vunpack.c.l.b16 %v2267
          %v2307 = vunpack.c.l.b16 %v2268
          %v2308 = vunpack.c.l.b16 %v2269
          %v2309 = vunpack.c.l.b16 %v2270
          %v2310 = vunpack.c.l.b16 %v2271
          %v2311 = vunpack.c.l.b16 %v2272
          %v2312 = vunpack.c.l.b16 %v2273
          %v2313 = vunpack.c.l.b16 %v2274
          %v2314 = vpack.c.b16 %v2299, %v2298
          %v2315 = vpack.c.b16 %v2301, %v2300
          %v2316 = vpack.c.b16 %v2303, %v2302
          %v2317 = vpack.c.b16 %v2305, %v2304
          %v2318 = vpack.c.b16 %v2307, %v2306
          %v2319 = vpack.c.b16 %v2309, %v2308
          %v2320 = vpack.c.b16 %v2311, %v2310
          %v2321 = vpack.c.b16 %v2313, %v2312
          %2330 = vmatprep.subr.bf16.mxu0 0
          %2331 = vmatpush1.bf16.msra.mxu0 %v2314
          %2332 = vmatprep.subr.bf16.mxu0 0
          %2333 = vmatpush1.bf16.msra.mxu0 %v2315
          %2334 = vmatprep.subr.bf16.mxu0 0
          %2335 = vmatpush1.bf16.msra.mxu0 %v2316
          %2336 = vmatprep.subr.bf16.mxu0 0
          %2337 = vmatpush1.bf16.msra.mxu0 %v2317
          %2338 = vmatprep.subr.bf16.mxu0 0
          %2339 = vmatpush1.bf16.msra.mxu0 %v2318
          %2340 = vmatprep.subr.bf16.mxu0 0
          %2341 = vmatpush1.bf16.msra.mxu0 %v2319
          %2342 = vmatprep.subr.bf16.mxu0 0
          %2343 = vmatpush1.bf16.msra.mxu0 %v2320
          %2344 = vmatprep.subr.bf16.mxu0 0
          %2345 = vmatpush1.bf16.msra.mxu0 %v2321
          %2346 = vmatprep.subr.bf16.mxu0 0
          %2347 = vmatpush1.bf16.msra.mxu0 0
          %2348 = vmatprep.subr.bf16.mxu0 0
          %2349 = vmatpush1.bf16.msra.mxu0 0
          %2350 = vmatprep.subr.bf16.mxu0 0
          %2351 = vmatpush1.bf16.msra.mxu0 0
          %2352 = vmatprep.subr.bf16.mxu0 0
          %2353 = vmatpush1.bf16.msra.mxu0 0
          %2354 = vmatprep.subr.bf16.mxu0 0
          %2355 = vmatpush1.bf16.msra.mxu0 0
          %2356 = vmatprep.subr.bf16.mxu0 0
          %2357 = vmatpush1.bf16.msra.mxu0 0
          %2358 = vmatprep.subr.bf16.mxu0 0
          %2359 = vmatpush1.bf16.msra.mxu0 0
          %2360 = vmatprep.subr.bf16.mxu0 0
          %2361 = vmatpush1.bf16.msra.mxu0 0
          %2362 = vmatprep.mubr.bf16.mxu0 0
          %2363 = vmatmul.mubr.bf16.gmra.mrb[0].mxu0 %v2251
          %v2364 = vpop.f32.mrb[0].mxu0
          %v2365 = vadd.f32 %v2280, %v2364
          %v2366 = vpop.f32.mrb[0].mxu0
          %v2367 = vpop.f32.mrb[0].mxu0
          %v2368 = vadd.f32 %v2280, %v2367
          %v2369 = vpop.f32.mrb[0].mxu0
          %2370 = vmatprep.mubr.bf16.mxu0 0
          %2371 = vmatmul.mubr.bf16.gmra.mrb[0].mxu0 %v2252
          %v2372 = vpop.f32.mrb[0].mxu0
          %v2373 = vadd.f32 %v2280, %v2372
          %v2374 = vpop.f32.mrb[0].mxu0
          %v2375 = vpop.f32.mrb[0].mxu0
          %v2376 = vadd.f32 %v2280, %v2375
          %v2377 = vpop.f32.mrb[0].mxu0
          %2378 = vmatprep.mubr.bf16.mxu0 0
          %2379 = vmatmul.mubr.bf16.gmra.mrb[0].mxu0 %v2253
          %v2380 = vpop.f32.mrb[0].mxu0
          %v2381 = vadd.f32 %v2280, %v2380
          %v2382 = vpop.f32.mrb[0].mxu0
          %v2383 = vpop.f32.mrb[0].mxu0
          %v2384 = vadd.f32 %v2280, %v2383
          %v2385 = vpop.f32.mrb[0].mxu0
          %2386 = vmatprep.mubr.bf16.mxu0 0
          %2387 = vmatmul.mubr.bf16.gmra.mrb[0].mxu0 %v2254
          %v2388 = vpop.f32.mrb[0].mxu0
          %v2389 = vadd.f32 %v2280, %v2388
          %v2390 = vpop.f32.mrb[0].mxu0
          %v2391 = vpop.f32.mrb[0].mxu0
          %v2392 = vadd.f32 %v2280, %v2391
          %v2393 = vpop.f32.mrb[0].mxu0
          %2394 = vmatprep.mubr.bf16.mxu0 0
          %2395 = vmatmul.mubr.bf16.gmra.mrb[0].mxu0 %v2255
          %v2396 = vpop.f32.mrb[0].mxu0
          %v2397 = vadd.f32 %v2280, %v2396
          %v2398 = vpop.f32.mrb[0].mxu0
          %v2399 = vpop.f32.mrb[0].mxu0
          %v2400 = vadd.f32 %v2280, %v2399
          %v2401 = vpop.f32.mrb[0].mxu0
          %2402 = vmatprep.mubr.bf16.mxu0 0
          %2403 = vmatmul.mubr.bf16.gmra.mrb[0].mxu0 %v2256
          %v2404 = vpop.f32.mrb[0].mxu0
          %v2405 = vadd.f32 %v2280, %v2404
          %v2406 = vpop.f32.mrb[0].mxu0
          %v2407 = vpop.f32.mrb[0].mxu0
          %v2408 = vadd.f32 %v2280, %v2407
          %v2409 = vpop.f32.mrb[0].mxu0
          %2410 = vmatprep.mubr.bf16.mxu0 0
          %2411 = vmatmul.mubr.bf16.gmra.mrb[0].mxu0 %v2257
          %v2412 = vpop.f32.mrb[0].mxu0
          %v2413 = vadd.f32 %v2280, %v2412
          %v2414 = vpop.f32.mrb[0].mxu0
          %v2415 = vpop.f32.mrb[0].mxu0
          %v2416 = vadd.f32 %v2280, %v2415
          %v2417 = vpop.f32.mrb[0].mxu0
          %2418 = vmatprep.mubr.bf16.mxu0 0
          %2419 = vmatmul.mubr.bf16.gmra.mrb[0].mxu0 %v2258
          %v2420 = vpop.f32.mrb[0].mxu0
          %v2421 = vadd.f32 %v2280, %v2420
          %v2422 = vpop.f32.mrb[0].mxu0
          %v2423 = vpop.f32.mrb[0].mxu0
          %v2424 = vadd.f32 %v2280, %v2423
          %v2425 = vpop.f32.mrb[0].mxu0
          %2426 = vdwg.mxu0
          %v2427 = vmax.f32 %v2365, 0.0
          %v2428 = vmax.f32 %v2368, 0.0
          %v2429 = vmax.f32 %v2373, 0.0
          %v2430 = vmax.f32 %v2376, 0.0
          %v2431 = vmax.f32 %v2381, 0.0
          %v2432 = vmax.f32 %v2384, 0.0
          %v2433 = vmax.f32 %v2389, 0.0
          %v2434 = vmax.f32 %v2392, 0.0
          %v2435 = vmax.f32 %v2397, 0.0
          %v2436 = vmax.f32 %v2400, 0.0
          %v2437 = vmax.f32 %v2405, 0.0
          %v2438 = vmax.f32 %v2408, 0.0
          %v2439 = vmax.f32 %v2413, 0.0
          %v2440 = vmax.f32 %v2416, 0.0
          %v2441 = vmax.f32 %v2421, 0.0
          %v2442 = vmax.f32 %v2424, 0.0
          %v2443 = vand.u32 2147483647, %v2365
          %v2444 = vand.u32 2147483647, %v2368
          %v2445 = vand.u32 2147483647, %v2373
          %v2446 = vand.u32 2147483647, %v2376
          %v2447 = vand.u32 2147483647, %v2381
          %v2448 = vand.u32 2147483647, %v2384
          %v2449 = vand.u32 2147483647, %v2389
          %v2450 = vand.u32 2147483647, %v2392
          %v2451 = vand.u32 2147483647, %v2397
          %v2452 = vand.u32 2147483647, %v2400
          %v2453 = vand.u32 2147483647, %v2405
          %v2454 = vand.u32 2147483647, %v2408
          %v2455 = vand.u32 2147483647, %v2413
          %v2456 = vand.u32 2147483647, %v2416
          %v2457 = vand.u32 2147483647, %v2421
          %v2458 = vand.u32 2147483647, %v2424
          %v2459 = vsub.f32 0.0, %v2443
          %v2460 = vsub.f32 0.0, %v2444
          %v2461 = vsub.f32 0.0, %v2445
          %v2462 = vsub.f32 0.0, %v2446
          %v2463 = vsub.f32 0.0, %v2447
          %v2464 = vsub.f32 0.0, %v2448
          %v2465 = vsub.f32 0.0, %v2449
          %v2466 = vsub.f32 0.0, %v2450
          %v2467 = vsub.f32 0.0, %v2451
          %v2468 = vsub.f32 0.0, %v2452
          %v2469 = vsub.f32 0.0, %v2453
          %v2470 = vsub.f32 0.0, %v2454
          %v2471 = vsub.f32 0.0, %v2455
          %v2472 = vsub.f32 0.0, %v2456
          %v2473 = vsub.f32 0.0, %v2457
          %v2474 = vsub.f32 0.0, %v2458
          %v2475 = vmul.f32 %v2459, 1.442695
          %v2476 = vpow.pop %v2475
          %v2477 = vmul.f32 %v2460, 1.442695
          %v2478 = vpow.pop %v2477
          %v2479 = vmul.f32 %v2461, 1.442695
          %v2480 = vpow.pop %v2479
          %v2481 = vmul.f32 %v2462, 1.442695
          %v2482 = vpow.pop %v2481
          %v2483 = vmul.f32 %v2463, 1.442695
          %v2484 = vpow.pop %v2483
          %v2485 = vmul.f32 %v2464, 1.442695
          %v2486 = vpow.pop %v2485
          %v2487 = vmul.f32 %v2465, 1.442695
          %v2488 = vpow.pop %v2487
          %v2489 = vmul.f32 %v2466, 1.442695
          %v2490 = vpow.pop %v2489
          %v2491 = vmul.f32 %v2467, 1.442695
          %v2492 = vpow.pop %v2491
          %v2493 = vmul.f32 %v2468, 1.442695
          %v2494 = vpow.pop %v2493
          %v2495 = vmul.f32 %v2469, 1.442695
          %v2496 = vpow.pop %v2495
          %v2497 = vmul.f32 %v2470, 1.442695
          %v2498 = vpow.pop %v2497
          %v2499 = vmul.f32 %v2471, 1.442695
          %v2500 = vpow.pop %v2499
          %v2501 = vmul.f32 %v2472, 1.442695
          %v2502 = vpow.pop %v2501
          %v2503 = vmul.f32 %v2473, 1.442695
          %v2504 = vpow.pop %v2503
          %v2505 = vmul.f32 %v2474, 1.442695
          %v2506 = vpow.pop %v2505
          %v2507 = vadd.f32 %v2476, 1.0
          %v2508 = vlog2.pop %v2507
          %v2509 = vmul.f32 %v2508, 0.6931472
          %v2510 = vmul.f32 -0.5, %v2476
          %v2511 = vadd.f32 %v2510, 1.0
          %v2512 = vmul.f32 %v2511, %v2476
          %v2513 = vand.u32 2147483647, %v2476
          %vm2514 = vcmp.lt.f32.partialorder %v2513, 0.0004427343
          %v2515 = vsel %vm2514, %v2512, %v2509
          %v2516 = vadd.f32 %v2478, 1.0
          %v2517 = vlog2.pop %v2516
          %v2518 = vmul.f32 %v2517, 0.6931472
          %v2519 = vmul.f32 -0.5, %v2478
          %v2520 = vadd.f32 %v2519, 1.0
          %v2521 = vmul.f32 %v2520, %v2478
          %v2522 = vand.u32 2147483647, %v2478
          %vm2523 = vcmp.lt.f32.partialorder %v2522, 0.0004427343
          %v2524 = vsel %vm2523, %v2521, %v2518
          %v2525 = vadd.f32 %v2480, 1.0
          %v2526 = vlog2.pop %v2525
          %v2527 = vmul.f32 %v2526, 0.6931472
          %v2528 = vmul.f32 -0.5, %v2480
          %v2529 = vadd.f32 %v2528, 1.0
          %v2530 = vmul.f32 %v2529, %v2480
          %v2531 = vand.u32 2147483647, %v2480
          %vm2532 = vcmp.lt.f32.partialorder %v2531, 0.0004427343
          %v2533 = vsel %vm2532, %v2530, %v2527
          %v2534 = vadd.f32 %v2482, 1.0
          %v2535 = vlog2.pop %v2534
          %v2536 = vmul.f32 %v2535, 0.6931472
          %v2537 = vmul.f32 -0.5, %v2482
          %v2538 = vadd.f32 %v2537, 1.0
          %v2539 = vmul.f32 %v2538, %v2482
          %v2540 = vand.u32 2147483647, %v2482
          %vm2541 = vcmp.lt.f32.partialorder %v2540, 0.0004427343
          %v2542 = vsel %vm2541, %v2539, %v2536
          %v2543 = vadd.f32 %v2484, 1.0
          %v2544 = vlog2.pop %v2543
          %v2545 = vmul.f32 %v2544, 0.6931472
          %v2546 = vmul.f32 -0.5, %v2484
          %v2547 = vadd.f32 %v2546, 1.0
          %v2548 = vmul.f32 %v2547, %v2484
          %v2549 = vand.u32 2147483647, %v2484
          %vm2550 = vcmp.lt.f32.partialorder %v2549, 0.0004427343
          %v2551 = vsel %vm2550, %v2548, %v2545
          %v2552 = vadd.f32 %v2486, 1.0
          %v2553 = vlog2.pop %v2552
          %v2554 = vmul.f32 %v2553, 0.6931472
          %v2555 = vmul.f32 -0.5, %v2486
          %v2556 = vadd.f32 %v2555, 1.0
          %v2557 = vmul.f32 %v2556, %v2486
          %v2558 = vand.u32 2147483647, %v2486
          %vm2559 = vcmp.lt.f32.partialorder %v2558, 0.0004427343
          %v2560 = vsel %vm2559, %v2557, %v2554
          %v2561 = vadd.f32 %v2488, 1.0
          %v2562 = vlog2.pop %v2561
          %v2563 = vmul.f32 %v2562, 0.6931472
          %v2564 = vmul.f32 -0.5, %v2488
          %v2565 = vadd.f32 %v2564, 1.0
          %v2566 = vmul.f32 %v2565, %v2488
          %v2567 = vand.u32 2147483647, %v2488
          %vm2568 = vcmp.lt.f32.partialorder %v2567, 0.0004427343
          %v2569 = vsel %vm2568, %v2566, %v2563
          %v2570 = vadd.f32 %v2490, 1.0
          %v2571 = vlog2.pop %v2570
          %v2572 = vmul.f32 %v2571, 0.6931472
          %v2573 = vmul.f32 -0.5, %v2490
          %v2574 = vadd.f32 %v2573, 1.0
          %v2575 = vmul.f32 %v2574, %v2490
          %v2576 = vand.u32 2147483647, %v2490
          %vm2577 = vcmp.lt.f32.partialorder %v2576, 0.0004427343
          %v2578 = vsel %vm2577, %v2575, %v2572
          %v2579 = vadd.f32 %v2492, 1.0
          %v2580 = vlog2.pop %v2579
          %v2581 = vmul.f32 %v2580, 0.6931472
          %v2582 = vmul.f32 -0.5, %v2492
          %v2583 = vadd.f32 %v2582, 1.0
          %v2584 = vmul.f32 %v2583, %v2492
          %v2585 = vand.u32 2147483647, %v2492
          %vm2586 = vcmp.lt.f32.partialorder %v2585, 0.0004427343
          %v2587 = vsel %vm2586, %v2584, %v2581
          %v2588 = vadd.f32 %v2494, 1.0
          %v2589 = vlog2.pop %v2588
          %v2590 = vmul.f32 %v2589, 0.6931472
          %v2591 = vmul.f32 -0.5, %v2494
          %v2592 = vadd.f32 %v2591, 1.0
          %v2593 = vmul.f32 %v2592, %v2494
          %v2594 = vand.u32 2147483647, %v2494
          %vm2595 = vcmp.lt.f32.partialorder %v2594, 0.0004427343
          %v2596 = vsel %vm2595, %v2593, %v2590
          %v2597 = vadd.f32 %v2496, 1.0
          %v2598 = vlog2.pop %v2597
          %v2599 = vmul.f32 %v2598, 0.6931472
          %v2600 = vmul.f32 -0.5, %v2496
          %v2601 = vadd.f32 %v2600, 1.0
          %v2602 = vmul.f32 %v2601, %v2496
          %v2603 = vand.u32 2147483647, %v2496
          %vm2604 = vcmp.lt.f32.partialorder %v2603, 0.0004427343
          %v2605 = vsel %vm2604, %v2602, %v2599
          %v2606 = vadd.f32 %v2498, 1.0
          %v2607 = vlog2.pop %v2606
          %v2608 = vmul.f32 %v2607, 0.6931472
          %v2609 = vmul.f32 -0.5, %v2498
          %v2610 = vadd.f32 %v2609, 1.0
          %v2611 = vmul.f32 %v2610, %v2498
          %v2612 = vand.u32 2147483647, %v2498
          %vm2613 = vcmp.lt.f32.partialorder %v2612, 0.0004427343
          %v2614 = vsel %vm2613, %v2611, %v2608
          %v2615 = vadd.f32 %v2500, 1.0
          %v2616 = vlog2.pop %v2615
          %v2617 = vmul.f32 %v2616, 0.6931472
          %v2618 = vmul.f32 -0.5, %v2500
          %v2619 = vadd.f32 %v2618, 1.0
          %v2620 = vmul.f32 %v2619, %v2500
          %v2621 = vand.u32 2147483647, %v2500
          %vm2622 = vcmp.lt.f32.partialorder %v2621, 0.0004427343
          %v2623 = vsel %vm2622, %v2620, %v2617
          %v2624 = vadd.f32 %v2502, 1.0
          %v2625 = vlog2.pop %v2624
          %v2626 = vmul.f32 %v2625, 0.6931472
          %v2627 = vmul.f32 -0.5, %v2502
          %v2628 = vadd.f32 %v2627, 1.0
          %v2629 = vmul.f32 %v2628, %v2502
          %v2630 = vand.u32 2147483647, %v2502
          %vm2631 = vcmp.lt.f32.partialorder %v2630, 0.0004427343
          %v2632 = vsel %vm2631, %v2629, %v2626
          %v2633 = vadd.f32 %v2504, 1.0
          %v2634 = vlog2.pop %v2633
          %v2635 = vmul.f32 %v2634, 0.6931472
          %v2636 = vmul.f32 -0.5, %v2504
          %v2637 = vadd.f32 %v2636, 1.0
          %v2638 = vmul.f32 %v2637, %v2504
          %v2639 = vand.u32 2147483647, %v2504
          %vm2640 = vcmp.lt.f32.partialorder %v2639, 0.0004427343
          %v2641 = vsel %vm2640, %v2638, %v2635
          %v2642 = vadd.f32 %v2506, 1.0
          %v2643 = vlog2.pop %v2642
          %v2644 = vmul.f32 %v2643, 0.6931472
          %v2645 = vmul.f32 -0.5, %v2506
          %v2646 = vadd.f32 %v2645, 1.0
          %v2647 = vmul.f32 %v2646, %v2506
          %v2648 = vand.u32 2147483647, %v2506
          %vm2649 = vcmp.lt.f32.partialorder %v2648, 0.0004427343
          %v2650 = vsel %vm2649, %v2647, %v2644
          %v2651 = vadd.f32 %v2427, %v2515
          %v2652 = vadd.f32 %v2428, %v2524
          %v2653 = vadd.f32 %v2429, %v2533
          %v2654 = vadd.f32 %v2430, %v2542
          %v2655 = vadd.f32 %v2431, %v2551
          %v2656 = vadd.f32 %v2432, %v2560
          %v2657 = vadd.f32 %v2433, %v2569
          %v2658 = vadd.f32 %v2434, %v2578
          %v2659 = vadd.f32 %v2435, %v2587
          %v2660 = vadd.f32 %v2436, %v2596
          %v2661 = vadd.f32 %v2437, %v2605
          %v2662 = vadd.f32 %v2438, %v2614
          %v2663 = vadd.f32 %v2439, %v2623
          %v2664 = vadd.f32 %v2440, %v2632
          %v2665 = vadd.f32 %v2441, %v2641
          %v2666 = vadd.f32 %v2442, %v2650
          %v2667 = vsub.f32 %v2651, 0.6931472
          %v2668 = vsub.f32 %v2652, 0.6931472
          %v2669 = vsub.f32 %v2653, 0.6931472
          %v2670 = vsub.f32 %v2654, 0.6931472
          %v2671 = vsub.f32 %v2655, 0.6931472
          %v2672 = vsub.f32 %v2656, 0.6931472
          %v2673 = vsub.f32 %v2657, 0.6931472
          %v2674 = vsub.f32 %v2658, 0.6931472
          %v2675 = vsub.f32 %v2659, 0.6931472
          %v2676 = vsub.f32 %v2660, 0.6931472
          %v2677 = vsub.f32 %v2661, 0.6931472
          %v2678 = vsub.f32 %v2662, 0.6931472
          %v2679 = vsub.f32 %v2663, 0.6931472
          %v2680 = vsub.f32 %v2664, 0.6931472
          %v2681 = vsub.f32 %v2665, 0.6931472
          %v2682 = vsub.f32 %v2666, 0.6931472
          %v2683 = vld [vmem:[#allocation2] sm:$0xff]
          %v2684 = vld [vmem:[#allocation2 + $0x8] sm:$0xff]
          %v2685 = vld [vmem:[#allocation2 + $0x10] sm:$0xff]
          %v2686 = vld [vmem:[#allocation2 + $0x18] sm:$0xff]
          %v2687 = vld [vmem:[#allocation2 + $0x20] sm:$0xff]
          %v2688 = vld [vmem:[#allocation2 + $0x28] sm:$0xff]
          %v2689 = vld [vmem:[#allocation2 + $0x30] sm:$0xff]
          %v2690 = vld [vmem:[#allocation2 + $0x38] sm:$0xff]
          %v2691 = vld [vmem:[#allocation2 + $0x40] sm:$0xff]
          %v2692 = vld [vmem:[#allocation2 + $0x48] sm:$0xff]
          %v2693 = vld [vmem:[#allocation2 + $0x50] sm:$0xff]
          %v2694 = vld [vmem:[#allocation2 + $0x58] sm:$0xff]
          %v2695 = vld [vmem:[#allocation2 + $0x60] sm:$0xff]
          %v2696 = vld [vmem:[#allocation2 + $0x68] sm:$0xff]
          %v2697 = vld [vmem:[#allocation2 + $0x70] sm:$0xff]
          %v2698 = vld [vmem:[#allocation2 + $0x78] sm:$0xff]
          %v2699 = vadd.f32 %v2667, %v2683
          %v2700 = vadd.f32 %v2668, %v2684
          %v2701 = vadd.f32 %v2669, %v2685
          %v2702 = vadd.f32 %v2670, %v2686
          %v2703 = vadd.f32 %v2671, %v2687
          %v2704 = vadd.f32 %v2672, %v2688
          %v2705 = vadd.f32 %v2673, %v2689
          %v2706 = vadd.f32 %v2674, %v2690
          %v2707 = vadd.f32 %v2675, %v2691
          %v2708 = vadd.f32 %v2676, %v2692
          %v2709 = vadd.f32 %v2677, %v2693
          %v2710 = vadd.f32 %v2678, %v2694
          %v2711 = vadd.f32 %v2679, %v2695
          %v2712 = vadd.f32 %v2680, %v2696
          %v2713 = vadd.f32 %v2681, %v2697
          %v2714 = vadd.f32 %v2682, %v2698
          %2715 = vst [vmem:[#allocation21] sm:$0xff] %v2699
          %2716 = vst [vmem:[#allocation21 + $0x8] sm:$0xff] %v2700
          %2717 = vst [vmem:[#allocation21 + $0x10] sm:$0xff] %v2701
          %2718 = vst [vmem:[#allocation21 + $0x18] sm:$0xff] %v2702
          %2719 = vst [vmem:[#allocation21 + $0x20] sm:$0xff] %v2703
          %2720 = vst [vmem:[#allocation21 + $0x28] sm:$0xff] %v2704
          %2721 = vst [vmem:[#allocation21 + $0x30] sm:$0xff] %v2705
          %2722 = vst [vmem:[#allocation21 + $0x38] sm:$0xff] %v2706
          %2723 = vst [vmem:[#allocation21 + $0x40] sm:$0xff] %v2707
          %2724 = vst [vmem:[#allocation21 + $0x48] sm:$0xff] %v2708
          %2725 = vst [vmem:[#allocation21 + $0x50] sm:$0xff] %v2709
          %2726 = vst [vmem:[#allocation21 + $0x58] sm:$0xff] %v2710
          %2727 = vst [vmem:[#allocation21 + $0x60] sm:$0xff] %v2711
          %2728 = vst [vmem:[#allocation21 + $0x68] sm:$0xff] %v2712
          %2729 = vst [vmem:[#allocation21 + $0x70] sm:$0xff] %v2713
          %2730 = vst [vmem:[#allocation21 + $0x78] sm:$0xff] %v2714
          %v2731 = vmax.f32 %v2699, 0.0
          %v2732 = vmax.f32 %v2700, 0.0
          %v2733 = vmax.f32 %v2701, 0.0
          %v2734 = vmax.f32 %v2702, 0.0
          %v2735 = vmax.f32 %v2703, 0.0
          %v2736 = vmax.f32 %v2704, 0.0
          %v2737 = vmax.f32 %v2705, 0.0
          %v2738 = vmax.f32 %v2706, 0.0
          %v2739 = vmax.f32 %v2707, 0.0
          %v2740 = vmax.f32 %v2708, 0.0
          %v2741 = vmax.f32 %v2709, 0.0
          %v2742 = vmax.f32 %v2710, 0.0
          %v2743 = vmax.f32 %v2711, 0.0
          %v2744 = vmax.f32 %v2712, 0.0
          %v2745 = vmax.f32 %v2713, 0.0
          %v2746 = vmax.f32 %v2714, 0.0
          %v2747 = vand.u32 2147483647, %v2699
          %v2748 = vand.u32 2147483647, %v2700
          %v2749 = vand.u32 2147483647, %v2701
          %v2750 = vand.u32 2147483647, %v2702
          %v2751 = vand.u32 2147483647, %v2703
          %v2752 = vand.u32 2147483647, %v2704
          %v2753 = vand.u32 2147483647, %v2705
          %v2754 = vand.u32 2147483647, %v2706
          %v2755 = vand.u32 2147483647, %v2707
          %v2756 = vand.u32 2147483647, %v2708
          %v2757 = vand.u32 2147483647, %v2709
          %v2758 = vand.u32 2147483647, %v2710
          %v2759 = vand.u32 2147483647, %v2711
          %v2760 = vand.u32 2147483647, %v2712
          %v2761 = vand.u32 2147483647, %v2713
          %v2762 = vand.u32 2147483647, %v2714
          %v2763 = vsub.f32 0.0, %v2747
          %v2764 = vsub.f32 0.0, %v2748
          %v2765 = vsub.f32 0.0, %v2749
          %v2766 = vsub.f32 0.0, %v2750
          %v2767 = vsub.f32 0.0, %v2751
          %v2768 = vsub.f32 0.0, %v2752
          %v2769 = vsub.f32 0.0, %v2753
          %v2770 = vsub.f32 0.0, %v2754
          %v2771 = vsub.f32 0.0, %v2755
          %v2772 = vsub.f32 0.0, %v2756
          %v2773 = vsub.f32 0.0, %v2757
          %v2774 = vsub.f32 0.0, %v2758
          %v2775 = vsub.f32 0.0, %v2759
          %v2776 = vsub.f32 0.0, %v2760
          %v2777 = vsub.f32 0.0, %v2761
          %v2778 = vsub.f32 0.0, %v2762
          %v2779 = vmul.f32 %v2763, 1.442695
          %v2780 = vpow.pop %v2779
          %v2781 = vmul.f32 %v2764, 1.442695
          %v2782 = vpow.pop %v2781
          %v2783 = vmul.f32 %v2765, 1.442695
          %v2784 = vpow.pop %v2783
          %v2785 = vmul.f32 %v2766, 1.442695
          %v2786 = vpow.pop %v2785
          %v2787 = vmul.f32 %v2767, 1.442695
          %v2788 = vpow.pop %v2787
          %v2789 = vmul.f32 %v2768, 1.442695
          %v2790 = vpow.pop %v2789
          %v2791 = vmul.f32 %v2769, 1.442695
          %v2792 = vpow.pop %v2791
          %v2793 = vmul.f32 %v2770, 1.442695
          %v2794 = vpow.pop %v2793
          %v2795 = vmul.f32 %v2771, 1.442695
          %v2796 = vpow.pop %v2795
          %v2797 = vmul.f32 %v2772, 1.442695
          %v2798 = vpow.pop %v2797
          %v2799 = vmul.f32 %v2773, 1.442695
          %v2800 = vpow.pop %v2799
          %v2801 = vmul.f32 %v2774, 1.442695
          %v2802 = vpow.pop %v2801
          %v2803 = vmul.f32 %v2775, 1.442695
          %v2804 = vpow.pop %v2803
          %v2805 = vmul.f32 %v2776, 1.442695
          %v2806 = vpow.pop %v2805
          %v2807 = vmul.f32 %v2777, 1.442695
          %v2808 = vpow.pop %v2807
          %v2809 = vmul.f32 %v2778, 1.442695
          %v2810 = vpow.pop %v2809
          %v2811 = vadd.f32 %v2780, 1.0
          %v2812 = vlog2.pop %v2811
          %v2813 = vmul.f32 %v2812, 0.6931472
          %v2814 = vmul.f32 -0.5, %v2780
          %v2815 = vadd.f32 %v2814, 1.0
          %v2816 = vmul.f32 %v2815, %v2780
          %v2817 = vand.u32 2147483647, %v2780
          %vm2818 = vcmp.lt.f32.partialorder %v2817, 0.0004427343
          %v2819 = vsel %vm2818, %v2816, %v2813
          %v2820 = vadd.f32 %v2782, 1.0
          %v2821 = vlog2.pop %v2820
          %v2822 = vmul.f32 %v2821, 0.6931472
          %v2823 = vmul.f32 -0.5, %v2782
          %v2824 = vadd.f32 %v2823, 1.0
          %v2825 = vmul.f32 %v2824, %v2782
          %v2826 = vand.u32 2147483647, %v2782
          %vm2827 = vcmp.lt.f32.partialorder %v2826, 0.0004427343
          %v2828 = vsel %vm2827, %v2825, %v2822
          %v2829 = vadd.f32 %v2784, 1.0
          %v2830 = vlog2.pop %v2829
          %v2831 = vmul.f32 %v2830, 0.6931472
          %v2832 = vmul.f32 -0.5, %v2784
          %v2833 = vadd.f32 %v2832, 1.0
          %v2834 = vmul.f32 %v2833, %v2784
          %v2835 = vand.u32 2147483647, %v2784
          %vm2836 = vcmp.lt.f32.partialorder %v2835, 0.0004427343
          %v2837 = vsel %vm2836, %v2834, %v2831
          %v2838 = vadd.f32 %v2786, 1.0
          %v2839 = vlog2.pop %v2838
          %v2840 = vmul.f32 %v2839, 0.6931472
          %v2841 = vmul.f32 -0.5, %v2786
          %v2842 = vadd.f32 %v2841, 1.0
          %v2843 = vmul.f32 %v2842, %v2786
          %v2844 = vand.u32 2147483647, %v2786
          %vm2845 = vcmp.lt.f32.partialorder %v2844, 0.0004427343
          %v2846 = vsel %vm2845, %v2843, %v2840
          %v2847 = vadd.f32 %v2788, 1.0
          %v2848 = vlog2.pop %v2847
          %v2849 = vmul.f32 %v2848, 0.6931472
          %v2850 = vmul.f32 -0.5, %v2788
          %v2851 = vadd.f32 %v2850, 1.0
          %v2852 = vmul.f32 %v2851, %v2788
          %v2853 = vand.u32 2147483647, %v2788
          %vm2854 = vcmp.lt.f32.partialorder %v2853, 0.0004427343
          %v2855 = vsel %vm2854, %v2852, %v2849
          %v2856 = vadd.f32 %v2790, 1.0
          %v2857 = vlog2.pop %v2856
          %v2858 = vmul.f32 %v2857, 0.6931472
          %v2859 = vmul.f32 -0.5, %v2790
          %v2860 = vadd.f32 %v2859, 1.0
          %v2861 = vmul.f32 %v2860, %v2790
          %v2862 = vand.u32 2147483647, %v2790
          %vm2863 = vcmp.lt.f32.partialorder %v2862, 0.0004427343
          %v2864 = vsel %vm2863, %v2861, %v2858
          %v2865 = vadd.f32 %v2792, 1.0
          %v2866 = vlog2.pop %v2865
          %v2867 = vmul.f32 %v2866, 0.6931472
          %v2868 = vmul.f32 -0.5, %v2792
          %v2869 = vadd.f32 %v2868, 1.0
          %v2870 = vmul.f32 %v2869, %v2792
          %v2871 = vand.u32 2147483647, %v2792
          %vm2872 = vcmp.lt.f32.partialorder %v2871, 0.0004427343
          %v2873 = vsel %vm2872, %v2870, %v2867
          %v2874 = vadd.f32 %v2794, 1.0
          %v2875 = vlog2.pop %v2874
          %v2876 = vmul.f32 %v2875, 0.6931472
          %v2877 = vmul.f32 -0.5, %v2794
          %v2878 = vadd.f32 %v2877, 1.0
          %v2879 = vmul.f32 %v2878, %v2794
          %v2880 = vand.u32 2147483647, %v2794
          %vm2881 = vcmp.lt.f32.partialorder %v2880, 0.0004427343
          %v2882 = vsel %vm2881, %v2879, %v2876
          %v2883 = vadd.f32 %v2796, 1.0
          %v2884 = vlog2.pop %v2883
          %v2885 = vmul.f32 %v2884, 0.6931472
          %v2886 = vmul.f32 -0.5, %v2796
          %v2887 = vadd.f32 %v2886, 1.0
          %v2888 = vmul.f32 %v2887, %v2796
          %v2889 = vand.u32 2147483647, %v2796
          %vm2890 = vcmp.lt.f32.partialorder %v2889, 0.0004427343
          %v2891 = vsel %vm2890, %v2888, %v2885
          %v2892 = vadd.f32 %v2798, 1.0
          %v2893 = vlog2.pop %v2892
          %v2894 = vmul.f32 %v2893, 0.6931472
          %v2895 = vmul.f32 -0.5, %v2798
          %v2896 = vadd.f32 %v2895, 1.0
          %v2897 = vmul.f32 %v2896, %v2798
          %v2898 = vand.u32 2147483647, %v2798
          %vm2899 = vcmp.lt.f32.partialorder %v2898, 0.0004427343
          %v2900 = vsel %vm2899, %v2897, %v2894
          %v2901 = vadd.f32 %v2800, 1.0
          %v2902 = vlog2.pop %v2901
          %v2903 = vmul.f32 %v2902, 0.6931472
          %v2904 = vmul.f32 -0.5, %v2800
          %v2905 = vadd.f32 %v2904, 1.0
          %v2906 = vmul.f32 %v2905, %v2800
          %v2907 = vand.u32 2147483647, %v2800
          %vm2908 = vcmp.lt.f32.partialorder %v2907, 0.0004427343
          %v2909 = vsel %vm2908, %v2906, %v2903
          %v2910 = vadd.f32 %v2802, 1.0
          %v2911 = vlog2.pop %v2910
          %v2912 = vmul.f32 %v2911, 0.6931472
          %v2913 = vmul.f32 -0.5, %v2802
          %v2914 = vadd.f32 %v2913, 1.0
          %v2915 = vmul.f32 %v2914, %v2802
          %v2916 = vand.u32 2147483647, %v2802
          %vm2917 = vcmp.lt.f32.partialorder %v2916, 0.0004427343
          %v2918 = vsel %vm2917, %v2915, %v2912
          %v2919 = vadd.f32 %v2804, 1.0
          %v2920 = vlog2.pop %v2919
          %v2921 = vmul.f32 %v2920, 0.6931472
          %v2922 = vmul.f32 -0.5, %v2804
          %v2923 = vadd.f32 %v2922, 1.0
          %v2924 = vmul.f32 %v2923, %v2804
          %v2925 = vand.u32 2147483647, %v2804
          %vm2926 = vcmp.lt.f32.partialorder %v2925, 0.0004427343
          %v2927 = vsel %vm2926, %v2924, %v2921
          %v2928 = vadd.f32 %v2806, 1.0
          %v2929 = vlog2.pop %v2928
          %v2930 = vmul.f32 %v2929, 0.6931472
          %v2931 = vmul.f32 -0.5, %v2806
          %v2932 = vadd.f32 %v2931, 1.0
          %v2933 = vmul.f32 %v2932, %v2806
          %v2934 = vand.u32 2147483647, %v2806
          %vm2935 = vcmp.lt.f32.partialorder %v2934, 0.0004427343
          %v2936 = vsel %vm2935, %v2933, %v2930
          %v2937 = vadd.f32 %v2808, 1.0
          %v2938 = vlog2.pop %v2937
          %v2939 = vmul.f32 %v2938, 0.6931472
          %v2940 = vmul.f32 -0.5, %v2808
          %v2941 = vadd.f32 %v2940, 1.0
          %v2942 = vmul.f32 %v2941, %v2808
          %v2943 = vand.u32 2147483647, %v2808
          %vm2944 = vcmp.lt.f32.partialorder %v2943, 0.0004427343
          %v2945 = vsel %vm2944, %v2942, %v2939
          %v2946 = vadd.f32 %v2810, 1.0
          %v2947 = vlog2.pop %v2946
          %v2948 = vmul.f32 %v2947, 0.6931472
          %v2949 = vmul.f32 -0.5, %v2810
          %v2950 = vadd.f32 %v2949, 1.0
          %v2951 = vmul.f32 %v2950, %v2810
          %v2952 = vand.u32 2147483647, %v2810
          %vm2953 = vcmp.lt.f32.partialorder %v2952, 0.0004427343
          %v2954 = vsel %vm2953, %v2951, %v2948
          %v2955 = vadd.f32 %v2731, %v2819
          %v2956 = vadd.f32 %v2732, %v2828
          %v2957 = vadd.f32 %v2733, %v2837
          %v2958 = vadd.f32 %v2734, %v2846
          %v2959 = vadd.f32 %v2735, %v2855
          %v2960 = vadd.f32 %v2736, %v2864
          %v2961 = vadd.f32 %v2737, %v2873
          %v2962 = vadd.f32 %v2738, %v2882
          %v2963 = vadd.f32 %v2739, %v2891
          %v2964 = vadd.f32 %v2740, %v2900
          %v2965 = vadd.f32 %v2741, %v2909
          %v2966 = vadd.f32 %v2742, %v2918
          %v2967 = vadd.f32 %v2743, %v2927
          %v2968 = vadd.f32 %v2744, %v2936
          %v2969 = vadd.f32 %v2745, %v2945
          %v2970 = vadd.f32 %v2746, %v2954
          %v2971 = vsub.f32 %v2955, 0.6931472
          %v2972 = vsub.f32 %v2956, 0.6931472
          %v2973 = vsub.f32 %v2957, 0.6931472
          %v2974 = vsub.f32 %v2958, 0.6931472
          %v2975 = vsub.f32 %v2959, 0.6931472
          %v2976 = vsub.f32 %v2960, 0.6931472
          %v2977 = vsub.f32 %v2961, 0.6931472
          %v2978 = vsub.f32 %v2962, 0.6931472
          %v2979 = vsub.f32 %v2963, 0.6931472
          %v2980 = vsub.f32 %v2964, 0.6931472
          %v2981 = vsub.f32 %v2965, 0.6931472
          %v2982 = vsub.f32 %v2966, 0.6931472
          %v2983 = vsub.f32 %v2967, 0.6931472
          %v2984 = vsub.f32 %v2968, 0.6931472
          %v2985 = vsub.f32 %v2969, 0.6931472
          %v2986 = vsub.f32 %v2970, 0.6931472
          %v2987 = vpack.c.bf16 %v2972, %v2971
          %v2988 = vpack.c.bf16 %v2974, %v2973
          %v2989 = vpack.c.bf16 %v2976, %v2975
          %v2990 = vpack.c.bf16 %v2978, %v2977
          %v2991 = vpack.c.bf16 %v2980, %v2979
          %v2992 = vpack.c.bf16 %v2982, %v2981
          %v2993 = vpack.c.bf16 %v2984, %v2983
          %v2994 = vpack.c.bf16 %v2986, %v2985
          %v2995 = vld [vmem:[#allocation16] sm:$0xf]
          %v2996 = vld [vmem:[#allocation16 + $0x4] sm:$0xf]
          %v2997 = vld [vmem:[#allocation16 + $0x8] sm:$0xf]
          %v2998 = vld [vmem:[#allocation16 + $0xc] sm:$0xf]
          %v2999 = vld [vmem:[#allocation16 + $0x10] sm:$0xf]
          %v3000 = vld [vmem:[#allocation16 + $0x14] sm:$0xf]
          %v3001 = vld [vmem:[#allocation16 + $0x18] sm:$0xf]
          %v3002 = vld [vmem:[#allocation16 + $0x1c] sm:$0xf]
          %v3003 = vld [vmem:[#allocation16 + $0x20] sm:$0xf]
          %v3004 = vld [vmem:[#allocation16 + $0x24] sm:$0xf]
          %v3005 = vld [vmem:[#allocation16 + $0x28] sm:$0xf]
          %v3006 = vld [vmem:[#allocation16 + $0x2c] sm:$0xf]
          %v3007 = vld [vmem:[#allocation16 + $0x30] sm:$0xf]
          %v3008 = vld [vmem:[#allocation16 + $0x34] sm:$0xf]
          %v3009 = vld [vmem:[#allocation16 + $0x38] sm:$0xf]
          %v3010 = vld [vmem:[#allocation16 + $0x3c] sm:$0xf]
          %v3011 = vld [vmem:[%s11] sm:$0x1]
          %v3013 = vlaneseq
          %v3014 = vshrl.u32 %v3013, 7
          %v3015 = vsub.s32 0, %v3014
          %v3016 = vrot.slane %v3011, %v3015
          %v3034 = vunpack.c.l.b16 %v2995
          %v3035 = vunpack.c.l.b16 %v2996
          %v3036 = vunpack.c.l.b16 %v2997
          %v3037 = vunpack.c.l.b16 %v2998
          %v3038 = vunpack.c.l.b16 %v2999
          %v3039 = vunpack.c.l.b16 %v3000
          %v3040 = vunpack.c.l.b16 %v3001
          %v3041 = vunpack.c.l.b16 %v3002
          %v3042 = vunpack.c.l.b16 %v3003
          %v3043 = vunpack.c.l.b16 %v3004
          %v3044 = vunpack.c.l.b16 %v3005
          %v3045 = vunpack.c.l.b16 %v3006
          %v3046 = vunpack.c.l.b16 %v3007
          %v3047 = vunpack.c.l.b16 %v3008
          %v3048 = vunpack.c.l.b16 %v3009
          %v3049 = vunpack.c.l.b16 %v3010
          %v3050 = vpack.c.b16 %v3035, %v3034
          %v3051 = vpack.c.b16 %v3037, %v3036
          %v3052 = vpack.c.b16 %v3039, %v3038
          %v3053 = vpack.c.b16 %v3041, %v3040
          %v3054 = vpack.c.b16 %v3043, %v3042
          %v3055 = vpack.c.b16 %v3045, %v3044
          %v3056 = vpack.c.b16 %v3047, %v3046
          %v3057 = vpack.c.b16 %v3049, %v3048
          %3066 = vmatprep.subr.bf16.mxu0 0
          %3067 = vmatpush1.bf16.msra.mxu0 %v3050
          %3068 = vmatprep.subr.bf16.mxu0 0
          %3069 = vmatpush1.bf16.msra.mxu0 %v3051
          %3070 = vmatprep.subr.bf16.mxu0 0
          %3071 = vmatpush1.bf16.msra.mxu0 %v3052
          %3072 = vmatprep.subr.bf16.mxu0 0
          %3073 = vmatpush1.bf16.msra.mxu0 %v3053
          %3074 = vmatprep.subr.bf16.mxu0 0
          %3075 = vmatpush1.bf16.msra.mxu0 %v3054
          %3076 = vmatprep.subr.bf16.mxu0 0
          %3077 = vmatpush1.bf16.msra.mxu0 %v3055
          %3078 = vmatprep.subr.bf16.mxu0 0
          %3079 = vmatpush1.bf16.msra.mxu0 %v3056
          %3080 = vmatprep.subr.bf16.mxu0 0
          %3081 = vmatpush1.bf16.msra.mxu0 %v3057
          %3082 = vmatprep.subr.bf16.mxu0 0
          %3083 = vmatpush1.bf16.msra.mxu0 0
          %3084 = vmatprep.subr.bf16.mxu0 0
          %3085 = vmatpush1.bf16.msra.mxu0 0
          %3086 = vmatprep.subr.bf16.mxu0 0
          %3087 = vmatpush1.bf16.msra.mxu0 0
          %3088 = vmatprep.subr.bf16.mxu0 0
          %3089 = vmatpush1.bf16.msra.mxu0 0
          %3090 = vmatprep.subr.bf16.mxu0 0
          %3091 = vmatpush1.bf16.msra.mxu0 0
          %3092 = vmatprep.subr.bf16.mxu0 0
          %3093 = vmatpush1.bf16.msra.mxu0 0
          %3094 = vmatprep.subr.bf16.mxu0 0
          %3095 = vmatpush1.bf16.msra.mxu0 0
          %3096 = vmatprep.subr.bf16.mxu0 0
          %3097 = vmatpush1.bf16.msra.mxu0 0
          %3098 = vmatprep.mubr.bf16.mxu0 0
          %3099 = vmatmul.mubr.bf16.gmra.mrb[0].mxu0 %v2987
          %v3100 = vpop.f32.mrb[0].mxu0
          %v3101 = vadd.f32 %v3016, %v3100
          %v3102 = vpop.f32.mrb[0].mxu0
          %v3103 = vpop.f32.mrb[0].mxu0
          %v3104 = vadd.f32 %v3016, %v3103
          %v3105 = vpop.f32.mrb[0].mxu0
          %3106 = vmatprep.mubr.bf16.mxu0 0
          %3107 = vmatmul.mubr.bf16.gmra.mrb[0].mxu0 %v2988
          %v3108 = vpop.f32.mrb[0].mxu0
          %v3109 = vadd.f32 %v3016, %v3108
          %v3110 = vpop.f32.mrb[0].mxu0
          %v3111 = vpop.f32.mrb[0].mxu0
          %v3112 = vadd.f32 %v3016, %v3111
          %v3113 = vpop.f32.mrb[0].mxu0
          %3114 = vmatprep.mubr.bf16.mxu0 0
          %3115 = vmatmul.mubr.bf16.gmra.mrb[0].mxu0 %v2989
          %v3116 = vpop.f32.mrb[0].mxu0
          %v3117 = vadd.f32 %v3016, %v3116
          %v3118 = vpop.f32.mrb[0].mxu0
          %v3119 = vpop.f32.mrb[0].mxu0
          %v3120 = vadd.f32 %v3016, %v3119
          %v3121 = vpop.f32.mrb[0].mxu0
          %3122 = vmatprep.mubr.bf16.mxu0 0
          %3123 = vmatmul.mubr.bf16.gmra.mrb[0].mxu0 %v2990
          %v3124 = vpop.f32.mrb[0].mxu0
          %v3125 = vadd.f32 %v3016, %v3124
          %v3126 = vpop.f32.mrb[0].mxu0
          %v3127 = vpop.f32.mrb[0].mxu0
          %v3128 = vadd.f32 %v3016, %v3127
          %v3129 = vpop.f32.mrb[0].mxu0
          %3130 = vmatprep.mubr.bf16.mxu0 0
          %3131 = vmatmul.mubr.bf16.gmra.mrb[0].mxu0 %v2991
          %v3132 = vpop.f32.mrb[0].mxu0
          %v3133 = vadd.f32 %v3016, %v3132
          %v3134 = vpop.f32.mrb[0].mxu0
          %v3135 = vpop.f32.mrb[0].mxu0
          %v3136 = vadd.f32 %v3016, %v3135
          %v3137 = vpop.f32.mrb[0].mxu0
          %3138 = vmatprep.mubr.bf16.mxu0 0
          %3139 = vmatmul.mubr.bf16.gmra.mrb[0].mxu0 %v2992
          %v3140 = vpop.f32.mrb[0].mxu0
          %v3141 = vadd.f32 %v3016, %v3140
          %v3142 = vpop.f32.mrb[0].mxu0
          %v3143 = vpop.f32.mrb[0].mxu0
          %v3144 = vadd.f32 %v3016, %v3143
          %v3145 = vpop.f32.mrb[0].mxu0
          %3146 = vmatprep.mubr.bf16.mxu0 0
          %3147 = vmatmul.mubr.bf16.gmra.mrb[0].mxu0 %v2993
          %v3148 = vpop.f32.mrb[0].mxu0
          %v3149 = vadd.f32 %v3016, %v3148
          %v3150 = vpop.f32.mrb[0].mxu0
          %v3151 = vpop.f32.mrb[0].mxu0
          %v3152 = vadd.f32 %v3016, %v3151
          %v3153 = vpop.f32.mrb[0].mxu0
          %3154 = vmatprep.mubr.bf16.mxu0 0
          %3155 = vmatmul.mubr.bf16.gmra.mrb[0].mxu0 %v2994
          %v3156 = vpop.f32.mrb[0].mxu0
          %v3157 = vadd.f32 %v3016, %v3156
          %v3158 = vpop.f32.mrb[0].mxu0
          %v3159 = vpop.f32.mrb[0].mxu0
          %v3160 = vadd.f32 %v3016, %v3159
          %v3161 = vpop.f32.mrb[0].mxu0
          %3162 = vdwg.mxu0
          %v3163 = vmax.f32 %v3101, 0.0
          %v3164 = vmax.f32 %v3104, 0.0
          %v3165 = vmax.f32 %v3109, 0.0
          %v3166 = vmax.f32 %v3112, 0.0
          %v3167 = vmax.f32 %v3117, 0.0
          %v3168 = vmax.f32 %v3120, 0.0
          %v3169 = vmax.f32 %v3125, 0.0
          %v3170 = vmax.f32 %v3128, 0.0
          %v3171 = vmax.f32 %v3133, 0.0
          %v3172 = vmax.f32 %v3136, 0.0
          %v3173 = vmax.f32 %v3141, 0.0
          %v3174 = vmax.f32 %v3144, 0.0
          %v3175 = vmax.f32 %v3149, 0.0
          %v3176 = vmax.f32 %v3152, 0.0
          %v3177 = vmax.f32 %v3157, 0.0
          %v3178 = vmax.f32 %v3160, 0.0
          %v3179 = vand.u32 2147483647, %v3101
          %v3180 = vand.u32 2147483647, %v3104
          %v3181 = vand.u32 2147483647, %v3109
          %v3182 = vand.u32 2147483647, %v3112
          %v3183 = vand.u32 2147483647, %v3117
          %v3184 = vand.u32 2147483647, %v3120
          %v3185 = vand.u32 2147483647, %v3125
          %v3186 = vand.u32 2147483647, %v3128
          %v3187 = vand.u32 2147483647, %v3133
          %v3188 = vand.u32 2147483647, %v3136
          %v3189 = vand.u32 2147483647, %v3141
          %v3190 = vand.u32 2147483647, %v3144
          %v3191 = vand.u32 2147483647, %v3149
          %v3192 = vand.u32 2147483647, %v3152
          %v3193 = vand.u32 2147483647, %v3157
          %v3194 = vand.u32 2147483647, %v3160
          %v3195 = vsub.f32 0.0, %v3179
          %v3196 = vsub.f32 0.0, %v3180
          %v3197 = vsub.f32 0.0, %v3181
          %v3198 = vsub.f32 0.0, %v3182
          %v3199 = vsub.f32 0.0, %v3183
          %v3200 = vsub.f32 0.0, %v3184
          %v3201 = vsub.f32 0.0, %v3185
          %v3202 = vsub.f32 0.0, %v3186
          %v3203 = vsub.f32 0.0, %v3187
          %v3204 = vsub.f32 0.0, %v3188
          %v3205 = vsub.f32 0.0, %v3189
          %v3206 = vsub.f32 0.0, %v3190
          %v3207 = vsub.f32 0.0, %v3191
          %v3208 = vsub.f32 0.0, %v3192
          %v3209 = vsub.f32 0.0, %v3193
          %v3210 = vsub.f32 0.0, %v3194
          %v3211 = vmul.f32 %v3195, 1.442695
          %v3212 = vpow.pop %v3211
          %v3213 = vmul.f32 %v3196, 1.442695
          %v3214 = vpow.pop %v3213
          %v3215 = vmul.f32 %v3197, 1.442695
          %v3216 = vpow.pop %v3215
          %v3217 = vmul.f32 %v3198, 1.442695
          %v3218 = vpow.pop %v3217
          %v3219 = vmul.f32 %v3199, 1.442695
          %v3220 = vpow.pop %v3219
          %v3221 = vmul.f32 %v3200, 1.442695
          %v3222 = vpow.pop %v3221
          %v3223 = vmul.f32 %v3201, 1.442695
          %v3224 = vpow.pop %v3223
          %v3225 = vmul.f32 %v3202, 1.442695
          %v3226 = vpow.pop %v3225
          %v3227 = vmul.f32 %v3203, 1.442695
          %v3228 = vpow.pop %v3227
          %v3229 = vmul.f32 %v3204, 1.442695
          %v3230 = vpow.pop %v3229
          %v3231 = vmul.f32 %v3205, 1.442695
          %v3232 = vpow.pop %v3231
          %v3233 = vmul.f32 %v3206, 1.442695
          %v3234 = vpow.pop %v3233
          %v3235 = vmul.f32 %v3207, 1.442695
          %v3236 = vpow.pop %v3235
          %v3237 = vmul.f32 %v3208, 1.442695
          %v3238 = vpow.pop %v3237
          %v3239 = vmul.f32 %v3209, 1.442695
          %v3240 = vpow.pop %v3239
          %v3241 = vmul.f32 %v3210, 1.442695
          %v3242 = vpow.pop %v3241
          %v3243 = vadd.f32 %v3212, 1.0
          %v3244 = vlog2.pop %v3243
          %v3245 = vmul.f32 %v3244, 0.6931472
          %v3246 = vmul.f32 -0.5, %v3212
          %v3247 = vadd.f32 %v3246, 1.0
          %v3248 = vmul.f32 %v3247, %v3212
          %v3249 = vand.u32 2147483647, %v3212
          %vm3250 = vcmp.lt.f32.partialorder %v3249, 0.0004427343
          %v3251 = vsel %vm3250, %v3248, %v3245
          %v3252 = vadd.f32 %v3214, 1.0
          %v3253 = vlog2.pop %v3252
          %v3254 = vmul.f32 %v3253, 0.6931472
          %v3255 = vmul.f32 -0.5, %v3214
          %v3256 = vadd.f32 %v3255, 1.0
          %v3257 = vmul.f32 %v3256, %v3214
          %v3258 = vand.u32 2147483647, %v3214
          %vm3259 = vcmp.lt.f32.partialorder %v3258, 0.0004427343
          %v3260 = vsel %vm3259, %v3257, %v3254
          %v3261 = vadd.f32 %v3216, 1.0
          %v3262 = vlog2.pop %v3261
          %v3263 = vmul.f32 %v3262, 0.6931472
          %v3264 = vmul.f32 -0.5, %v3216
          %v3265 = vadd.f32 %v3264, 1.0
          %v3266 = vmul.f32 %v3265, %v3216
          %v3267 = vand.u32 2147483647, %v3216
          %vm3268 = vcmp.lt.f32.partialorder %v3267, 0.0004427343
          %v3269 = vsel %vm3268, %v3266, %v3263
          %v3270 = vadd.f32 %v3218, 1.0
          %v3271 = vlog2.pop %v3270
          %v3272 = vmul.f32 %v3271, 0.6931472
          %v3273 = vmul.f32 -0.5, %v3218
          %v3274 = vadd.f32 %v3273, 1.0
          %v3275 = vmul.f32 %v3274, %v3218
          %v3276 = vand.u32 2147483647, %v3218
          %vm3277 = vcmp.lt.f32.partialorder %v3276, 0.0004427343
          %v3278 = vsel %vm3277, %v3275, %v3272
          %v3279 = vadd.f32 %v3220, 1.0
          %v3280 = vlog2.pop %v3279
          %v3281 = vmul.f32 %v3280, 0.6931472
          %v3282 = vmul.f32 -0.5, %v3220
          %v3283 = vadd.f32 %v3282, 1.0
          %v3284 = vmul.f32 %v3283, %v3220
          %v3285 = vand.u32 2147483647, %v3220
          %vm3286 = vcmp.lt.f32.partialorder %v3285, 0.0004427343
          %v3287 = vsel %vm3286, %v3284, %v3281
          %v3288 = vadd.f32 %v3222, 1.0
          %v3289 = vlog2.pop %v3288
          %v3290 = vmul.f32 %v3289, 0.6931472
          %v3291 = vmul.f32 -0.5, %v3222
          %v3292 = vadd.f32 %v3291, 1.0
          %v3293 = vmul.f32 %v3292, %v3222
          %v3294 = vand.u32 2147483647, %v3222
          %vm3295 = vcmp.lt.f32.partialorder %v3294, 0.0004427343
          %v3296 = vsel %vm3295, %v3293, %v3290
          %v3297 = vadd.f32 %v3224, 1.0
          %v3298 = vlog2.pop %v3297
          %v3299 = vmul.f32 %v3298, 0.6931472
          %v3300 = vmul.f32 -0.5, %v3224
          %v3301 = vadd.f32 %v3300, 1.0
          %v3302 = vmul.f32 %v3301, %v3224
          %v3303 = vand.u32 2147483647, %v3224
          %vm3304 = vcmp.lt.f32.partialorder %v3303, 0.0004427343
          %v3305 = vsel %vm3304, %v3302, %v3299
          %v3306 = vadd.f32 %v3226, 1.0
          %v3307 = vlog2.pop %v3306
          %v3308 = vmul.f32 %v3307, 0.6931472
          %v3309 = vmul.f32 -0.5, %v3226
          %v3310 = vadd.f32 %v3309, 1.0
          %v3311 = vmul.f32 %v3310, %v3226
          %v3312 = vand.u32 2147483647, %v3226
          %vm3313 = vcmp.lt.f32.partialorder %v3312, 0.0004427343
          %v3314 = vsel %vm3313, %v3311, %v3308
          %v3315 = vadd.f32 %v3228, 1.0
          %v3316 = vlog2.pop %v3315
          %v3317 = vmul.f32 %v3316, 0.6931472
          %v3318 = vmul.f32 -0.5, %v3228
          %v3319 = vadd.f32 %v3318, 1.0
          %v3320 = vmul.f32 %v3319, %v3228
          %v3321 = vand.u32 2147483647, %v3228
          %vm3322 = vcmp.lt.f32.partialorder %v3321, 0.0004427343
          %v3323 = vsel %vm3322, %v3320, %v3317
          %v3324 = vadd.f32 %v3230, 1.0
          %v3325 = vlog2.pop %v3324
          %v3326 = vmul.f32 %v3325, 0.6931472
          %v3327 = vmul.f32 -0.5, %v3230
          %v3328 = vadd.f32 %v3327, 1.0
          %v3329 = vmul.f32 %v3328, %v3230
          %v3330 = vand.u32 2147483647, %v3230
          %vm3331 = vcmp.lt.f32.partialorder %v3330, 0.0004427343
          %v3332 = vsel %vm3331, %v3329, %v3326
          %v3333 = vadd.f32 %v3232, 1.0
          %v3334 = vlog2.pop %v3333
          %v3335 = vmul.f32 %v3334, 0.6931472
          %v3336 = vmul.f32 -0.5, %v3232
          %v3337 = vadd.f32 %v3336, 1.0
          %v3338 = vmul.f32 %v3337, %v3232
          %v3339 = vand.u32 2147483647, %v3232
          %vm3340 = vcmp.lt.f32.partialorder %v3339, 0.0004427343
          %v3341 = vsel %vm3340, %v3338, %v3335
          %v3342 = vadd.f32 %v3234, 1.0
          %v3343 = vlog2.pop %v3342
          %v3344 = vmul.f32 %v3343, 0.6931472
          %v3345 = vmul.f32 -0.5, %v3234
          %v3346 = vadd.f32 %v3345, 1.0
          %v3347 = vmul.f32 %v3346, %v3234
          %v3348 = vand.u32 2147483647, %v3234
          %vm3349 = vcmp.lt.f32.partialorder %v3348, 0.0004427343
          %v3350 = vsel %vm3349, %v3347, %v3344
          %v3351 = vadd.f32 %v3236, 1.0
          %v3352 = vlog2.pop %v3351
          %v3353 = vmul.f32 %v3352, 0.6931472
          %v3354 = vmul.f32 -0.5, %v3236
          %v3355 = vadd.f32 %v3354, 1.0
          %v3356 = vmul.f32 %v3355, %v3236
          %v3357 = vand.u32 2147483647, %v3236
          %vm3358 = vcmp.lt.f32.partialorder %v3357, 0.0004427343
          %v3359 = vsel %vm3358, %v3356, %v3353
          %v3360 = vadd.f32 %v3238, 1.0
          %v3361 = vlog2.pop %v3360
          %v3362 = vmul.f32 %v3361, 0.6931472
          %v3363 = vmul.f32 -0.5, %v3238
          %v3364 = vadd.f32 %v3363, 1.0
          %v3365 = vmul.f32 %v3364, %v3238
          %v3366 = vand.u32 2147483647, %v3238
          %vm3367 = vcmp.lt.f32.partialorder %v3366, 0.0004427343
          %v3368 = vsel %vm3367, %v3365, %v3362
          %v3369 = vadd.f32 %v3240, 1.0
          %v3370 = vlog2.pop %v3369
          %v3371 = vmul.f32 %v3370, 0.6931472
          %v3372 = vmul.f32 -0.5, %v3240
          %v3373 = vadd.f32 %v3372, 1.0
          %v3374 = vmul.f32 %v3373, %v3240
          %v3375 = vand.u32 2147483647, %v3240
          %vm3376 = vcmp.lt.f32.partialorder %v3375, 0.0004427343
          %v3377 = vsel %vm3376, %v3374, %v3371
          %v3378 = vadd.f32 %v3242, 1.0
          %v3379 = vlog2.pop %v3378
          %v3380 = vmul.f32 %v3379, 0.6931472
          %v3381 = vmul.f32 -0.5, %v3242
          %v3382 = vadd.f32 %v3381, 1.0
          %v3383 = vmul.f32 %v3382, %v3242
          %v3384 = vand.u32 2147483647, %v3242
          %vm3385 = vcmp.lt.f32.partialorder %v3384, 0.0004427343
          %v3386 = vsel %vm3385, %v3383, %v3380
          %v3387 = vadd.f32 %v3163, %v3251
          %v3388 = vadd.f32 %v3164, %v3260
          %v3389 = vadd.f32 %v3165, %v3269
          %v3390 = vadd.f32 %v3166, %v3278
          %v3391 = vadd.f32 %v3167, %v3287
          %v3392 = vadd.f32 %v3168, %v3296
          %v3393 = vadd.f32 %v3169, %v3305
          %v3394 = vadd.f32 %v3170, %v3314
          %v3395 = vadd.f32 %v3171, %v3323
          %v3396 = vadd.f32 %v3172, %v3332
          %v3397 = vadd.f32 %v3173, %v3341
          %v3398 = vadd.f32 %v3174, %v3350
          %v3399 = vadd.f32 %v3175, %v3359
          %v3400 = vadd.f32 %v3176, %v3368
          %v3401 = vadd.f32 %v3177, %v3377
          %v3402 = vadd.f32 %v3178, %v3386
          %v3403 = vsub.f32 %v3387, 0.6931472
          %v3404 = vsub.f32 %v3388, 0.6931472
          %v3405 = vsub.f32 %v3389, 0.6931472
          %v3406 = vsub.f32 %v3390, 0.6931472
          %v3407 = vsub.f32 %v3391, 0.6931472
          %v3408 = vsub.f32 %v3392, 0.6931472
          %v3409 = vsub.f32 %v3393, 0.6931472
          %v3410 = vsub.f32 %v3394, 0.6931472
          %v3411 = vsub.f32 %v3395, 0.6931472
          %v3412 = vsub.f32 %v3396, 0.6931472
          %v3413 = vsub.f32 %v3397, 0.6931472
          %v3414 = vsub.f32 %v3398, 0.6931472
          %v3415 = vsub.f32 %v3399, 0.6931472
          %v3416 = vsub.f32 %v3400, 0.6931472
          %v3417 = vsub.f32 %v3401, 0.6931472
          %v3418 = vsub.f32 %v3402, 0.6931472
          %v3419 = vpack.c.bf16 %v3404, %v3403
          %v3420 = vpack.c.bf16 %v3406, %v3405
          %v3421 = vpack.c.bf16 %v3408, %v3407
          %v3422 = vpack.c.bf16 %v3410, %v3409
          %v3423 = vpack.c.bf16 %v3412, %v3411
          %v3424 = vpack.c.bf16 %v3414, %v3413
          %v3425 = vpack.c.bf16 %v3416, %v3415
          %v3426 = vpack.c.bf16 %v3418, %v3417
          %v3427 = vld [vmem:[#allocation17] sm:$0xf]
          %v3428 = vld [vmem:[#allocation17 + $0x4] sm:$0xf]
          %v3429 = vld [vmem:[#allocation17 + $0x8] sm:$0xf]
          %v3430 = vld [vmem:[#allocation17 + $0xc] sm:$0xf]
          %v3431 = vld [vmem:[#allocation17 + $0x10] sm:$0xf]
          %v3432 = vld [vmem:[#allocation17 + $0x14] sm:$0xf]
          %v3433 = vld [vmem:[#allocation17 + $0x18] sm:$0xf]
          %v3434 = vld [vmem:[#allocation17 + $0x1c] sm:$0xf]
          %v3435 = vld [vmem:[#allocation17 + $0x20] sm:$0xf]
          %v3436 = vld [vmem:[#allocation17 + $0x24] sm:$0xf]
          %v3437 = vld [vmem:[#allocation17 + $0x28] sm:$0xf]
          %v3438 = vld [vmem:[#allocation17 + $0x2c] sm:$0xf]
          %v3439 = vld [vmem:[#allocation17 + $0x30] sm:$0xf]
          %v3440 = vld [vmem:[#allocation17 + $0x34] sm:$0xf]
          %v3441 = vld [vmem:[#allocation17 + $0x38] sm:$0xf]
          %v3442 = vld [vmem:[#allocation17 + $0x3c] sm:$0xf]
          %v3443 = vld [vmem:[%s13] sm:$0x1]
          %v3445 = vlaneseq
          %v3446 = vshrl.u32 %v3445, 7
          %v3447 = vsub.s32 0, %v3446
          %v3448 = vrot.slane %v3443, %v3447
          %v3466 = vunpack.c.l.b16 %v3427
          %v3467 = vunpack.c.l.b16 %v3428
          %v3468 = vunpack.c.l.b16 %v3429
          %v3469 = vunpack.c.l.b16 %v3430
          %v3470 = vunpack.c.l.b16 %v3431
          %v3471 = vunpack.c.l.b16 %v3432
          %v3472 = vunpack.c.l.b16 %v3433
          %v3473 = vunpack.c.l.b16 %v3434
          %v3474 = vunpack.c.l.b16 %v3435
          %v3475 = vunpack.c.l.b16 %v3436
          %v3476 = vunpack.c.l.b16 %v3437
          %v3477 = vunpack.c.l.b16 %v3438
          %v3478 = vunpack.c.l.b16 %v3439
          %v3479 = vunpack.c.l.b16 %v3440
          %v3480 = vunpack.c.l.b16 %v3441
          %v3481 = vunpack.c.l.b16 %v3442
          %v3482 = vpack.c.b16 %v3467, %v3466
          %v3483 = vpack.c.b16 %v3469, %v3468
          %v3484 = vpack.c.b16 %v3471, %v3470
          %v3485 = vpack.c.b16 %v3473, %v3472
          %v3486 = vpack.c.b16 %v3475, %v3474
          %v3487 = vpack.c.b16 %v3477, %v3476
          %v3488 = vpack.c.b16 %v3479, %v3478
          %v3489 = vpack.c.b16 %v3481, %v3480
          %3498 = vmatprep.subr.bf16.mxu0 0
          %3499 = vmatpush1.bf16.msra.mxu0 %v3482
          %3500 = vmatprep.subr.bf16.mxu0 0
          %3501 = vmatpush1.bf16.msra.mxu0 %v3483
          %3502 = vmatprep.subr.bf16.mxu0 0
          %3503 = vmatpush1.bf16.msra.mxu0 %v3484
          %3504 = vmatprep.subr.bf16.mxu0 0
          %3505 = vmatpush1.bf16.msra.mxu0 %v3485
          %3506 = vmatprep.subr.bf16.mxu0 0
          %3507 = vmatpush1.bf16.msra.mxu0 %v3486
          %3508 = vmatprep.subr.bf16.mxu0 0
          %3509 = vmatpush1.bf16.msra.mxu0 %v3487
          %3510 = vmatprep.subr.bf16.mxu0 0
          %3511 = vmatpush1.bf16.msra.mxu0 %v3488
          %3512 = vmatprep.subr.bf16.mxu0 0
          %3513 = vmatpush1.bf16.msra.mxu0 %v3489
          %3514 = vmatprep.subr.bf16.mxu0 0
          %3515 = vmatpush1.bf16.msra.mxu0 0
          %3516 = vmatprep.subr.bf16.mxu0 0
          %3517 = vmatpush1.bf16.msra.mxu0 0
          %3518 = vmatprep.subr.bf16.mxu0 0
          %3519 = vmatpush1.bf16.msra.mxu0 0
          %3520 = vmatprep.subr.bf16.mxu0 0
          %3521 = vmatpush1.bf16.msra.mxu0 0
          %3522 = vmatprep.subr.bf16.mxu0 0
          %3523 = vmatpush1.bf16.msra.mxu0 0
          %3524 = vmatprep.subr.bf16.mxu0 0
          %3525 = vmatpush1.bf16.msra.mxu0 0
          %3526 = vmatprep.subr.bf16.mxu0 0
          %3527 = vmatpush1.bf16.msra.mxu0 0
          %3528 = vmatprep.subr.bf16.mxu0 0
          %3529 = vmatpush1.bf16.msra.mxu0 0
          %3530 = vmatprep.mubr.bf16.mxu0 0
          %3531 = vmatmul.mubr.bf16.gmra.mrb[0].mxu0 %v3419
          %v3532 = vpop.f32.mrb[0].mxu0
          %v3533 = vadd.f32 %v3448, %v3532
          %v3534 = vpop.f32.mrb[0].mxu0
          %v3535 = vpop.f32.mrb[0].mxu0
          %v3536 = vadd.f32 %v3448, %v3535
          %v3537 = vpop.f32.mrb[0].mxu0
          %3538 = vmatprep.mubr.bf16.mxu0 0
          %3539 = vmatmul.mubr.bf16.gmra.mrb[0].mxu0 %v3420
          %v3540 = vpop.f32.mrb[0].mxu0
          %v3541 = vadd.f32 %v3448, %v3540
          %v3542 = vpop.f32.mrb[0].mxu0
          %v3543 = vpop.f32.mrb[0].mxu0
          %v3544 = vadd.f32 %v3448, %v3543
          %v3545 = vpop.f32.mrb[0].mxu0
          %3546 = vmatprep.mubr.bf16.mxu0 0
          %3547 = vmatmul.mubr.bf16.gmra.mrb[0].mxu0 %v3421
          %v3548 = vpop.f32.mrb[0].mxu0
          %v3549 = vadd.f32 %v3448, %v3548
          %v3550 = vpop.f32.mrb[0].mxu0
          %v3551 = vpop.f32.mrb[0].mxu0
          %v3552 = vadd.f32 %v3448, %v3551
          %v3553 = vpop.f32.mrb[0].mxu0
          %3554 = vmatprep.mubr.bf16.mxu0 0
          %3555 = vmatmul.mubr.bf16.gmra.mrb[0].mxu0 %v3422
          %v3556 = vpop.f32.mrb[0].mxu0
          %v3557 = vadd.f32 %v3448, %v3556
          %v3558 = vpop.f32.mrb[0].mxu0
          %v3559 = vpop.f32.mrb[0].mxu0
          %v3560 = vadd.f32 %v3448, %v3559
          %v3561 = vpop.f32.mrb[0].mxu0
          %3562 = vmatprep.mubr.bf16.mxu0 0
          %3563 = vmatmul.mubr.bf16.gmra.mrb[0].mxu0 %v3423
          %v3564 = vpop.f32.mrb[0].mxu0
          %v3565 = vadd.f32 %v3448, %v3564
          %v3566 = vpop.f32.mrb[0].mxu0
          %v3567 = vpop.f32.mrb[0].mxu0
          %v3568 = vadd.f32 %v3448, %v3567
          %v3569 = vpop.f32.mrb[0].mxu0
          %3570 = vmatprep.mubr.bf16.mxu0 0
          %3571 = vmatmul.mubr.bf16.gmra.mrb[0].mxu0 %v3424
          %v3572 = vpop.f32.mrb[0].mxu0
          %v3573 = vadd.f32 %v3448, %v3572
          %v3574 = vpop.f32.mrb[0].mxu0
          %v3575 = vpop.f32.mrb[0].mxu0
          %v3576 = vadd.f32 %v3448, %v3575
          %v3577 = vpop.f32.mrb[0].mxu0
          %3578 = vmatprep.mubr.bf16.mxu0 0
          %3579 = vmatmul.mubr.bf16.gmra.mrb[0].mxu0 %v3425
          %v3580 = vpop.f32.mrb[0].mxu0
          %v3581 = vadd.f32 %v3448, %v3580
          %v3582 = vpop.f32.mrb[0].mxu0
          %v3583 = vpop.f32.mrb[0].mxu0
          %v3584 = vadd.f32 %v3448, %v3583
          %v3585 = vpop.f32.mrb[0].mxu0
          %3586 = vmatprep.mubr.bf16.mxu0 0
          %3587 = vmatmul.mubr.bf16.gmra.mrb[0].mxu0 %v3426
          %v3588 = vpop.f32.mrb[0].mxu0
          %v3589 = vadd.f32 %v3448, %v3588
          %v3590 = vpop.f32.mrb[0].mxu0
          %v3591 = vpop.f32.mrb[0].mxu0
          %v3592 = vadd.f32 %v3448, %v3591
          %v3593 = vpop.f32.mrb[0].mxu0
          %3594 = vdwg.mxu0
          %v3595 = vadd.f32 %v2699, %v3533
          %v3596 = vadd.f32 %v2700, %v3536
          %v3597 = vadd.f32 %v2701, %v3541
          %v3598 = vadd.f32 %v2702, %v3544
          %v3599 = vadd.f32 %v2703, %v3549
          %v3600 = vadd.f32 %v2704, %v3552
          %v3601 = vadd.f32 %v2705, %v3557
          %v3602 = vadd.f32 %v2706, %v3560
          %v3603 = vadd.f32 %v2707, %v3565
          %v3604 = vadd.f32 %v2708, %v3568
          %v3605 = vadd.f32 %v2709, %v3573
          %v3606 = vadd.f32 %v2710, %v3576
          %v3607 = vadd.f32 %v2711, %v3581
          %v3608 = vadd.f32 %v2712, %v3584
          %v3609 = vadd.f32 %v2713, %v3589
          %v3610 = vadd.f32 %v2714, %v3592
          %v3611 = vmax.f32 %v3595, 0.0
          %v3612 = vmax.f32 %v3596, 0.0
          %v3613 = vmax.f32 %v3597, 0.0
          %v3614 = vmax.f32 %v3598, 0.0
          %v3615 = vmax.f32 %v3599, 0.0
          %v3616 = vmax.f32 %v3600, 0.0
          %v3617 = vmax.f32 %v3601, 0.0
          %v3618 = vmax.f32 %v3602, 0.0
          %v3619 = vmax.f32 %v3603, 0.0
          %v3620 = vmax.f32 %v3604, 0.0
          %v3621 = vmax.f32 %v3605, 0.0
          %v3622 = vmax.f32 %v3606, 0.0
          %v3623 = vmax.f32 %v3607, 0.0
          %v3624 = vmax.f32 %v3608, 0.0
          %v3625 = vmax.f32 %v3609, 0.0
          %v3626 = vmax.f32 %v3610, 0.0
          %v3627 = vand.u32 2147483647, %v3595
          %v3628 = vand.u32 2147483647, %v3596
          %v3629 = vand.u32 2147483647, %v3597
          %v3630 = vand.u32 2147483647, %v3598
          %v3631 = vand.u32 2147483647, %v3599
          %v3632 = vand.u32 2147483647, %v3600
          %v3633 = vand.u32 2147483647, %v3601
          %v3634 = vand.u32 2147483647, %v3602
          %v3635 = vand.u32 2147483647, %v3603
          %v3636 = vand.u32 2147483647, %v3604
          %v3637 = vand.u32 2147483647, %v3605
          %v3638 = vand.u32 2147483647, %v3606
          %v3639 = vand.u32 2147483647, %v3607
          %v3640 = vand.u32 2147483647, %v3608
          %v3641 = vand.u32 2147483647, %v3609
          %v3642 = vand.u32 2147483647, %v3610
          %v3643 = vsub.f32 0.0, %v3627
          %v3644 = vsub.f32 0.0, %v3628
          %v3645 = vsub.f32 0.0, %v3629
          %v3646 = vsub.f32 0.0, %v3630
          %v3647 = vsub.f32 0.0, %v3631
          %v3648 = vsub.f32 0.0, %v3632
          %v3649 = vsub.f32 0.0, %v3633
          %v3650 = vsub.f32 0.0, %v3634
          %v3651 = vsub.f32 0.0, %v3635
          %v3652 = vsub.f32 0.0, %v3636
          %v3653 = vsub.f32 0.0, %v3637
          %v3654 = vsub.f32 0.0, %v3638
          %v3655 = vsub.f32 0.0, %v3639
          %v3656 = vsub.f32 0.0, %v3640
          %v3657 = vsub.f32 0.0, %v3641
          %v3658 = vsub.f32 0.0, %v3642
          %v3659 = vmul.f32 %v3643, 1.442695
          %v3660 = vpow.pop %v3659
          %v3661 = vmul.f32 %v3644, 1.442695
          %v3662 = vpow.pop %v3661
          %v3663 = vmul.f32 %v3645, 1.442695
          %v3664 = vpow.pop %v3663
          %v3665 = vmul.f32 %v3646, 1.442695
          %v3666 = vpow.pop %v3665
          %v3667 = vmul.f32 %v3647, 1.442695
          %v3668 = vpow.pop %v3667
          %v3669 = vmul.f32 %v3648, 1.442695
          %v3670 = vpow.pop %v3669
          %v3671 = vmul.f32 %v3649, 1.442695
          %v3672 = vpow.pop %v3671
          %v3673 = vmul.f32 %v3650, 1.442695
          %v3674 = vpow.pop %v3673
          %v3675 = vmul.f32 %v3651, 1.442695
          %v3676 = vpow.pop %v3675
          %v3677 = vmul.f32 %v3652, 1.442695
          %v3678 = vpow.pop %v3677
          %v3679 = vmul.f32 %v3653, 1.442695
          %v3680 = vpow.pop %v3679
          %v3681 = vmul.f32 %v3654, 1.442695
          %v3682 = vpow.pop %v3681
          %v3683 = vmul.f32 %v3655, 1.442695
          %v3684 = vpow.pop %v3683
          %v3685 = vmul.f32 %v3656, 1.442695
          %v3686 = vpow.pop %v3685
          %v3687 = vmul.f32 %v3657, 1.442695
          %v3688 = vpow.pop %v3687
          %v3689 = vmul.f32 %v3658, 1.442695
          %v3690 = vpow.pop %v3689
          %v3691 = vadd.f32 %v3660, 1.0
          %v3692 = vlog2.pop %v3691
          %v3693 = vmul.f32 %v3692, 0.6931472
          %v3694 = vmul.f32 -0.5, %v3660
          %v3695 = vadd.f32 %v3694, 1.0
          %v3696 = vmul.f32 %v3695, %v3660
          %v3697 = vand.u32 2147483647, %v3660
          %vm3698 = vcmp.lt.f32.partialorder %v3697, 0.0004427343
          %v3699 = vsel %vm3698, %v3696, %v3693
          %v3700 = vadd.f32 %v3662, 1.0
          %v3701 = vlog2.pop %v3700
          %v3702 = vmul.f32 %v3701, 0.6931472
          %v3703 = vmul.f32 -0.5, %v3662
          %v3704 = vadd.f32 %v3703, 1.0
          %v3705 = vmul.f32 %v3704, %v3662
          %v3706 = vand.u32 2147483647, %v3662
          %vm3707 = vcmp.lt.f32.partialorder %v3706, 0.0004427343
          %v3708 = vsel %vm3707, %v3705, %v3702
          %v3709 = vadd.f32 %v3664, 1.0
          %v3710 = vlog2.pop %v3709
          %v3711 = vmul.f32 %v3710, 0.6931472
          %v3712 = vmul.f32 -0.5, %v3664
          %v3713 = vadd.f32 %v3712, 1.0
          %v3714 = vmul.f32 %v3713, %v3664
          %v3715 = vand.u32 2147483647, %v3664
          %vm3716 = vcmp.lt.f32.partialorder %v3715, 0.0004427343
          %v3717 = vsel %vm3716, %v3714, %v3711
          %v3718 = vadd.f32 %v3666, 1.0
          %v3719 = vlog2.pop %v3718
          %v3720 = vmul.f32 %v3719, 0.6931472
          %v3721 = vmul.f32 -0.5, %v3666
          %v3722 = vadd.f32 %v3721, 1.0
          %v3723 = vmul.f32 %v3722, %v3666
          %v3724 = vand.u32 2147483647, %v3666
          %vm3725 = vcmp.lt.f32.partialorder %v3724, 0.0004427343
          %v3726 = vsel %vm3725, %v3723, %v3720
          %v3727 = vadd.f32 %v3668, 1.0
          %v3728 = vlog2.pop %v3727
          %v3729 = vmul.f32 %v3728, 0.6931472
          %v3730 = vmul.f32 -0.5, %v3668
          %v3731 = vadd.f32 %v3730, 1.0
          %v3732 = vmul.f32 %v3731, %v3668
          %v3733 = vand.u32 2147483647, %v3668
          %vm3734 = vcmp.lt.f32.partialorder %v3733, 0.0004427343
          %v3735 = vsel %vm3734, %v3732, %v3729
          %v3736 = vadd.f32 %v3670, 1.0
          %v3737 = vlog2.pop %v3736
          %v3738 = vmul.f32 %v3737, 0.6931472
          %v3739 = vmul.f32 -0.5, %v3670
          %v3740 = vadd.f32 %v3739, 1.0
          %v3741 = vmul.f32 %v3740, %v3670
          %v3742 = vand.u32 2147483647, %v3670
          %vm3743 = vcmp.lt.f32.partialorder %v3742, 0.0004427343
          %v3744 = vsel %vm3743, %v3741, %v3738
          %v3745 = vadd.f32 %v3672, 1.0
          %v3746 = vlog2.pop %v3745
          %v3747 = vmul.f32 %v3746, 0.6931472
          %v3748 = vmul.f32 -0.5, %v3672
          %v3749 = vadd.f32 %v3748, 1.0
          %v3750 = vmul.f32 %v3749, %v3672
          %v3751 = vand.u32 2147483647, %v3672
          %vm3752 = vcmp.lt.f32.partialorder %v3751, 0.0004427343
          %v3753 = vsel %vm3752, %v3750, %v3747
          %v3754 = vadd.f32 %v3674, 1.0
          %v3755 = vlog2.pop %v3754
          %v3756 = vmul.f32 %v3755, 0.6931472
          %v3757 = vmul.f32 -0.5, %v3674
          %v3758 = vadd.f32 %v3757, 1.0
          %v3759 = vmul.f32 %v3758, %v3674
          %v3760 = vand.u32 2147483647, %v3674
          %vm3761 = vcmp.lt.f32.partialorder %v3760, 0.0004427343
          %v3762 = vsel %vm3761, %v3759, %v3756
          %v3763 = vadd.f32 %v3676, 1.0
          %v3764 = vlog2.pop %v3763
          %v3765 = vmul.f32 %v3764, 0.6931472
          %v3766 = vmul.f32 -0.5, %v3676
          %v3767 = vadd.f32 %v3766, 1.0
          %v3768 = vmul.f32 %v3767, %v3676
          %v3769 = vand.u32 2147483647, %v3676
          %vm3770 = vcmp.lt.f32.partialorder %v3769, 0.0004427343
          %v3771 = vsel %vm3770, %v3768, %v3765
          %v3772 = vadd.f32 %v3678, 1.0
          %v3773 = vlog2.pop %v3772
          %v3774 = vmul.f32 %v3773, 0.6931472
          %v3775 = vmul.f32 -0.5, %v3678
          %v3776 = vadd.f32 %v3775, 1.0
          %v3777 = vmul.f32 %v3776, %v3678
          %v3778 = vand.u32 2147483647, %v3678
          %vm3779 = vcmp.lt.f32.partialorder %v3778, 0.0004427343
          %v3780 = vsel %vm3779, %v3777, %v3774
          %v3781 = vadd.f32 %v3680, 1.0
          %v3782 = vlog2.pop %v3781
          %v3783 = vmul.f32 %v3782, 0.6931472
          %v3784 = vmul.f32 -0.5, %v3680
          %v3785 = vadd.f32 %v3784, 1.0
          %v3786 = vmul.f32 %v3785, %v3680
          %v3787 = vand.u32 2147483647, %v3680
          %vm3788 = vcmp.lt.f32.partialorder %v3787, 0.0004427343
          %v3789 = vsel %vm3788, %v3786, %v3783
          %v3790 = vadd.f32 %v3682, 1.0
          %v3791 = vlog2.pop %v3790
          %v3792 = vmul.f32 %v3791, 0.6931472
          %v3793 = vmul.f32 -0.5, %v3682
          %v3794 = vadd.f32 %v3793, 1.0
          %v3795 = vmul.f32 %v3794, %v3682
          %v3796 = vand.u32 2147483647, %v3682
          %vm3797 = vcmp.lt.f32.partialorder %v3796, 0.0004427343
          %v3798 = vsel %vm3797, %v3795, %v3792
          %v3799 = vadd.f32 %v3684, 1.0
          %v3800 = vlog2.pop %v3799
          %v3801 = vmul.f32 %v3800, 0.6931472
          %v3802 = vmul.f32 -0.5, %v3684
          %v3803 = vadd.f32 %v3802, 1.0
          %v3804 = vmul.f32 %v3803, %v3684
          %v3805 = vand.u32 2147483647, %v3684
          %vm3806 = vcmp.lt.f32.partialorder %v3805, 0.0004427343
          %v3807 = vsel %vm3806, %v3804, %v3801
          %v3808 = vadd.f32 %v3686, 1.0
          %v3809 = vlog2.pop %v3808
          %v3810 = vmul.f32 %v3809, 0.6931472
          %v3811 = vmul.f32 -0.5, %v3686
          %v3812 = vadd.f32 %v3811, 1.0
          %v3813 = vmul.f32 %v3812, %v3686
          %v3814 = vand.u32 2147483647, %v3686
          %vm3815 = vcmp.lt.f32.partialorder %v3814, 0.0004427343
          %v3816 = vsel %vm3815, %v3813, %v3810
          %v3817 = vadd.f32 %v3688, 1.0
          %v3818 = vlog2.pop %v3817
          %v3819 = vmul.f32 %v3818, 0.6931472
          %v3820 = vmul.f32 -0.5, %v3688
          %v3821 = vadd.f32 %v3820, 1.0
          %v3822 = vmul.f32 %v3821, %v3688
          %v3823 = vand.u32 2147483647, %v3688
          %vm3824 = vcmp.lt.f32.partialorder %v3823, 0.0004427343
          %v3825 = vsel %vm3824, %v3822, %v3819
          %v3826 = vadd.f32 %v3690, 1.0
          %v3827 = vlog2.pop %v3826
          %v3828 = vmul.f32 %v3827, 0.6931472
          %v3829 = vmul.f32 -0.5, %v3690
          %v3830 = vadd.f32 %v3829, 1.0
          %v3831 = vmul.f32 %v3830, %v3690
          %v3832 = vand.u32 2147483647, %v3690
          %vm3833 = vcmp.lt.f32.partialorder %v3832, 0.0004427343
          %v3834 = vsel %vm3833, %v3831, %v3828
          %v3835 = vadd.f32 %v3611, %v3699
          %v3836 = vadd.f32 %v3612, %v3708
          %v3837 = vadd.f32 %v3613, %v3717
          %v3838 = vadd.f32 %v3614, %v3726
          %v3839 = vadd.f32 %v3615, %v3735
          %v3840 = vadd.f32 %v3616, %v3744
          %v3841 = vadd.f32 %v3617, %v3753
          %v3842 = vadd.f32 %v3618, %v3762
          %v3843 = vadd.f32 %v3619, %v3771
          %v3844 = vadd.f32 %v3620, %v3780
          %v3845 = vadd.f32 %v3621, %v3789
          %v3846 = vadd.f32 %v3622, %v3798
          %v3847 = vadd.f32 %v3623, %v3807
          %v3848 = vadd.f32 %v3624, %v3816
          %v3849 = vadd.f32 %v3625, %v3825
          %v3850 = vadd.f32 %v3626, %v3834
          %v3851 = vsub.f32 %v3835, 0.6931472
          %v3852 = vsub.f32 %v3836, 0.6931472
          %v3853 = vsub.f32 %v3837, 0.6931472
          %v3854 = vsub.f32 %v3838, 0.6931472
          %v3855 = vsub.f32 %v3839, 0.6931472
          %v3856 = vsub.f32 %v3840, 0.6931472
          %v3857 = vsub.f32 %v3841, 0.6931472
          %v3858 = vsub.f32 %v3842, 0.6931472
          %v3859 = vsub.f32 %v3843, 0.6931472
          %v3860 = vsub.f32 %v3844, 0.6931472
          %v3861 = vsub.f32 %v3845, 0.6931472
          %v3862 = vsub.f32 %v3846, 0.6931472
          %v3863 = vsub.f32 %v3847, 0.6931472
          %v3864 = vsub.f32 %v3848, 0.6931472
          %v3865 = vsub.f32 %v3849, 0.6931472
          %v3866 = vsub.f32 %v3850, 0.6931472
          %v3867 = vpack.c.bf16 %v3852, %v3851
          %v3868 = vpack.c.bf16 %v3854, %v3853
          %v3869 = vpack.c.bf16 %v3856, %v3855
          %v3870 = vpack.c.bf16 %v3858, %v3857
          %v3871 = vpack.c.bf16 %v3860, %v3859
          %v3872 = vpack.c.bf16 %v3862, %v3861
          %v3873 = vpack.c.bf16 %v3864, %v3863
          %v3874 = vpack.c.bf16 %v3866, %v3865
          %s3875 = scalar_lea.vmem [#allocation16], 64
          %v3876 = vld [vmem:[%s3875] sm:$0xf]
          %v3877 = vld [vmem:[%s3875 + $0x4] sm:$0xf]
          %v3878 = vld [vmem:[%s3875 + $0x8] sm:$0xf]
          %v3879 = vld [vmem:[%s3875 + $0xc] sm:$0xf]
          %v3880 = vld [vmem:[%s3875 + $0x10] sm:$0xf]
          %v3881 = vld [vmem:[%s3875 + $0x14] sm:$0xf]
          %v3882 = vld [vmem:[%s3875 + $0x18] sm:$0xf]
          %v3883 = vld [vmem:[%s3875 + $0x1c] sm:$0xf]
          %v3884 = vld [vmem:[%s3875 + $0x20] sm:$0xf]
          %v3885 = vld [vmem:[%s3875 + $0x24] sm:$0xf]
          %v3886 = vld [vmem:[%s3875 + $0x28] sm:$0xf]
          %v3887 = vld [vmem:[%s3875 + $0x2c] sm:$0xf]
          %v3888 = vld [vmem:[%s3875 + $0x30] sm:$0xf]
          %v3889 = vld [vmem:[%s3875 + $0x34] sm:$0xf]
          %v3890 = vld [vmem:[%s3875 + $0x38] sm:$0xf]
          %v3891 = vld [vmem:[%s3875 + $0x3c] sm:$0xf]
          %s3892 = scalar_lea.vmem %s11, 1
          %v3893 = vld [vmem:[%s3892] sm:$0x1]
          %v3895 = vlaneseq
          %v3896 = vshrl.u32 %v3895, 7
          %v3897 = vsub.s32 0, %v3896
          %v3898 = vrot.slane %v3893, %v3897
          %v3916 = vunpack.c.l.b16 %v3876
          %v3917 = vunpack.c.l.b16 %v3877
          %v3918 = vunpack.c.l.b16 %v3878
          %v3919 = vunpack.c.l.b16 %v3879
          %v3920 = vunpack.c.l.b16 %v3880
          %v3921 = vunpack.c.l.b16 %v3881
          %v3922 = vunpack.c.l.b16 %v3882
          %v3923 = vunpack.c.l.b16 %v3883
          %v3924 = vunpack.c.l.b16 %v3884
          %v3925 = vunpack.c.l.b16 %v3885
          %v3926 = vunpack.c.l.b16 %v3886
          %v3927 = vunpack.c.l.b16 %v3887
          %v3928 = vunpack.c.l.b16 %v3888
          %v3929 = vunpack.c.l.b16 %v3889
          %v3930 = vunpack.c.l.b16 %v3890
          %v3931 = vunpack.c.l.b16 %v3891
          %v3932 = vpack.c.b16 %v3917, %v3916
          %v3933 = vpack.c.b16 %v3919, %v3918
          %v3934 = vpack.c.b16 %v3921, %v3920
          %v3935 = vpack.c.b16 %v3923, %v3922
          %v3936 = vpack.c.b16 %v3925, %v3924
          %v3937 = vpack.c.b16 %v3927, %v3926
          %v3938 = vpack.c.b16 %v3929, %v3928
          %v3939 = vpack.c.b16 %v3931, %v3930
          %3948 = vmatprep.subr.bf16.mxu0 0
          %3949 = vmatpush1.bf16.msra.mxu0 %v3932
          %3950 = vmatprep.subr.bf16.mxu0 0
          %3951 = vmatpush1.bf16.msra.mxu0 %v3933
          %3952 = vmatprep.subr.bf16.mxu0 0
          %3953 = vmatpush1.bf16.msra.mxu0 %v3934
          %3954 = vmatprep.subr.bf16.mxu0 0
          %3955 = vmatpush1.bf16.msra.mxu0 %v3935
          %3956 = vmatprep.subr.bf16.mxu0 0
          %3957 = vmatpush1.bf16.msra.mxu0 %v3936
          %3958 = vmatprep.subr.bf16.mxu0 0
          %3959 = vmatpush1.bf16.msra.mxu0 %v3937
          %3960 = vmatprep.subr.bf16.mxu0 0
          %3961 = vmatpush1.bf16.msra.mxu0 %v3938
          %3962 = vmatprep.subr.bf16.mxu0 0
          %3963 = vmatpush1.bf16.msra.mxu0 %v3939
          %3964 = vmatprep.subr.bf16.mxu0 0
          %3965 = vmatpush1.bf16.msra.mxu0 0
          %3966 = vmatprep.subr.bf16.mxu0 0
          %3967 = vmatpush1.bf16.msra.mxu0 0
          %3968 = vmatprep.subr.bf16.mxu0 0
          %3969 = vmatpush1.bf16.msra.mxu0 0
          %3970 = vmatprep.subr.bf16.mxu0 0
          %3971 = vmatpush1.bf16.msra.mxu0 0
          %3972 = vmatprep.subr.bf16.mxu0 0
          %3973 = vmatpush1.bf16.msra.mxu0 0
          %3974 = vmatprep.subr.bf16.mxu0 0
          %3975 = vmatpush1.bf16.msra.mxu0 0
          %3976 = vmatprep.subr.bf16.mxu0 0
          %3977 = vmatpush1.bf16.msra.mxu0 0
          %3978 = vmatprep.subr.bf16.mxu0 0
          %3979 = vmatpush1.bf16.msra.mxu0 0
          %3980 = vmatprep.mubr.bf16.mxu0 0
          %3981 = vmatmul.mubr.bf16.gmra.mrb[0].mxu0 %v3867
          %v3982 = vpop.f32.mrb[0].mxu0
          %v3983 = vadd.f32 %v3898, %v3982
          %v3984 = vpop.f32.mrb[0].mxu0
          %v3985 = vpop.f32.mrb[0].mxu0
          %v3986 = vadd.f32 %v3898, %v3985
          %v3987 = vpop.f32.mrb[0].mxu0
          %3988 = vmatprep.mubr.bf16.mxu0 0
          %3989 = vmatmul.mubr.bf16.gmra.mrb[0].mxu0 %v3868
          %v3990 = vpop.f32.mrb[0].mxu0
          %v3991 = vadd.f32 %v3898, %v3990
          %v3992 = vpop.f32.mrb[0].mxu0
          %v3993 = vpop.f32.mrb[0].mxu0
          %v3994 = vadd.f32 %v3898, %v3993
          %v3995 = vpop.f32.mrb[0].mxu0
          %3996 = vmatprep.mubr.bf16.mxu0 0
          %3997 = vmatmul.mubr.bf16.gmra.mrb[0].mxu0 %v3869
          %v3998 = vpop.f32.mrb[0].mxu0
          %v3999 = vadd.f32 %v3898, %v3998
          %v4000 = vpop.f32.mrb[0].mxu0
          %v4001 = vpop.f32.mrb[0].mxu0
          %v4002 = vadd.f32 %v3898, %v4001
          %v4003 = vpop.f32.mrb[0].mxu0
          %4004 = vmatprep.mubr.bf16.mxu0 0
          %4005 = vmatmul.mubr.bf16.gmra.mrb[0].mxu0 %v3870
          %v4006 = vpop.f32.mrb[0].mxu0
          %v4007 = vadd.f32 %v3898, %v4006
          %v4008 = vpop.f32.mrb[0].mxu0
          %v4009 = vpop.f32.mrb[0].mxu0
          %v4010 = vadd.f32 %v3898, %v4009
          %v4011 = vpop.f32.mrb[0].mxu0
          %4012 = vmatprep.mubr.bf16.mxu0 0
          %4013 = vmatmul.mubr.bf16.gmra.mrb[0].mxu0 %v3871
          %v4014 = vpop.f32.mrb[0].mxu0
          %v4015 = vadd.f32 %v3898, %v4014
          %v4016 = vpop.f32.mrb[0].mxu0
          %v4017 = vpop.f32.mrb[0].mxu0
          %v4018 = vadd.f32 %v3898, %v4017
          %v4019 = vpop.f32.mrb[0].mxu0
          %4020 = vmatprep.mubr.bf16.mxu0 0
          %4021 = vmatmul.mubr.bf16.gmra.mrb[0].mxu0 %v3872
          %v4022 = vpop.f32.mrb[0].mxu0
          %v4023 = vadd.f32 %v3898, %v4022
          %v4024 = vpop.f32.mrb[0].mxu0
          %v4025 = vpop.f32.mrb[0].mxu0
          %v4026 = vadd.f32 %v3898, %v4025
          %v4027 = vpop.f32.mrb[0].mxu0
          %4028 = vmatprep.mubr.bf16.mxu0 0
          %4029 = vmatmul.mubr.bf16.gmra.mrb[0].mxu0 %v3873
          %v4030 = vpop.f32.mrb[0].mxu0
          %v4031 = vadd.f32 %v3898, %v4030
          %v4032 = vpop.f32.mrb[0].mxu0
          %v4033 = vpop.f32.mrb[0].mxu0
          %v4034 = vadd.f32 %v3898, %v4033
          %v4035 = vpop.f32.mrb[0].mxu0
          %4036 = vmatprep.mubr.bf16.mxu0 0
          %4037 = vmatmul.mubr.bf16.gmra.mrb[0].mxu0 %v3874
          %v4038 = vpop.f32.mrb[0].mxu0
          %v4039 = vadd.f32 %v3898, %v4038
          %v4040 = vpop.f32.mrb[0].mxu0
          %v4041 = vpop.f32.mrb[0].mxu0
          %v4042 = vadd.f32 %v3898, %v4041
          %v4043 = vpop.f32.mrb[0].mxu0
          %4044 = vdwg.mxu0
          %v4045 = vmax.f32 %v3983, 0.0
          %v4046 = vmax.f32 %v3986, 0.0
          %v4047 = vmax.f32 %v3991, 0.0
          %v4048 = vmax.f32 %v3994, 0.0
          %v4049 = vmax.f32 %v3999, 0.0
          %v4050 = vmax.f32 %v4002, 0.0
          %v4051 = vmax.f32 %v4007, 0.0
          %v4052 = vmax.f32 %v4010, 0.0
          %v4053 = vmax.f32 %v4015, 0.0
          %v4054 = vmax.f32 %v4018, 0.0
          %v4055 = vmax.f32 %v4023, 0.0
          %v4056 = vmax.f32 %v4026, 0.0
          %v4057 = vmax.f32 %v4031, 0.0
          %v4058 = vmax.f32 %v4034, 0.0
          %v4059 = vmax.f32 %v4039, 0.0
          %v4060 = vmax.f32 %v4042, 0.0
          %v4061 = vand.u32 2147483647, %v3983
          %v4062 = vand.u32 2147483647, %v3986
          %v4063 = vand.u32 2147483647, %v3991
          %v4064 = vand.u32 2147483647, %v3994
          %v4065 = vand.u32 2147483647, %v3999
          %v4066 = vand.u32 2147483647, %v4002
          %v4067 = vand.u32 2147483647, %v4007
          %v4068 = vand.u32 2147483647, %v4010
          %v4069 = vand.u32 2147483647, %v4015
          %v4070 = vand.u32 2147483647, %v4018
          %v4071 = vand.u32 2147483647, %v4023
          %v4072 = vand.u32 2147483647, %v4026
          %v4073 = vand.u32 2147483647, %v4031
          %v4074 = vand.u32 2147483647, %v4034
          %v4075 = vand.u32 2147483647, %v4039
          %v4076 = vand.u32 2147483647, %v4042
          %v4077 = vsub.f32 0.0, %v4061
          %v4078 = vsub.f32 0.0, %v4062
          %v4079 = vsub.f32 0.0, %v4063
          %v4080 = vsub.f32 0.0, %v4064
          %v4081 = vsub.f32 0.0, %v4065
          %v4082 = vsub.f32 0.0, %v4066
          %v4083 = vsub.f32 0.0, %v4067
          %v4084 = vsub.f32 0.0, %v4068
          %v4085 = vsub.f32 0.0, %v4069
          %v4086 = vsub.f32 0.0, %v4070
          %v4087 = vsub.f32 0.0, %v4071
          %v4088 = vsub.f32 0.0, %v4072
          %v4089 = vsub.f32 0.0, %v4073
          %v4090 = vsub.f32 0.0, %v4074
          %v4091 = vsub.f32 0.0, %v4075
          %v4092 = vsub.f32 0.0, %v4076
          %v4093 = vmul.f32 %v4077, 1.442695
          %v4094 = vpow.pop %v4093
          %v4095 = vmul.f32 %v4078, 1.442695
          %v4096 = vpow.pop %v4095
          %v4097 = vmul.f32 %v4079, 1.442695
          %v4098 = vpow.pop %v4097
          %v4099 = vmul.f32 %v4080, 1.442695
          %v4100 = vpow.pop %v4099
          %v4101 = vmul.f32 %v4081, 1.442695
          %v4102 = vpow.pop %v4101
          %v4103 = vmul.f32 %v4082, 1.442695
          %v4104 = vpow.pop %v4103
          %v4105 = vmul.f32 %v4083, 1.442695
          %v4106 = vpow.pop %v4105
          %v4107 = vmul.f32 %v4084, 1.442695
          %v4108 = vpow.pop %v4107
          %v4109 = vmul.f32 %v4085, 1.442695
          %v4110 = vpow.pop %v4109
          %v4111 = vmul.f32 %v4086, 1.442695
          %v4112 = vpow.pop %v4111
          %v4113 = vmul.f32 %v4087, 1.442695
          %v4114 = vpow.pop %v4113
          %v4115 = vmul.f32 %v4088, 1.442695
          %v4116 = vpow.pop %v4115
          %v4117 = vmul.f32 %v4089, 1.442695
          %v4118 = vpow.pop %v4117
          %v4119 = vmul.f32 %v4090, 1.442695
          %v4120 = vpow.pop %v4119
          %v4121 = vmul.f32 %v4091, 1.442695
          %v4122 = vpow.pop %v4121
          %v4123 = vmul.f32 %v4092, 1.442695
          %v4124 = vpow.pop %v4123
          %v4125 = vadd.f32 %v4094, 1.0
          %v4126 = vlog2.pop %v4125
          %v4127 = vmul.f32 %v4126, 0.6931472
          %v4128 = vmul.f32 -0.5, %v4094
          %v4129 = vadd.f32 %v4128, 1.0
          %v4130 = vmul.f32 %v4129, %v4094
          %v4131 = vand.u32 2147483647, %v4094
          %vm4132 = vcmp.lt.f32.partialorder %v4131, 0.0004427343
          %v4133 = vsel %vm4132, %v4130, %v4127
          %v4134 = vadd.f32 %v4096, 1.0
          %v4135 = vlog2.pop %v4134
          %v4136 = vmul.f32 %v4135, 0.6931472
          %v4137 = vmul.f32 -0.5, %v4096
          %v4138 = vadd.f32 %v4137, 1.0
          %v4139 = vmul.f32 %v4138, %v4096
          %v4140 = vand.u32 2147483647, %v4096
          %vm4141 = vcmp.lt.f32.partialorder %v4140, 0.0004427343
          %v4142 = vsel %vm4141, %v4139, %v4136
          %v4143 = vadd.f32 %v4098, 1.0
          %v4144 = vlog2.pop %v4143
          %v4145 = vmul.f32 %v4144, 0.6931472
          %v4146 = vmul.f32 -0.5, %v4098
          %v4147 = vadd.f32 %v4146, 1.0
          %v4148 = vmul.f32 %v4147, %v4098
          %v4149 = vand.u32 2147483647, %v4098
          %vm4150 = vcmp.lt.f32.partialorder %v4149, 0.0004427343
          %v4151 = vsel %vm4150, %v4148, %v4145
          %v4152 = vadd.f32 %v4100, 1.0
          %v4153 = vlog2.pop %v4152
          %v4154 = vmul.f32 %v4153, 0.6931472
          %v4155 = vmul.f32 -0.5, %v4100
          %v4156 = vadd.f32 %v4155, 1.0
          %v4157 = vmul.f32 %v4156, %v4100
          %v4158 = vand.u32 2147483647, %v4100
          %vm4159 = vcmp.lt.f32.partialorder %v4158, 0.0004427343
          %v4160 = vsel %vm4159, %v4157, %v4154
          %v4161 = vadd.f32 %v4102, 1.0
          %v4162 = vlog2.pop %v4161
          %v4163 = vmul.f32 %v4162, 0.6931472
          %v4164 = vmul.f32 -0.5, %v4102
          %v4165 = vadd.f32 %v4164, 1.0
          %v4166 = vmul.f32 %v4165, %v4102
          %v4167 = vand.u32 2147483647, %v4102
          %vm4168 = vcmp.lt.f32.partialorder %v4167, 0.0004427343
          %v4169 = vsel %vm4168, %v4166, %v4163
          %v4170 = vadd.f32 %v4104, 1.0
          %v4171 = vlog2.pop %v4170
          %v4172 = vmul.f32 %v4171, 0.6931472
          %v4173 = vmul.f32 -0.5, %v4104
          %v4174 = vadd.f32 %v4173, 1.0
          %v4175 = vmul.f32 %v4174, %v4104
          %v4176 = vand.u32 2147483647, %v4104
          %vm4177 = vcmp.lt.f32.partialorder %v4176, 0.0004427343
          %v4178 = vsel %vm4177, %v4175, %v4172
          %v4179 = vadd.f32 %v4106, 1.0
          %v4180 = vlog2.pop %v4179
          %v4181 = vmul.f32 %v4180, 0.6931472
          %v4182 = vmul.f32 -0.5, %v4106
          %v4183 = vadd.f32 %v4182, 1.0
          %v4184 = vmul.f32 %v4183, %v4106
          %v4185 = vand.u32 2147483647, %v4106
          %vm4186 = vcmp.lt.f32.partialorder %v4185, 0.0004427343
          %v4187 = vsel %vm4186, %v4184, %v4181
          %v4188 = vadd.f32 %v4108, 1.0
          %v4189 = vlog2.pop %v4188
          %v4190 = vmul.f32 %v4189, 0.6931472
          %v4191 = vmul.f32 -0.5, %v4108
          %v4192 = vadd.f32 %v4191, 1.0
          %v4193 = vmul.f32 %v4192, %v4108
          %v4194 = vand.u32 2147483647, %v4108
          %vm4195 = vcmp.lt.f32.partialorder %v4194, 0.0004427343
          %v4196 = vsel %vm4195, %v4193, %v4190
          %v4197 = vadd.f32 %v4110, 1.0
          %v4198 = vlog2.pop %v4197
          %v4199 = vmul.f32 %v4198, 0.6931472
          %v4200 = vmul.f32 -0.5, %v4110
          %v4201 = vadd.f32 %v4200, 1.0
          %v4202 = vmul.f32 %v4201, %v4110
          %v4203 = vand.u32 2147483647, %v4110
          %vm4204 = vcmp.lt.f32.partialorder %v4203, 0.0004427343
          %v4205 = vsel %vm4204, %v4202, %v4199
          %v4206 = vadd.f32 %v4112, 1.0
          %v4207 = vlog2.pop %v4206
          %v4208 = vmul.f32 %v4207, 0.6931472
          %v4209 = vmul.f32 -0.5, %v4112
          %v4210 = vadd.f32 %v4209, 1.0
          %v4211 = vmul.f32 %v4210, %v4112
          %v4212 = vand.u32 2147483647, %v4112
          %vm4213 = vcmp.lt.f32.partialorder %v4212, 0.0004427343
          %v4214 = vsel %vm4213, %v4211, %v4208
          %v4215 = vadd.f32 %v4114, 1.0
          %v4216 = vlog2.pop %v4215
          %v4217 = vmul.f32 %v4216, 0.6931472
          %v4218 = vmul.f32 -0.5, %v4114
          %v4219 = vadd.f32 %v4218, 1.0
          %v4220 = vmul.f32 %v4219, %v4114
          %v4221 = vand.u32 2147483647, %v4114
          %vm4222 = vcmp.lt.f32.partialorder %v4221, 0.0004427343
          %v4223 = vsel %vm4222, %v4220, %v4217
          %v4224 = vadd.f32 %v4116, 1.0
          %v4225 = vlog2.pop %v4224
          %v4226 = vmul.f32 %v4225, 0.6931472
          %v4227 = vmul.f32 -0.5, %v4116
          %v4228 = vadd.f32 %v4227, 1.0
          %v4229 = vmul.f32 %v4228, %v4116
          %v4230 = vand.u32 2147483647, %v4116
          %vm4231 = vcmp.lt.f32.partialorder %v4230, 0.0004427343
          %v4232 = vsel %vm4231, %v4229, %v4226
          %v4233 = vadd.f32 %v4118, 1.0
          %v4234 = vlog2.pop %v4233
          %v4235 = vmul.f32 %v4234, 0.6931472
          %v4236 = vmul.f32 -0.5, %v4118
          %v4237 = vadd.f32 %v4236, 1.0
          %v4238 = vmul.f32 %v4237, %v4118
          %v4239 = vand.u32 2147483647, %v4118
          %vm4240 = vcmp.lt.f32.partialorder %v4239, 0.0004427343
          %v4241 = vsel %vm4240, %v4238, %v4235
          %v4242 = vadd.f32 %v4120, 1.0
          %v4243 = vlog2.pop %v4242
          %v4244 = vmul.f32 %v4243, 0.6931472
          %v4245 = vmul.f32 -0.5, %v4120
          %v4246 = vadd.f32 %v4245, 1.0
          %v4247 = vmul.f32 %v4246, %v4120
          %v4248 = vand.u32 2147483647, %v4120
          %vm4249 = vcmp.lt.f32.partialorder %v4248, 0.0004427343
          %v4250 = vsel %vm4249, %v4247, %v4244
          %v4251 = vadd.f32 %v4122, 1.0
          %v4252 = vlog2.pop %v4251
          %v4253 = vmul.f32 %v4252, 0.6931472
          %v4254 = vmul.f32 -0.5, %v4122
          %v4255 = vadd.f32 %v4254, 1.0
          %v4256 = vmul.f32 %v4255, %v4122
          %v4257 = vand.u32 2147483647, %v4122
          %vm4258 = vcmp.lt.f32.partialorder %v4257, 0.0004427343
          %v4259 = vsel %vm4258, %v4256, %v4253
          %v4260 = vadd.f32 %v4124, 1.0
          %v4261 = vlog2.pop %v4260
          %v4262 = vmul.f32 %v4261, 0.6931472
          %v4263 = vmul.f32 -0.5, %v4124
          %v4264 = vadd.f32 %v4263, 1.0
          %v4265 = vmul.f32 %v4264, %v4124
          %v4266 = vand.u32 2147483647, %v4124
          %vm4267 = vcmp.lt.f32.partialorder %v4266, 0.0004427343
          %v4268 = vsel %vm4267, %v4265, %v4262
          %v4269 = vadd.f32 %v4045, %v4133
          %v4270 = vadd.f32 %v4046, %v4142
          %v4271 = vadd.f32 %v4047, %v4151
          %v4272 = vadd.f32 %v4048, %v4160
          %v4273 = vadd.f32 %v4049, %v4169
          %v4274 = vadd.f32 %v4050, %v4178
          %v4275 = vadd.f32 %v4051, %v4187
          %v4276 = vadd.f32 %v4052, %v4196
          %v4277 = vadd.f32 %v4053, %v4205
          %v4278 = vadd.f32 %v4054, %v4214
          %v4279 = vadd.f32 %v4055, %v4223
          %v4280 = vadd.f32 %v4056, %v4232
          %v4281 = vadd.f32 %v4057, %v4241
          %v4282 = vadd.f32 %v4058, %v4250
          %v4283 = vadd.f32 %v4059, %v4259
          %v4284 = vadd.f32 %v4060, %v4268
          %v4285 = vsub.f32 %v4269, 0.6931472
          %v4286 = vsub.f32 %v4270, 0.6931472
          %v4287 = vsub.f32 %v4271, 0.6931472
          %v4288 = vsub.f32 %v4272, 0.6931472
          %v4289 = vsub.f32 %v4273, 0.6931472
          %v4290 = vsub.f32 %v4274, 0.6931472
          %v4291 = vsub.f32 %v4275, 0.6931472
          %v4292 = vsub.f32 %v4276, 0.6931472
          %v4293 = vsub.f32 %v4277, 0.6931472
          %v4294 = vsub.f32 %v4278, 0.6931472
          %v4295 = vsub.f32 %v4279, 0.6931472
          %v4296 = vsub.f32 %v4280, 0.6931472
          %v4297 = vsub.f32 %v4281, 0.6931472
          %v4298 = vsub.f32 %v4282, 0.6931472
          %v4299 = vsub.f32 %v4283, 0.6931472
          %v4300 = vsub.f32 %v4284, 0.6931472
          %v4301 = vpack.c.bf16 %v4286, %v4285
          %v4302 = vpack.c.bf16 %v4288, %v4287
          %v4303 = vpack.c.bf16 %v4290, %v4289
          %v4304 = vpack.c.bf16 %v4292, %v4291
          %v4305 = vpack.c.bf16 %v4294, %v4293
          %v4306 = vpack.c.bf16 %v4296, %v4295
          %v4307 = vpack.c.bf16 %v4298, %v4297
          %v4308 = vpack.c.bf16 %v4300, %v4299
          %s4309 = scalar_lea.vmem [#allocation17], 64
          %v4310 = vld [vmem:[%s4309] sm:$0xf]
          %v4311 = vld [vmem:[%s4309 + $0x4] sm:$0xf]
          %v4312 = vld [vmem:[%s4309 + $0x8] sm:$0xf]
          %v4313 = vld [vmem:[%s4309 + $0xc] sm:$0xf]
          %v4314 = vld [vmem:[%s4309 + $0x10] sm:$0xf]
          %v4315 = vld [vmem:[%s4309 + $0x14] sm:$0xf]
          %v4316 = vld [vmem:[%s4309 + $0x18] sm:$0xf]
          %v4317 = vld [vmem:[%s4309 + $0x1c] sm:$0xf]
          %v4318 = vld [vmem:[%s4309 + $0x20] sm:$0xf]
          %v4319 = vld [vmem:[%s4309 + $0x24] sm:$0xf]
          %v4320 = vld [vmem:[%s4309 + $0x28] sm:$0xf]
          %v4321 = vld [vmem:[%s4309 + $0x2c] sm:$0xf]
          %v4322 = vld [vmem:[%s4309 + $0x30] sm:$0xf]
          %v4323 = vld [vmem:[%s4309 + $0x34] sm:$0xf]
          %v4324 = vld [vmem:[%s4309 + $0x38] sm:$0xf]
          %v4325 = vld [vmem:[%s4309 + $0x3c] sm:$0xf]
          %s4326 = scalar_lea.vmem %s13, 1
          %v4327 = vld [vmem:[%s4326] sm:$0x1]
          %v4329 = vlaneseq
          %v4330 = vshrl.u32 %v4329, 7
          %v4331 = vsub.s32 0, %v4330
          %v4332 = vrot.slane %v4327, %v4331
          %v4350 = vunpack.c.l.b16 %v4310
          %v4351 = vunpack.c.l.b16 %v4311
          %v4352 = vunpack.c.l.b16 %v4312
          %v4353 = vunpack.c.l.b16 %v4313
          %v4354 = vunpack.c.l.b16 %v4314
          %v4355 = vunpack.c.l.b16 %v4315
          %v4356 = vunpack.c.l.b16 %v4316
          %v4357 = vunpack.c.l.b16 %v4317
          %v4358 = vunpack.c.l.b16 %v4318
          %v4359 = vunpack.c.l.b16 %v4319
          %v4360 = vunpack.c.l.b16 %v4320
          %v4361 = vunpack.c.l.b16 %v4321
          %v4362 = vunpack.c.l.b16 %v4322
          %v4363 = vunpack.c.l.b16 %v4323
          %v4364 = vunpack.c.l.b16 %v4324
          %v4365 = vunpack.c.l.b16 %v4325
          %v4366 = vpack.c.b16 %v4351, %v4350
          %v4367 = vpack.c.b16 %v4353, %v4352
          %v4368 = vpack.c.b16 %v4355, %v4354
          %v4369 = vpack.c.b16 %v4357, %v4356
          %v4370 = vpack.c.b16 %v4359, %v4358
          %v4371 = vpack.c.b16 %v4361, %v4360
          %v4372 = vpack.c.b16 %v4363, %v4362
          %v4373 = vpack.c.b16 %v4365, %v4364
          %4382 = vmatprep.subr.bf16.mxu0 0
          %4383 = vmatpush1.bf16.msra.mxu0 %v4366
          %4384 = vmatprep.subr.bf16.mxu0 0
          %4385 = vmatpush1.bf16.msra.mxu0 %v4367
          %4386 = vmatprep.subr.bf16.mxu0 0
          %4387 = vmatpush1.bf16.msra.mxu0 %v4368
          %4388 = vmatprep.subr.bf16.mxu0 0
          %4389 = vmatpush1.bf16.msra.mxu0 %v4369
          %4390 = vmatprep.subr.bf16.mxu0 0
          %4391 = vmatpush1.bf16.msra.mxu0 %v4370
          %4392 = vmatprep.subr.bf16.mxu0 0
          %4393 = vmatpush1.bf16.msra.mxu0 %v4371
          %4394 = vmatprep.subr.bf16.mxu0 0
          %4395 = vmatpush1.bf16.msra.mxu0 %v4372
          %4396 = vmatprep.subr.bf16.mxu0 0
          %4397 = vmatpush1.bf16.msra.mxu0 %v4373
          %4398 = vmatprep.subr.bf16.mxu0 0
          %4399 = vmatpush1.bf16.msra.mxu0 0
          %4400 = vmatprep.subr.bf16.mxu0 0
          %4401 = vmatpush1.bf16.msra.mxu0 0
          %4402 = vmatprep.subr.bf16.mxu0 0
          %4403 = vmatpush1.bf16.msra.mxu0 0
          %4404 = vmatprep.subr.bf16.mxu0 0
          %4405 = vmatpush1.bf16.msra.mxu0 0
          %4406 = vmatprep.subr.bf16.mxu0 0
          %4407 = vmatpush1.bf16.msra.mxu0 0
          %4408 = vmatprep.subr.bf16.mxu0 0
          %4409 = vmatpush1.bf16.msra.mxu0 0
          %4410 = vmatprep.subr.bf16.mxu0 0
          %4411 = vmatpush1.bf16.msra.mxu0 0
          %4412 = vmatprep.subr.bf16.mxu0 0
          %4413 = vmatpush1.bf16.msra.mxu0 0
          %4414 = vmatprep.mubr.bf16.mxu0 0
          %4415 = vmatmul.mubr.bf16.gmra.mrb[0].mxu0 %v4301
          %v4416 = vpop.f32.mrb[0].mxu0
          %v4417 = vadd.f32 %v4332, %v4416
          %v4418 = vpop.f32.mrb[0].mxu0
          %v4419 = vpop.f32.mrb[0].mxu0
          %v4420 = vadd.f32 %v4332, %v4419
          %v4421 = vpop.f32.mrb[0].mxu0
          %4422 = vmatprep.mubr.bf16.mxu0 0
          %4423 = vmatmul.mubr.bf16.gmra.mrb[0].mxu0 %v4302
          %v4424 = vpop.f32.mrb[0].mxu0
          %v4425 = vadd.f32 %v4332, %v4424
          %v4426 = vpop.f32.mrb[0].mxu0
          %v4427 = vpop.f32.mrb[0].mxu0
          %v4428 = vadd.f32 %v4332, %v4427
          %v4429 = vpop.f32.mrb[0].mxu0
          %4430 = vmatprep.mubr.bf16.mxu0 0
          %4431 = vmatmul.mubr.bf16.gmra.mrb[0].mxu0 %v4303
          %v4432 = vpop.f32.mrb[0].mxu0
          %v4433 = vadd.f32 %v4332, %v4432
          %v4434 = vpop.f32.mrb[0].mxu0
          %v4435 = vpop.f32.mrb[0].mxu0
          %v4436 = vadd.f32 %v4332, %v4435
          %v4437 = vpop.f32.mrb[0].mxu0
          %4438 = vmatprep.mubr.bf16.mxu0 0
          %4439 = vmatmul.mubr.bf16.gmra.mrb[0].mxu0 %v4304
          %v4440 = vpop.f32.mrb[0].mxu0
          %v4441 = vadd.f32 %v4332, %v4440
          %v4442 = vpop.f32.mrb[0].mxu0
          %v4443 = vpop.f32.mrb[0].mxu0
          %v4444 = vadd.f32 %v4332, %v4443
          %v4445 = vpop.f32.mrb[0].mxu0
          %4446 = vmatprep.mubr.bf16.mxu0 0
          %4447 = vmatmul.mubr.bf16.gmra.mrb[0].mxu0 %v4305
          %v4448 = vpop.f32.mrb[0].mxu0
          %v4449 = vadd.f32 %v4332, %v4448
          %v4450 = vpop.f32.mrb[0].mxu0
          %v4451 = vpop.f32.mrb[0].mxu0
          %v4452 = vadd.f32 %v4332, %v4451
          %v4453 = vpop.f32.mrb[0].mxu0
          %4454 = vmatprep.mubr.bf16.mxu0 0
          %4455 = vmatmul.mubr.bf16.gmra.mrb[0].mxu0 %v4306
          %v4456 = vpop.f32.mrb[0].mxu0
          %v4457 = vadd.f32 %v4332, %v4456
          %v4458 = vpop.f32.mrb[0].mxu0
          %v4459 = vpop.f32.mrb[0].mxu0
          %v4460 = vadd.f32 %v4332, %v4459
          %v4461 = vpop.f32.mrb[0].mxu0
          %4462 = vmatprep.mubr.bf16.mxu0 0
          %4463 = vmatmul.mubr.bf16.gmra.mrb[0].mxu0 %v4307
          %v4464 = vpop.f32.mrb[0].mxu0
          %v4465 = vadd.f32 %v4332, %v4464
          %v4466 = vpop.f32.mrb[0].mxu0
          %v4467 = vpop.f32.mrb[0].mxu0
          %v4468 = vadd.f32 %v4332, %v4467
          %v4469 = vpop.f32.mrb[0].mxu0
          %4470 = vmatprep.mubr.bf16.mxu0 0
          %4471 = vmatmul.mubr.bf16.gmra.mrb[0].mxu0 %v4308
          %v4472 = vpop.f32.mrb[0].mxu0
          %v4473 = vadd.f32 %v4332, %v4472
          %v4474 = vpop.f32.mrb[0].mxu0
          %v4475 = vpop.f32.mrb[0].mxu0
          %v4476 = vadd.f32 %v4332, %v4475
          %v4477 = vpop.f32.mrb[0].mxu0
          %4478 = vdwg.mxu0
          %v4479 = vadd.f32 %v3595, %v4417
          %v4480 = vadd.f32 %v3596, %v4420
          %v4481 = vadd.f32 %v3597, %v4425
          %v4482 = vadd.f32 %v3598, %v4428
          %v4483 = vadd.f32 %v3599, %v4433
          %v4484 = vadd.f32 %v3600, %v4436
          %v4485 = vadd.f32 %v3601, %v4441
          %v4486 = vadd.f32 %v3602, %v4444
          %v4487 = vadd.f32 %v3603, %v4449
          %v4488 = vadd.f32 %v3604, %v4452
          %v4489 = vadd.f32 %v3605, %v4457
          %v4490 = vadd.f32 %v3606, %v4460
          %v4491 = vadd.f32 %v3607, %v4465
          %v4492 = vadd.f32 %v3608, %v4468
          %v4493 = vadd.f32 %v3609, %v4473
          %v4494 = vadd.f32 %v3610, %v4476
          %v4495 = vpack.c.bf16 %v4480, %v4479
          %v4496 = vpack.c.bf16 %v4482, %v4481
          %v4497 = vpack.c.bf16 %v4484, %v4483
          %v4498 = vpack.c.bf16 %v4486, %v4485
          %v4499 = vpack.c.bf16 %v4488, %v4487
          %v4500 = vpack.c.bf16 %v4490, %v4489
          %v4501 = vpack.c.bf16 %v4492, %v4491
          %v4502 = vpack.c.bf16 %v4494, %v4493
          %v4503 = vld [vmem:[#allocation19] sm:$0xf]
          %v4504 = vld [vmem:[#allocation19 + $0x4] sm:$0xf]
          %v4505 = vld [vmem:[#allocation19 + $0x8] sm:$0xf]
          %v4506 = vld [vmem:[#allocation19 + $0xc] sm:$0xf]
          %v4507 = vld [vmem:[#allocation19 + $0x10] sm:$0xf]
          %v4508 = vld [vmem:[#allocation19 + $0x14] sm:$0xf]
          %v4509 = vld [vmem:[#allocation19 + $0x18] sm:$0xf]
          %v4510 = vld [vmem:[#allocation19 + $0x1c] sm:$0xf]
          %v4511 = vld [vmem:[#allocation19 + $0x20] sm:$0xf]
          %v4512 = vld [vmem:[#allocation19 + $0x24] sm:$0xf]
          %v4513 = vld [vmem:[#allocation19 + $0x28] sm:$0xf]
          %v4514 = vld [vmem:[#allocation19 + $0x2c] sm:$0xf]
          %v4515 = vld [vmem:[#allocation19 + $0x30] sm:$0xf]
          %v4516 = vld [vmem:[#allocation19 + $0x34] sm:$0xf]
          %v4517 = vld [vmem:[#allocation19 + $0x38] sm:$0xf]
          %v4518 = vld [vmem:[#allocation19 + $0x3c] sm:$0xf]
          %v4519 = vld [vmem:[%s15] sm:$0x1]
          %v4521 = vlaneseq
          %v4522 = vshrl.u32 %v4521, 7
          %v4523 = vsub.s32 0, %v4522
          %v4524 = vrot.slane %v4519, %v4523
          %v4542 = vunpack.c.l.b16 %v4503
          %v4543 = vunpack.c.l.b16 %v4504
          %v4544 = vunpack.c.l.b16 %v4505
          %v4545 = vunpack.c.l.b16 %v4506
          %v4546 = vunpack.c.l.b16 %v4507
          %v4547 = vunpack.c.l.b16 %v4508
          %v4548 = vunpack.c.l.b16 %v4509
          %v4549 = vunpack.c.l.b16 %v4510
          %v4550 = vunpack.c.l.b16 %v4511
          %v4551 = vunpack.c.l.b16 %v4512
          %v4552 = vunpack.c.l.b16 %v4513
          %v4553 = vunpack.c.l.b16 %v4514
          %v4554 = vunpack.c.l.b16 %v4515
          %v4555 = vunpack.c.l.b16 %v4516
          %v4556 = vunpack.c.l.b16 %v4517
          %v4557 = vunpack.c.l.b16 %v4518
          %v4558 = vpack.c.b16 %v4543, %v4542
          %v4559 = vpack.c.b16 %v4545, %v4544
          %v4560 = vpack.c.b16 %v4547, %v4546
          %v4561 = vpack.c.b16 %v4549, %v4548
          %v4562 = vpack.c.b16 %v4551, %v4550
          %v4563 = vpack.c.b16 %v4553, %v4552
          %v4564 = vpack.c.b16 %v4555, %v4554
          %v4565 = vpack.c.b16 %v4557, %v4556
          %4574 = vmatprep.subr.bf16.mxu0 0
          %4575 = vmatpush1.bf16.msra.mxu0 %v4558
          %4576 = vmatprep.subr.bf16.mxu0 0
          %4577 = vmatpush1.bf16.msra.mxu0 %v4559
          %4578 = vmatprep.subr.bf16.mxu0 0
          %4579 = vmatpush1.bf16.msra.mxu0 %v4560
          %4580 = vmatprep.subr.bf16.mxu0 0
          %4581 = vmatpush1.bf16.msra.mxu0 %v4561
          %4582 = vmatprep.subr.bf16.mxu0 0
          %4583 = vmatpush1.bf16.msra.mxu0 %v4562
          %4584 = vmatprep.subr.bf16.mxu0 0
          %4585 = vmatpush1.bf16.msra.mxu0 %v4563
          %4586 = vmatprep.subr.bf16.mxu0 0
          %4587 = vmatpush1.bf16.msra.mxu0 %v4564
          %4588 = vmatprep.subr.bf16.mxu0 0
          %4589 = vmatpush1.bf16.msra.mxu0 %v4565
          %4590 = vmatprep.subr.bf16.mxu0 0
          %4591 = vmatpush1.bf16.msra.mxu0 0
          %4592 = vmatprep.subr.bf16.mxu0 0
          %4593 = vmatpush1.bf16.msra.mxu0 0
          %4594 = vmatprep.subr.bf16.mxu0 0
          %4595 = vmatpush1.bf16.msra.mxu0 0
          %4596 = vmatprep.subr.bf16.mxu0 0
          %4597 = vmatpush1.bf16.msra.mxu0 0
          %4598 = vmatprep.subr.bf16.mxu0 0
          %4599 = vmatpush1.bf16.msra.mxu0 0
          %4600 = vmatprep.subr.bf16.mxu0 0
          %4601 = vmatpush1.bf16.msra.mxu0 0
          %4602 = vmatprep.subr.bf16.mxu0 0
          %4603 = vmatpush1.bf16.msra.mxu0 0
          %4604 = vmatprep.subr.bf16.mxu0 0
          %4605 = vmatpush1.bf16.msra.mxu0 0
          %4606 = vmatprep.mubr.bf16.mxu0 0
          %4607 = vmatmul.mubr.bf16.gmra.mrb[0].mxu0 %v4495
          %v4608 = vpop.f32.mrb[0].mxu0
          %v4609 = vadd.f32 %v4524, %v4608
          %v4610 = vpop.f32.mrb[0].mxu0
          %v4611 = vpop.f32.mrb[0].mxu0
          %v4612 = vadd.f32 %v4524, %v4611
          %v4613 = vpop.f32.mrb[0].mxu0
          %4614 = vmatprep.mubr.bf16.mxu0 0
          %4615 = vmatmul.mubr.bf16.gmra.mrb[0].mxu0 %v4496
          %v4616 = vpop.f32.mrb[0].mxu0
          %v4617 = vadd.f32 %v4524, %v4616
          %v4618 = vpop.f32.mrb[0].mxu0
          %v4619 = vpop.f32.mrb[0].mxu0
          %v4620 = vadd.f32 %v4524, %v4619
          %v4621 = vpop.f32.mrb[0].mxu0
          %4622 = vmatprep.mubr.bf16.mxu0 0
          %4623 = vmatmul.mubr.bf16.gmra.mrb[0].mxu0 %v4497
          %v4624 = vpop.f32.mrb[0].mxu0
          %v4625 = vadd.f32 %v4524, %v4624
          %v4626 = vpop.f32.mrb[0].mxu0
          %v4627 = vpop.f32.mrb[0].mxu0
          %v4628 = vadd.f32 %v4524, %v4627
          %v4629 = vpop.f32.mrb[0].mxu0
          %4630 = vmatprep.mubr.bf16.mxu0 0
          %4631 = vmatmul.mubr.bf16.gmra.mrb[0].mxu0 %v4498
          %v4632 = vpop.f32.mrb[0].mxu0
          %v4633 = vadd.f32 %v4524, %v4632
          %v4634 = vpop.f32.mrb[0].mxu0
          %v4635 = vpop.f32.mrb[0].mxu0
          %v4636 = vadd.f32 %v4524, %v4635
          %v4637 = vpop.f32.mrb[0].mxu0
          %4638 = vmatprep.mubr.bf16.mxu0 0
          %4639 = vmatmul.mubr.bf16.gmra.mrb[0].mxu0 %v4499
          %v4640 = vpop.f32.mrb[0].mxu0
          %v4641 = vadd.f32 %v4524, %v4640
          %v4642 = vpop.f32.mrb[0].mxu0
          %v4643 = vpop.f32.mrb[0].mxu0
          %v4644 = vadd.f32 %v4524, %v4643
          %v4645 = vpop.f32.mrb[0].mxu0
          %4646 = vmatprep.mubr.bf16.mxu0 0
          %4647 = vmatmul.mubr.bf16.gmra.mrb[0].mxu0 %v4500
          %v4648 = vpop.f32.mrb[0].mxu0
          %v4649 = vadd.f32 %v4524, %v4648
          %v4650 = vpop.f32.mrb[0].mxu0
          %v4651 = vpop.f32.mrb[0].mxu0
          %v4652 = vadd.f32 %v4524, %v4651
          %v4653 = vpop.f32.mrb[0].mxu0
          %4654 = vmatprep.mubr.bf16.mxu0 0
          %4655 = vmatmul.mubr.bf16.gmra.mrb[0].mxu0 %v4501
          %v4656 = vpop.f32.mrb[0].mxu0
          %v4657 = vadd.f32 %v4524, %v4656
          %v4658 = vpop.f32.mrb[0].mxu0
          %v4659 = vpop.f32.mrb[0].mxu0
          %v4660 = vadd.f32 %v4524, %v4659
          %v4661 = vpop.f32.mrb[0].mxu0
          %4662 = vmatprep.mubr.bf16.mxu0 0
          %4663 = vmatmul.mubr.bf16.gmra.mrb[0].mxu0 %v4502
          %v4664 = vpop.f32.mrb[0].mxu0
          %v4665 = vadd.f32 %v4524, %v4664
          %v4666 = vpop.f32.mrb[0].mxu0
          %v4667 = vpop.f32.mrb[0].mxu0
          %v4668 = vadd.f32 %v4524, %v4667
          %v4669 = vpop.f32.mrb[0].mxu0
          %4670 = vdwg.mxu0
          %v4671 = vld [vmem:[%s16] sm:$0x1]
          %v4673 = vlaneseq
          %v4674 = vshrl.u32 %v4673, 7
          %v4675 = vsub.s32 0, %v4674
          %v4676 = vrot.slane %v4671, %v4675
          %v4678 = vmul.f32 %v1979, %v4676
          %v4679 = vmul.f32 %v1980, %v4676
          %v4680 = vmul.f32 %v1981, %v4676
          %v4681 = vmul.f32 %v1982, %v4676
          %v4682 = vmul.f32 %v1983, %v4676
          %v4683 = vmul.f32 %v1984, %v4676
          %v4684 = vmul.f32 %v1985, %v4676
          %v4685 = vmul.f32 %v1986, %v4676
          %v4686 = vmul.f32 %v1987, %v4676
          %v4687 = vmul.f32 %v1988, %v4676
          %v4688 = vmul.f32 %v1989, %v4676
          %v4689 = vmul.f32 %v1990, %v4676
          %v4690 = vmul.f32 %v1991, %v4676
          %v4691 = vmul.f32 %v1992, %v4676
          %v4692 = vmul.f32 %v1993, %v4676
          %v4693 = vmul.f32 %v1994, %v4676
          %v4694 = vadd.f32 %v4609, %v4678
          %v4695 = vadd.f32 %v4612, %v4679
          %v4696 = vadd.f32 %v4617, %v4680
          %v4697 = vadd.f32 %v4620, %v4681
          %v4698 = vadd.f32 %v4625, %v4682
          %v4699 = vadd.f32 %v4628, %v4683
          %v4700 = vadd.f32 %v4633, %v4684
          %v4701 = vadd.f32 %v4636, %v4685
          %v4702 = vadd.f32 %v4641, %v4686
          %v4703 = vadd.f32 %v4644, %v4687
          %v4704 = vadd.f32 %v4649, %v4688
          %v4705 = vadd.f32 %v4652, %v4689
          %v4706 = vadd.f32 %v4657, %v4690
          %v4707 = vadd.f32 %v4660, %v4691
          %v4708 = vadd.f32 %v4665, %v4692
          %v4709 = vadd.f32 %v4668, %v4693
          %4710 = vst [vmem:[#allocation20] sm:$0xff] %v4694
          %4711 = vst [vmem:[#allocation20 + $0x8] sm:$0xff] %v4695
          %4712 = vst [vmem:[#allocation20 + $0x10] sm:$0xff] %v4696
          %4713 = vst [vmem:[#allocation20 + $0x18] sm:$0xff] %v4697
          %4714 = vst [vmem:[#allocation20 + $0x20] sm:$0xff] %v4698
          %4715 = vst [vmem:[#allocation20 + $0x28] sm:$0xff] %v4699
          %4716 = vst [vmem:[#allocation20 + $0x30] sm:$0xff] %v4700
          %4717 = vst [vmem:[#allocation20 + $0x38] sm:$0xff] %v4701
          %4718 = vst [vmem:[#allocation20 + $0x40] sm:$0xff] %v4702
          %4719 = vst [vmem:[#allocation20 + $0x48] sm:$0xff] %v4703
          %4720 = vst [vmem:[#allocation20 + $0x50] sm:$0xff] %v4704
          %4721 = vst [vmem:[#allocation20 + $0x58] sm:$0xff] %v4705
          %4722 = vst [vmem:[#allocation20 + $0x60] sm:$0xff] %v4706
          %4723 = vst [vmem:[#allocation20 + $0x68] sm:$0xff] %v4707
          %4724 = vst [vmem:[#allocation20 + $0x70] sm:$0xff] %v4708
          %4725 = vst [vmem:[#allocation20 + $0x78] sm:$0xff] %v4709
        $region132: #{tpu_custom_call.1} parent=83 // pred_fallthru
          _
        // Predicated region
        $region133: #{tpu_custom_call.1} parent=83 // pred_check
          %p4726 = pneg %p431
        $region134: #{tpu_custom_call.1} parent=83 // pred_check_branch
          %4728 = sbr.rel (%p4726) target = $region136
        $region135: #{tpu_custom_call.1} parent=83 // pred_region
          %s4729 = smul.u32 16, %s49
          %s4731 = ssub.s32 2048, 2048
          %4732 = vsyncadd [#allocation7], %s4731
          %s4733 = smul.addr %s4729, 128
          %s4734 = scalar_lea.hbm %s17, %s4733
          %s4735 = sshll.u32 [#allocation20], 4
          %s4736 = int_to_ptr.vmem [resolvable:$true] %s4735
          %4741 = dma.vmem_to_hbm [thread:$0]  %s4736, 2048, %s4734, [#allocation7], 128, 128, 8
        $region136: #{tpu_custom_call.1} parent=83 // pred_fallthru
          _
        // Predicated region
        $region137: #{tpu_custom_call.1} parent=83 // pred_check
          %p4742 = pneg %p457
        $region138: #{tpu_custom_call.1} parent=83 // pred_check_branch
          %4744 = sbr.rel (%p4742) target = $region140
        $region139: #{tpu_custom_call.1} parent=83 // pred_region
          %s4745 = smul.u32 16, %s49
          %s4747 = ssub.s32 2048, 2048
          %4748 = vsyncadd [#allocation22], %s4747
          %s4749 = smul.addr %s4745, 128
          %s4750 = scalar_lea.hbm %s18, %s4749
          %s4751 = sshll.u32 [#allocation21], 4
          %s4752 = int_to_ptr.vmem [resolvable:$true] %s4751
          %4757 = dma.vmem_to_hbm [thread:$0]  %s4752, 2048, %s4750, [#allocation22], 128, 128, 8
        $region140: #{tpu_custom_call.1} parent=83 // pred_fallthru
          _
        // Predicated region
        $region141: #{tpu_custom_call.1} parent=83 // pred_check
          %p4758 = pneg %p431
        $region142: #{tpu_custom_call.1} parent=83 // pred_check_branch
          %4760 = sbr.rel (%p4758) target = $region144
        $region143: #{tpu_custom_call.1} parent=83 // pred_region
          %4761 = dma.done [#allocation7], 2048
        $region144: #{tpu_custom_call.1} parent=83 // pred_fallthru
          _
        // Predicated region
        $region145: #{tpu_custom_call.1} parent=83 // pred_check
          %p4762 = pneg %p457
        $region146: #{tpu_custom_call.1} parent=83 // pred_check_branch
          %4764 = sbr.rel (%p4762) target = $region148
        $region147: #{tpu_custom_call.1} parent=83 // pred_region
          %4765 = dma.done [#allocation22], 2048
        $region148: #{tpu_custom_call.1} parent=83 // pred_fallthru
          _
      $region84: #{tpu_custom_call.1} parent=5 // pred_fallthru
        _
      %p4766 = scmp.le.s32.totalorder 2, %s40
      // Predicated region
      $region149: #{tpu_custom_call.1} parent=5 // pred_check
        %p4767 = pneg %p4766
      $region150: #{tpu_custom_call.1} parent=5 // pred_check_branch
        %4769 = sbr.rel (%p4767) target = $region152
      $region151: #{tpu_custom_call.1} parent=5 // pred_region
        %s4770 = ssub.s32 %s40, 2
      $region152: #{tpu_custom_call.1} parent=5 // pred_fallthru
        _
    $region6: #{tpu_custom_call.1} parent=1 // loop_footer
      %s44 = sadd.s32 1, %s40
    $region7: #{tpu_custom_call.1} parent=1 // loop_footer_branch
      %39 = sbr.rel target = $region3
    $region8: #{tpu_custom_call.1} parent=1 // loop_exit
      _
    %4771 = vsyncpa [#allocation6], 1
    %s4772 = scalar_lea.sflag [#allocation6], 1
    %4773 = vsyncpa %s4772, 1
    %4774 = vsyncpa [#allocation9], 1
    %s4775 = scalar_lea.sflag [#allocation9], 1
    %4776 = vsyncpa %s4775, 1
    %4777 = vsyncpa [#allocation12], 1
    %4778 = vsyncpa [#allocation15], 1
    %4779 = vsyncpa [#allocation18], 1
    %4780 = vsyncpa [#allocation7], 1
    %s4781 = scalar_lea.sflag [#allocation7], 1
    %4782 = vsyncpa %s4781, 1
    %4783 = vsyncpa [#allocation22], 1

</llo_original>
